<compile_context>
chip_gen: v5e
topology: v5e:2x2
jax: 0.10.0
libtpu: 0.0.40
codegen_flags: <defaults>
</compile_context>

<pallas_src>
import jax
import jax.numpy as jnp
from jax import lax
from jax.experimental import pallas as pl
from jax.experimental.pallas import tpu as pltpu

BETA = 0.95
THRESHOLD = 1.0
NUM_INPUTS = 28 * 28   # 784
NUM_HIDDEN = 64
NUM_OUTPUTS = 10
NUM_STEPS = 25


def _round_up(n, m):
    return ((n + m - 1) // m) * m


def _spike(mem):
    # snntorch Heaviside forward: H(mem - threshold) == (mem > threshold).float()
    return jnp.where(mem > THRESHOLD, 1.0, 0.0).astype(jnp.float32)


def _reset_term(spk):
    # reset * threshold; folded at trace time since THRESHOLD == 1.0 (spikes are 0/1).
    return spk if THRESHOLD == 1.0 else spk * THRESHOLD


def snn_kernel(x_ref, w1_ref, b1_ref, w2_ref, b2_ref, spk_ref, mem_ref):
    """One batch tile.  All recursion state is batch-in-lanes: (features, tb)."""
    tb = x_ref.shape[0]                              # static batch tile size

    x = x_ref[...]                                   # (tb, 784)
    w1 = w1_ref[...]                                 # (64, 784)  PyTorch (out, in)
    b1 = b1_ref[...].astype(jnp.float32)             # (64, 1)
    w2 = w2_ref[...]                                 # (10, 64)   PyTorch (out, in)
    b2 = b2_ref[...].astype(jnp.float32)             # (10, 1)

    # fc1 ONCE (x is constant across the 25 temporal steps), produced directly in the
    # batch-in-lanes layout: cur1t[h, b] = sum_k w1[h, k] * x[b, k] + b1[h].
    cur1t = lax.dot_general(
        w1, x, dimension_numbers=(((1,), (1,)), ((), ())),
        preferred_element_type=jnp.float32) + b1                      # (64, tb)

    # Hoist the fc2 bias lane-broadcast out of the temporal loop (no per-iter broadcast).
    b2t = jnp.broadcast_to(b2, (NUM_OUTPUTS, tb))                     # (10, tb)

    init = (
        jnp.zeros((NUM_HIDDEN, tb), jnp.float32),    # mem1
        jnp.zeros((NUM_HIDDEN, tb), jnp.float32),    # spk1  (== reset_0 == 0)
        jnp.zeros((NUM_OUTPUTS, tb), jnp.float32),   # mem2
        jnp.zeros((NUM_OUTPUTS, tb), jnp.float32),   # spk2  (== reset_0 == 0)
    )

    def step(t, carry):
        mem1, spk1, mem2, spk2 = carry
        # reset_t == H(mem_{t-1} - thr) == spk_{t-1}: reuse the carried spike (exact).
        mem1 = BETA * mem1 + cur1t - _reset_term(spk1)
        spk1 = _spike(mem1)
        # fc2 fused per step: (10,64)@(64,tb) on the MXU, operands stay in vregs/VMEM.
        cur2 = jnp.dot(w2, spk1.astype(w2.dtype),
                       preferred_element_type=jnp.float32) + b2t      # (10, tb)
        mem2 = BETA * mem2 + cur2 - _reset_term(spk2)
        spk2 = _spike(mem2)
        # Stream per-step results straight into the output block (bounded live ranges,
        # no list + concatenate, one dense writeback DMA per tile via the BlockSpec).
        spk_ref[t] = spk2
        mem_ref[t] = mem2
        return (mem1, spk1, mem2, spk2)

    lax.fori_loop(0, NUM_STEPS, step, init, unroll=True)


def snn_forward(x, w1, b1, w2, b2, *, block_batch=128, use_bf16_matmul=False):
    """x: (batch, 784); w1: (64, 784); b1: (64,); w2: (10, 64); b2: (10,) (PyTorch layout).

    Returns (spk2_rec, mem2_rec) with shape (25, batch, 10), matching Net.forward."""
    batch = x.shape[0]
    assert x.shape[1] == NUM_INPUTS

    b1c = jnp.asarray(b1, jnp.float32).reshape(NUM_HIDDEN, 1)
    b2c = jnp.asarray(b2, jnp.float32).reshape(NUM_OUTPUTS, 1)

    if use_bf16_matmul:
        # bf16 MXU operands (f32 accumulation), cast once in HBM.  bf16-rounded x/w1/w2
        # can flip individual spikes near the hard threshold vs the f32 PyTorch
        # reference -- validate spike trains before enabling.
        x = x.astype(jnp.bfloat16)
        w1 = jnp.asarray(w1, jnp.bfloat16)
        w2 = jnp.asarray(w2, jnp.bfloat16)
    else:
        x = jnp.asarray(x, jnp.float32)
        w1 = jnp.asarray(w1, jnp.float32)
        w2 = jnp.asarray(w2, jnp.float32)

    # Batch tiling: a single tile if the 8-padded batch fits in block_batch, otherwise
    # lane-dense 128-multiple tiles (=> grid >= 2 for large batches so both v7x
    # TensorCores get work via the "parallel" axis).
    pb8 = _round_up(batch, 8)
    if pb8 <= max(block_batch, 8):
        tb = pb8
    else:
        tb = _round_up(min(block_batch, pb8), 128)
    pb = _round_up(pb8, tb)
    if pb != batch:
        x = jnp.pad(x, ((0, pb - batch), (0, 0)))

    grid = (pb // tb,)

    spk_t, mem_t = pl.pallas_call(
        snn_kernel,
        out_shape=(
            jax.ShapeDtypeStruct((NUM_STEPS, NUM_OUTPUTS, pb), jnp.float32),
            jax.ShapeDtypeStruct((NUM_STEPS, NUM_OUTPUTS, pb), jnp.float32),
        ),
        grid=grid,
        in_specs=[
            pl.BlockSpec((tb, NUM_INPUTS), lambda i: (i, 0)),            # x: batch-tiled
            pl.BlockSpec((NUM_HIDDEN, NUM_INPUTS), lambda i: (0, 0)),    # w1: resident
            pl.BlockSpec((NUM_HIDDEN, 1), lambda i: (0, 0)),             # b1: resident
            pl.BlockSpec((NUM_OUTPUTS, NUM_HIDDEN), lambda i: (0, 0)),   # w2: resident
            pl.BlockSpec((NUM_OUTPUTS, 1), lambda i: (0, 0)),            # b2: resident
        ],
        out_specs=(
            pl.BlockSpec((NUM_STEPS, NUM_OUTPUTS, tb), lambda i: (0, 0, i)),
            pl.BlockSpec((NUM_STEPS, NUM_OUTPUTS, tb), lambda i: (0, 0, i)),
        ),
        compiler_params=pltpu.CompilerParams(
            dimension_semantics=("parallel",),       # megacore sharding on v7x
        ),
    )(x, w1, b1c, w2, b2c)

    # (25, 10, pb) -> drop batch padding, restore PyTorch (num_steps, batch, 10) layout.
    spk = jnp.transpose(spk_t, (0, 2, 1))[:, :batch, :]
    mem = jnp.transpose(mem_t, (0, 2, 1))[:, :batch, :]
    return spk, mem


def snn_reference(x, w1, b1, w2, b2):
    """Pure-JAX reference mirroring the PyTorch forward (f32, HIGHEST-precision dots)."""
    hp = lax.Precision.HIGHEST
    batch = x.shape[0]
    mem1 = jnp.zeros((batch, NUM_HIDDEN), jnp.float32)
    mem2 = jnp.zeros((batch, NUM_OUTPUTS), jnp.float32)
    spk2s, mem2s = [], []
    for _ in range(NUM_STEPS):
        cur1 = jnp.dot(x, w1.T, precision=hp) + b1
        reset1 = jnp.where(mem1 > THRESHOLD, 1.0, 0.0)
        mem1 = BETA * mem1 + cur1 - reset1 * THRESHOLD
        spk1 = jnp.where(mem1 > THRESHOLD, 1.0, 0.0)
        cur2 = jnp.dot(spk1, w2.T, precision=hp) + b2
        reset2 = jnp.where(mem2 > THRESHOLD, 1.0, 0.0)
        mem2 = BETA * mem2 + cur2 - reset2 * THRESHOLD
        spk2 = jnp.where(mem2 > THRESHOLD, 1.0, 0.0)
        spk2s.append(spk2)
        mem2s.append(mem2)
    return jnp.stack(spk2s, 0), jnp.stack(mem2s, 0)


def init_params(key):
    """Deterministic init mimicking PyTorch nn.Linear (U(-1/sqrt(fan_in), +)), PyTorch layout."""
    k1, k2, k3, k4 = jax.random.split(key, 4)
    bound1 = 1.0 / jnp.sqrt(NUM_INPUTS)
    bound2 = 1.0 / jnp.sqrt(NUM_HIDDEN)
    w1 = jax.random.uniform(k1, (NUM_HIDDEN, NUM_INPUTS), jnp.float32, -bound1, bound1)
    b1 = jax.random.uniform(k2, (NUM_HIDDEN,), jnp.float32, -bound1, bound1)
    w2 = jax.random.uniform(k3, (NUM_OUTPUTS, NUM_HIDDEN), jnp.float32, -bound2, bound2)
    b2 = jax.random.uniform(k4, (NUM_OUTPUTS,), jnp.float32, -bound2, bound2)
    return w1, b1, w2, b2


if __name__ == "__main__":
    key = jax.random.PRNGKey(0)
    kx, kp = jax.random.split(key)

    batch = 2
    # Input analogous to a flattened MNIST image batch, values in [0, 1).
    x = jax.random.uniform(kx, (batch, NUM_INPUTS), jnp.float32)
    w1, b1, w2, b2 = init_params(kp)

    spk2_rec, mem2_rec = snn_forward(x, w1, b1, w2, b2)   # f32 matmuls (bit-faithful mode)
    jax.block_until_ready((spk2_rec, mem2_rec))

    assert spk2_rec.shape == (NUM_STEPS, batch, NUM_OUTPUTS)
    assert mem2_rec.shape == (NUM_STEPS, batch, NUM_OUTPUTS)
    assert bool(jnp.all(jnp.isfinite(mem2_rec)))

    # Soft correctness check vs. a pure-JAX reference.  Tolerances are loose on purpose:
    # membranes sit near the hard threshold, so an f32 summation-order difference can in
    # rare cases flip an isolated spike; a genuinely wrong kernel mismatches >> 5%.
    spk_ref, mem_ref = snn_reference(x, w1, b1, w2, b2)
    spike_mismatch = float(jnp.mean(jnp.abs(spk2_rec - spk_ref)))
    mem_err = float(jnp.mean(jnp.abs(mem2_rec - mem_ref)))
    assert spike_mismatch < 0.05, f"spike mismatch fraction {spike_mismatch}"
    assert mem_err < 0.05, f"mean |mem| error {mem_err}"

    print("KERNEL_OK")
</pallas_src>

<mosaic_0001>
module attributes {stable_mosaic.version = 11 : i64} {
  func.func @snn_kernel(%arg0: i32, %arg1: memref<8x784xf32, #tpu.memory_space<vmem>>, %arg2: memref<64x784xf32, #tpu.memory_space<vmem>>, %arg3: memref<64x1xf32, #tpu.memory_space<vmem>>, %arg4: memref<10x64xf32, #tpu.memory_space<vmem>>, %arg5: memref<10x1xf32, #tpu.memory_space<vmem>>, %arg6: memref<25x10x8xf32, #tpu.memory_space<vmem>>, %arg7: memref<25x10x8xf32, #tpu.memory_space<vmem>>) attributes {dimension_semantics = [#tpu.dimension_semantics<parallel>], iteration_bounds = array<i64: 1>, scalar_prefetch = 0 : i64, scratch_operands = 0 : i64, tpu.core_type = #tpu.core_type<tc>, window_params = [{transform_indices = @transform_0, window_bounds = array<i64: 8, 784>}, {pipeline_mode = #tpu.pipeline_mode<synchronous>, transform_indices = @transform_1, window_bounds = array<i64: 64, 784>}, {pipeline_mode = #tpu.pipeline_mode<synchronous>, transform_indices = @transform_2, window_bounds = array<i64: 64, 1>}, {pipeline_mode = #tpu.pipeline_mode<synchronous>, transform_indices = @transform_3, window_bounds = array<i64: 10, 64>}, {pipeline_mode = #tpu.pipeline_mode<synchronous>, transform_indices = @transform_4, window_bounds = array<i64: 10, 1>}, {transform_indices = @transform_5, window_bounds = array<i64: 25, 10, 8>}, {transform_indices = @transform_6, window_bounds = array<i64: 25, 10, 8>}]} {
    %c0 = arith.constant 0 : index
    %c0_0 = arith.constant 0 : index
    %0 = vector.load %arg1[%c0, %c0_0] : memref<8x784xf32, #tpu.memory_space<vmem>>, vector<8x784xf32>
    %c0_1 = arith.constant 0 : index
    %c0_2 = arith.constant 0 : index
    %1 = vector.load %arg2[%c0_1, %c0_2] : memref<64x784xf32, #tpu.memory_space<vmem>>, vector<64x784xf32>
    %c0_3 = arith.constant 0 : index
    %c0_4 = arith.constant 0 : index
    %2 = vector.load %arg3[%c0_3, %c0_4] : memref<64x1xf32, #tpu.memory_space<vmem>>, vector<64x1xf32>
    %c0_5 = arith.constant 0 : index
    %c0_6 = arith.constant 0 : index
    %3 = vector.load %arg4[%c0_5, %c0_6] : memref<10x64xf32, #tpu.memory_space<vmem>>, vector<10x64xf32>
    %c0_7 = arith.constant 0 : index
    %c0_8 = arith.constant 0 : index
    %4 = vector.load %arg5[%c0_7, %c0_8] : memref<10x1xf32, #tpu.memory_space<vmem>>, vector<10x1xf32>
    %cst = arith.constant dense<0.000000e+00> : vector<64x8xf32>
    %5 = tpu.matmul %1, %0, %cst {dimension_numbers = #tpu.dot_dimension_numbers<[1], [1], [0], [0], [0, 0, 1, 0], [], []>} : vector<64x784xf32>, vector<8x784xf32>, vector<64x8xf32> -> vector<64x8xf32>
    %6 = vector.broadcast %2 : vector<64x1xf32> to vector<64x8xf32>
    %7 = arith.addf %5, %6 : vector<64x8xf32>
    %8 = vector.shape_cast %4 : vector<10x1xf32> to vector<10x1xf32>
    %9 = vector.broadcast %8 : vector<10x1xf32> to vector<10x8xf32>
    %cst_9 = arith.constant 0.000000e+00 : f32
    %10 = vector.broadcast %cst_9 : f32 to vector<64x8xf32>
    %cst_10 = arith.constant 0.000000e+00 : f32
    %11 = vector.broadcast %cst_10 : f32 to vector<64x8xf32>
    %cst_11 = arith.constant 0.000000e+00 : f32
    %12 = vector.broadcast %cst_11 : f32 to vector<10x8xf32>
    %cst_12 = arith.constant 0.000000e+00 : f32
    %13 = vector.broadcast %cst_12 : f32 to vector<10x8xf32>
    %c0_i32 = arith.constant 0 : i32
    %cst_13 = arith.constant 0.949999988 : f32
    %14 = vector.broadcast %cst_13 : f32 to vector<64x8xf32>
    %15 = arith.mulf %14, %10 : vector<64x8xf32>
    %16 = arith.addf %15, %7 : vector<64x8xf32>
    %17 = arith.subf %16, %11 : vector<64x8xf32>
    %cst_14 = arith.constant 1.000000e+00 : f32
    %18 = vector.broadcast %cst_14 : f32 to vector<64x8xf32>
    %19 = arith.cmpf ogt, %17, %18 : vector<64x8xf32>
    %cst_15 = arith.constant 1.000000e+00 : f32
    %cst_16 = arith.constant 0.000000e+00 : f32
    %20 = vector.broadcast %cst_15 : f32 to vector<64x8xf32>
    %21 = vector.broadcast %cst_16 : f32 to vector<64x8xf32>
    %22 = arith.select %19, %20, %21 : vector<64x8xi1>, vector<64x8xf32>
    %cst_17 = arith.constant dense<0.000000e+00> : vector<10x8xf32>
    %23 = tpu.matmul %3, %22, %cst_17 {dimension_numbers = #tpu.dot_dimension_numbers<[1], [0], [0], [1], [0, 0, 1, 1], [], []>} : vector<10x64xf32>, vector<64x8xf32>, vector<10x8xf32> -> vector<10x8xf32>
    %24 = arith.addf %23, %9 : vector<10x8xf32>
    %cst_18 = arith.constant 0.949999988 : f32
    %25 = vector.broadcast %cst_18 : f32 to vector<10x8xf32>
    %26 = arith.mulf %25, %12 : vector<10x8xf32>
    %27 = arith.addf %26, %24 : vector<10x8xf32>
    %28 = arith.subf %27, %13 : vector<10x8xf32>
    %cst_19 = arith.constant 1.000000e+00 : f32
    %29 = vector.broadcast %cst_19 : f32 to vector<10x8xf32>
    %30 = arith.cmpf ogt, %28, %29 : vector<10x8xf32>
    %cst_20 = arith.constant 1.000000e+00 : f32
    %cst_21 = arith.constant 0.000000e+00 : f32
    %31 = vector.broadcast %cst_20 : f32 to vector<10x8xf32>
    %32 = vector.broadcast %cst_21 : f32 to vector<10x8xf32>
    %33 = arith.select %30, %31, %32 : vector<10x8xi1>, vector<10x8xf32>
    %34 = arith.index_cast %c0_i32 : i32 to index
    %c0_22 = arith.constant 0 : index
    %c0_23 = arith.constant 0 : index
    %35 = vector.load %arg6[%34, %c0_22, %c0_23] : memref<25x10x8xf32, #tpu.memory_space<vmem>>, vector<1x10x8xf32>
    %36 = vector.shape_cast %35 : vector<1x10x8xf32> to vector<10x8xf32>
    %37 = vector.shape_cast %33 : vector<10x8xf32> to vector<1x10x8xf32>
    tpu.vector_store %arg6[%34, %c0_22, %c0_23], %37 {strides = array<i32>} : memref<25x10x8xf32, #tpu.memory_space<vmem>>, vector<1x10x8xf32>,
    %38 = arith.index_cast %c0_i32 : i32 to index
    %c0_24 = arith.constant 0 : index
    %c0_25 = arith.constant 0 : index
    %39 = vector.load %arg7[%38, %c0_24, %c0_25] : memref<25x10x8xf32, #tpu.memory_space<vmem>>, vector<1x10x8xf32>
    %40 = vector.shape_cast %39 : vector<1x10x8xf32> to vector<10x8xf32>
    %41 = vector.shape_cast %28 : vector<10x8xf32> to vector<1x10x8xf32>
    tpu.vector_store %arg7[%38, %c0_24, %c0_25], %41 {strides = array<i32>} : memref<25x10x8xf32, #tpu.memory_space<vmem>>, vector<1x10x8xf32>,
    %c1_i32 = arith.constant 1 : i32
    %cst_26 = arith.constant 0.949999988 : f32
    %42 = vector.broadcast %cst_26 : f32 to vector<64x8xf32>
    %43 = arith.mulf %42, %17 : vector<64x8xf32>
    %44 = arith.addf %43, %7 : vector<64x8xf32>
    %45 = arith.subf %44, %22 : vector<64x8xf32>
    %cst_27 = arith.constant 1.000000e+00 : f32
    %46 = vector.broadcast %cst_27 : f32 to vector<64x8xf32>
    %47 = arith.cmpf ogt, %45, %46 : vector<64x8xf32>
    %cst_28 = arith.constant 1.000000e+00 : f32
    %cst_29 = arith.constant 0.000000e+00 : f32
    %48 = vector.broadcast %cst_28 : f32 to vector<64x8xf32>
    %49 = vector.broadcast %cst_29 : f32 to vector<64x8xf32>
    %50 = arith.select %47, %48, %49 : vector<64x8xi1>, vector<64x8xf32>
    %cst_30 = arith.constant dense<0.000000e+00> : vector<10x8xf32>
    %51 = tpu.matmul %3, %50, %cst_30 {dimension_numbers = #tpu.dot_dimension_numbers<[1], [0], [0], [1], [0, 0, 1, 1], [], []>} : vector<10x64xf32>, vector<64x8xf32>, vector<10x8xf32> -> vector<10x8xf32>
    %52 = arith.addf %51, %9 : vector<10x8xf32>
    %cst_31 = arith.constant 0.949999988 : f32
    %53 = vector.broadcast %cst_31 : f32 to vector<10x8xf32>
    %54 = arith.mulf %53, %28 : vector<10x8xf32>
    %55 = arith.addf %54, %52 : vector<10x8xf32>
    %56 = arith.subf %55, %33 : vector<10x8xf32>
    %cst_32 = arith.constant 1.000000e+00 : f32
    %57 = vector.broadcast %cst_32 : f32 to vector<10x8xf32>
    %58 = arith.cmpf ogt, %56, %57 : vector<10x8xf32>
    %cst_33 = arith.constant 1.000000e+00 : f32
    %cst_34 = arith.constant 0.000000e+00 : f32
    %59 = vector.broadcast %cst_33 : f32 to vector<10x8xf32>
    %60 = vector.broadcast %cst_34 : f32 to vector<10x8xf32>
    %61 = arith.select %58, %59, %60 : vector<10x8xi1>, vector<10x8xf32>
    %62 = arith.index_cast %c1_i32 : i32 to index
    %c0_35 = arith.constant 0 : index
    %c0_36 = arith.constant 0 : index
    %63 = vector.load %arg6[%62, %c0_35, %c0_36] : memref<25x10x8xf32, #tpu.memory_space<vmem>>, vector<1x10x8xf32>
    %64 = vector.shape_cast %63 : vector<1x10x8xf32> to vector<10x8xf32>
    %65 = vector.shape_cast %61 : vector<10x8xf32> to vector<1x10x8xf32>
    tpu.vector_store %arg6[%62, %c0_35, %c0_36], %65 {strides = array<i32>} : memref<25x10x8xf32, #tpu.memory_space<vmem>>, vector<1x10x8xf32>,
    %66 = arith.index_cast %c1_i32 : i32 to index
    %c0_37 = arith.constant 0 : index
    %c0_38 = arith.constant 0 : index
    %67 = vector.load %arg7[%66, %c0_37, %c0_38] : memref<25x10x8xf32, #tpu.memory_space<vmem>>, vector<1x10x8xf32>
    %68 = vector.shape_cast %67 : vector<1x10x8xf32> to vector<10x8xf32>
    %69 = vector.shape_cast %56 : vector<10x8xf32> to vector<1x10x8xf32>
    tpu.vector_store %arg7[%66, %c0_37, %c0_38], %69 {strides = array<i32>} : memref<25x10x8xf32, #tpu.memory_space<vmem>>, vector<1x10x8xf32>,
    %c2_i32 = arith.constant 2 : i32
    %cst_39 = arith.constant 0.949999988 : f32
    %70 = vector.broadcast %cst_39 : f32 to vector<64x8xf32>
    %71 = arith.mulf %70, %45 : vector<64x8xf32>
    %72 = arith.addf %71, %7 : vector<64x8xf32>
    %73 = arith.subf %72, %50 : vector<64x8xf32>
    %cst_40 = arith.constant 1.000000e+00 : f32
    %74 = vector.broadcast %cst_40 : f32 to vector<64x8xf32>
    %75 = arith.cmpf ogt, %73, %74 : vector<64x8xf32>
    %cst_41 = arith.constant 1.000000e+00 : f32
    %cst_42 = arith.constant 0.000000e+00 : f32
    %76 = vector.broadcast %cst_41 : f32 to vector<64x8xf32>
    %77 = vector.broadcast %cst_42 : f32 to vector<64x8xf32>
    %78 = arith.select %75, %76, %77 : vector<64x8xi1>, vector<64x8xf32>
    %cst_43 = arith.constant dense<0.000000e+00> : vector<10x8xf32>
    %79 = tpu.matmul %3, %78, %cst_43 {dimension_numbers = #tpu.dot_dimension_numbers<[1], [0], [0], [1], [0, 0, 1, 1], [], []>} : vector<10x64xf32>, vector<64x8xf32>, vector<10x8xf32> -> vector<10x8xf32>
    %80 = arith.addf %79, %9 : vector<10x8xf32>
    %cst_44 = arith.constant 0.949999988 : f32
    %81 = vector.broadcast %cst_44 : f32 to vector<10x8xf32>
    %82 = arith.mulf %81, %56 : vector<10x8xf32>
    %83 = arith.addf %82, %80 : vector<10x8xf32>
    %84 = arith.subf %83, %61 : vector<10x8xf32>
    %cst_45 = arith.constant 1.000000e+00 : f32
    %85 = vector.broadcast %cst_45 : f32 to vector<10x8xf32>
    %86 = arith.cmpf ogt, %84, %85 : vector<10x8xf32>
    %cst_46 = arith.constant 1.000000e+00 : f32
    %cst_47 = arith.constant 0.000000e+00 : f32
    %87 = vector.broadcast %cst_46 : f32 to vector<10x8xf32>
    %88 = vector.broadcast %cst_47 : f32 to vector<10x8xf32>
    %89 = arith.select %86, %87, %88 : vector<10x8xi1>, vector<10x8xf32>
    %90 = arith.index_cast %c2_i32 : i32 to index
    %c0_48 = arith.constant 0 : index
    %c0_49 = arith.constant 0 : index
    %91 = vector.load %arg6[%90, %c0_48, %c0_49] : memref<25x10x8xf32, #tpu.memory_space<vmem>>, vector<1x10x8xf32>
    %92 = vector.shape_cast %91 : vector<1x10x8xf32> to vector<10x8xf32>
    %93 = vector.shape_cast %89 : vector<10x8xf32> to vector<1x10x8xf32>
    tpu.vector_store %arg6[%90, %c0_48, %c0_49], %93 {strides = array<i32>} : memref<25x10x8xf32, #tpu.memory_space<vmem>>, vector<1x10x8xf32>,
    %94 = arith.index_cast %c2_i32 : i32 to index
    %c0_50 = arith.constant 0 : index
    %c0_51 = arith.constant 0 : index
    %95 = vector.load %arg7[%94, %c0_50, %c0_51] : memref<25x10x8xf32, #tpu.memory_space<vmem>>, vector<1x10x8xf32>
    %96 = vector.shape_cast %95 : vector<1x10x8xf32> to vector<10x8xf32>
    %97 = vector.shape_cast %84 : vector<10x8xf32> to vector<1x10x8xf32>
    tpu.vector_store %arg7[%94, %c0_50, %c0_51], %97 {strides = array<i32>} : memref<25x10x8xf32, #tpu.memory_space<vmem>>, vector<1x10x8xf32>,
    %c3_i32 = arith.constant 3 : i32
    %cst_52 = arith.constant 0.949999988 : f32
    %98 = vector.broadcast %cst_52 : f32 to vector<64x8xf32>
    %99 = arith.mulf %98, %73 : vector<64x8xf32>
    %100 = arith.addf %99, %7 : vector<64x8xf32>
    %101 = arith.subf %100, %78 : vector<64x8xf32>
    %cst_53 = arith.constant 1.000000e+00 : f32
    %102 = vector.broadcast %cst_53 : f32 to vector<64x8xf32>
    %103 = arith.cmpf ogt, %101, %102 : vector<64x8xf32>
    %cst_54 = arith.constant 1.000000e+00 : f32
    %cst_55 = arith.constant 0.000000e+00 : f32
    %104 = vector.broadcast %cst_54 : f32 to vector<64x8xf32>
    %105 = vector.broadcast %cst_55 : f32 to vector<64x8xf32>
    %106 = arith.select %103, %104, %105 : vector<64x8xi1>, vector<64x8xf32>
    %cst_56 = arith.constant dense<0.000000e+00> : vector<10x8xf32>
    %107 = tpu.matmul %3, %106, %cst_56 {dimension_numbers = #tpu.dot_dimension_numbers<[1], [0], [0], [1], [0, 0, 1, 1], [], []>} : vector<10x64xf32>, vector<64x8xf32>, vector<10x8xf32> -> vector<10x8xf32>
    %108 = arith.addf %107, %9 : vector<10x8xf32>
    %cst_57 = arith.constant 0.949999988 : f32
    %109 = vector.broadcast %cst_57 : f32 to vector<10x8xf32>
    %110 = arith.mulf %109, %84 : vector<10x8xf32>
    %111 = arith.addf %110, %108 : vector<10x8xf32>
    %112 = arith.subf %111, %89 : vector<10x8xf32>
    %cst_58 = arith.constant 1.000000e+00 : f32
    %113 = vector.broadcast %cst_58 : f32 to vector<10x8xf32>
    %114 = arith.cmpf ogt, %112, %113 : vector<10x8xf32>
    %cst_59 = arith.constant 1.000000e+00 : f32
    %cst_60 = arith.constant 0.000000e+00 : f32
    %115 = vector.broadcast %cst_59 : f32 to vector<10x8xf32>
    %116 = vector.broadcast %cst_60 : f32 to vector<10x8xf32>
    %117 = arith.select %114, %115, %116 : vector<10x8xi1>, vector<10x8xf32>
    %118 = arith.index_cast %c3_i32 : i32 to index
    %c0_61 = arith.constant 0 : index
    %c0_62 = arith.constant 0 : index
    %119 = vector.load %arg6[%118, %c0_61, %c0_62] : memref<25x10x8xf32, #tpu.memory_space<vmem>>, vector<1x10x8xf32>
    %120 = vector.shape_cast %119 : vector<1x10x8xf32> to vector<10x8xf32>
    %121 = vector.shape_cast %117 : vector<10x8xf32> to vector<1x10x8xf32>
    tpu.vector_store %arg6[%118, %c0_61, %c0_62], %121 {strides = array<i32>} : memref<25x10x8xf32, #tpu.memory_space<vmem>>, vector<1x10x8xf32>,
    %122 = arith.index_cast %c3_i32 : i32 to index
    %c0_63 = arith.constant 0 : index
    %c0_64 = arith.constant 0 : index
    %123 = vector.load %arg7[%122, %c0_63, %c0_64] : memref<25x10x8xf32, #tpu.memory_space<vmem>>, vector<1x10x8xf32>
    %124 = vector.shape_cast %123 : vector<1x10x8xf32> to vector<10x8xf32>
    %125 = vector.shape_cast %112 : vector<10x8xf32> to vector<1x10x8xf32>
    tpu.vector_store %arg7[%122, %c0_63, %c0_64], %125 {strides = array<i32>} : memref<25x10x8xf32, #tpu.memory_space<vmem>>, vector<1x10x8xf32>,
    %c4_i32 = arith.constant 4 : i32
    %cst_65 = arith.constant 0.949999988 : f32
    %126 = vector.broadcast %cst_65 : f32 to vector<64x8xf32>
    %127 = arith.mulf %126, %101 : vector<64x8xf32>
    %128 = arith.addf %127, %7 : vector<64x8xf32>
    %129 = arith.subf %128, %106 : vector<64x8xf32>
    %cst_66 = arith.constant 1.000000e+00 : f32
    %130 = vector.broadcast %cst_66 : f32 to vector<64x8xf32>
    %131 = arith.cmpf ogt, %129, %130 : vector<64x8xf32>
    %cst_67 = arith.constant 1.000000e+00 : f32
    %cst_68 = arith.constant 0.000000e+00 : f32
    %132 = vector.broadcast %cst_67 : f32 to vector<64x8xf32>
    %133 = vector.broadcast %cst_68 : f32 to vector<64x8xf32>
    %134 = arith.select %131, %132, %133 : vector<64x8xi1>, vector<64x8xf32>
    %cst_69 = arith.constant dense<0.000000e+00> : vector<10x8xf32>
    %135 = tpu.matmul %3, %134, %cst_69 {dimension_numbers = #tpu.dot_dimension_numbers<[1], [0], [0], [1], [0, 0, 1, 1], [], []>} : vector<10x64xf32>, vector<64x8xf32>, vector<10x8xf32> -> vector<10x8xf32>
    %136 = arith.addf %135, %9 : vector<10x8xf32>
    %cst_70 = arith.constant 0.949999988 : f32
    %137 = vector.broadcast %cst_70 : f32 to vector<10x8xf32>
    %138 = arith.mulf %137, %112 : vector<10x8xf32>
    %139 = arith.addf %138, %136 : vector<10x8xf32>
    %140 = arith.subf %139, %117 : vector<10x8xf32>
    %cst_71 = arith.constant 1.000000e+00 : f32
    %141 = vector.broadcast %cst_71 : f32 to vector<10x8xf32>
    %142 = arith.cmpf ogt, %140, %141 : vector<10x8xf32>
    %cst_72 = arith.constant 1.000000e+00 : f32
    %cst_73 = arith.constant 0.000000e+00 : f32
    %143 = vector.broadcast %cst_72 : f32 to vector<10x8xf32>
    %144 = vector.broadcast %cst_73 : f32 to vector<10x8xf32>
    %145 = arith.select %142, %143, %144 : vector<10x8xi1>, vector<10x8xf32>
    %146 = arith.index_cast %c4_i32 : i32 to index
    %c0_74 = arith.constant 0 : index
    %c0_75 = arith.constant 0 : index
    %147 = vector.load %arg6[%146, %c0_74, %c0_75] : memref<25x10x8xf32, #tpu.memory_space<vmem>>, vector<1x10x8xf32>
    %148 = vector.shape_cast %147 : vector<1x10x8xf32> to vector<10x8xf32>
    %149 = vector.shape_cast %145 : vector<10x8xf32> to vector<1x10x8xf32>
    tpu.vector_store %arg6[%146, %c0_74, %c0_75], %149 {strides = array<i32>} : memref<25x10x8xf32, #tpu.memory_space<vmem>>, vector<1x10x8xf32>,
    %150 = arith.index_cast %c4_i32 : i32 to index
    %c0_76 = arith.constant 0 : index
    %c0_77 = arith.constant 0 : index
    %151 = vector.load %arg7[%150, %c0_76, %c0_77] : memref<25x10x8xf32, #tpu.memory_space<vmem>>, vector<1x10x8xf32>
    %152 = vector.shape_cast %151 : vector<1x10x8xf32> to vector<10x8xf32>
    %153 = vector.shape_cast %140 : vector<10x8xf32> to vector<1x10x8xf32>
    tpu.vector_store %arg7[%150, %c0_76, %c0_77], %153 {strides = array<i32>} : memref<25x10x8xf32, #tpu.memory_space<vmem>>, vector<1x10x8xf32>,
    %c5_i32 = arith.constant 5 : i32
    %cst_78 = arith.constant 0.949999988 : f32
    %154 = vector.broadcast %cst_78 : f32 to vector<64x8xf32>
    %155 = arith.mulf %154, %129 : vector<64x8xf32>
    %156 = arith.addf %155, %7 : vector<64x8xf32>
    %157 = arith.subf %156, %134 : vector<64x8xf32>
    %cst_79 = arith.constant 1.000000e+00 : f32
    %158 = vector.broadcast %cst_79 : f32 to vector<64x8xf32>
    %159 = arith.cmpf ogt, %157, %158 : vector<64x8xf32>
    %cst_80 = arith.constant 1.000000e+00 : f32
    %cst_81 = arith.constant 0.000000e+00 : f32
    %160 = vector.broadcast %cst_80 : f32 to vector<64x8xf32>
    %161 = vector.broadcast %cst_81 : f32 to vector<64x8xf32>
    %162 = arith.select %159, %160, %161 : vector<64x8xi1>, vector<64x8xf32>
    %cst_82 = arith.constant dense<0.000000e+00> : vector<10x8xf32>
    %163 = tpu.matmul %3, %162, %cst_82 {dimension_numbers = #tpu.dot_dimension_numbers<[1], [0], [0], [1], [0, 0, 1, 1], [], []>} : vector<10x64xf32>, vector<64x8xf32>, vector<10x8xf32> -> vector<10x8xf32>
    %164 = arith.addf %163, %9 : vector<10x8xf32>
    %cst_83 = arith.constant 0.949999988 : f32
    %165 = vector.broadcast %cst_83 : f32 to vector<10x8xf32>
    %166 = arith.mulf %165, %140 : vector<10x8xf32>
    %167 = arith.addf %166, %164 : vector<10x8xf32>
    %168 = arith.subf %167, %145 : vector<10x8xf32>
    %cst_84 = arith.constant 1.000000e+00 : f32
    %169 = vector.broadcast %cst_84 : f32 to vector<10x8xf32>
    %170 = arith.cmpf ogt, %168, %169 : vector<10x8xf32>
    %cst_85 = arith.constant 1.000000e+00 : f32
    %cst_86 = arith.constant 0.000000e+00 : f32
    %171 = vector.broadcast %cst_85 : f32 to vector<10x8xf32>
    %172 = vector.broadcast %cst_86 : f32 to vector<10x8xf32>
    %173 = arith.select %170, %171, %172 : vector<10x8xi1>, vector<10x8xf32>
    %174 = arith.index_cast %c5_i32 : i32 to index
    %c0_87 = arith.constant 0 : index
    %c0_88 = arith.constant 0 : index
    %175 = vector.load %arg6[%174, %c0_87, %c0_88] : memref<25x10x8xf32, #tpu.memory_space<vmem>>, vector<1x10x8xf32>
    %176 = vector.shape_cast %175 : vector<1x10x8xf32> to vector<10x8xf32>
    %177 = vector.shape_cast %173 : vector<10x8xf32> to vector<1x10x8xf32>
    tpu.vector_store %arg6[%174, %c0_87, %c0_88], %177 {strides = array<i32>} : memref<25x10x8xf32, #tpu.memory_space<vmem>>, vector<1x10x8xf32>,
    %178 = arith.index_cast %c5_i32 : i32 to index
    %c0_89 = arith.constant 0 : index
    %c0_90 = arith.constant 0 : index
    %179 = vector.load %arg7[%178, %c0_89, %c0_90] : memref<25x10x8xf32, #tpu.memory_space<vmem>>, vector<1x10x8xf32>
    %180 = vector.shape_cast %179 : vector<1x10x8xf32> to vector<10x8xf32>
    %181 = vector.shape_cast %168 : vector<10x8xf32> to vector<1x10x8xf32>
    tpu.vector_store %arg7[%178, %c0_89, %c0_90], %181 {strides = array<i32>} : memref<25x10x8xf32, #tpu.memory_space<vmem>>, vector<1x10x8xf32>,
    %c6_i32 = arith.constant 6 : i32
    %cst_91 = arith.constant 0.949999988 : f32
    %182 = vector.broadcast %cst_91 : f32 to vector<64x8xf32>
    %183 = arith.mulf %182, %157 : vector<64x8xf32>
    %184 = arith.addf %183, %7 : vector<64x8xf32>
    %185 = arith.subf %184, %162 : vector<64x8xf32>
    %cst_92 = arith.constant 1.000000e+00 : f32
    %186 = vector.broadcast %cst_92 : f32 to vector<64x8xf32>
    %187 = arith.cmpf ogt, %185, %186 : vector<64x8xf32>
    %cst_93 = arith.constant 1.000000e+00 : f32
    %cst_94 = arith.constant 0.000000e+00 : f32
    %188 = vector.broadcast %cst_93 : f32 to vector<64x8xf32>
    %189 = vector.broadcast %cst_94 : f32 to vector<64x8xf32>
    %190 = arith.select %187, %188, %189 : vector<64x8xi1>, vector<64x8xf32>
    %cst_95 = arith.constant dense<0.000000e+00> : vector<10x8xf32>
    %191 = tpu.matmul %3, %190, %cst_95 {dimension_numbers = #tpu.dot_dimension_numbers<[1], [0], [0], [1], [0, 0, 1, 1], [], []>} : vector<10x64xf32>, vector<64x8xf32>, vector<10x8xf32> -> vector<10x8xf32>
    %192 = arith.addf %191, %9 : vector<10x8xf32>
    %cst_96 = arith.constant 0.949999988 : f32
    %193 = vector.broadcast %cst_96 : f32 to vector<10x8xf32>
    %194 = arith.mulf %193, %168 : vector<10x8xf32>
    %195 = arith.addf %194, %192 : vector<10x8xf32>
    %196 = arith.subf %195, %173 : vector<10x8xf32>
    %cst_97 = arith.constant 1.000000e+00 : f32
    %197 = vector.broadcast %cst_97 : f32 to vector<10x8xf32>
    %198 = arith.cmpf ogt, %196, %197 : vector<10x8xf32>
    %cst_98 = arith.constant 1.000000e+00 : f32
    %cst_99 = arith.constant 0.000000e+00 : f32
    %199 = vector.broadcast %cst_98 : f32 to vector<10x8xf32>
    %200 = vector.broadcast %cst_99 : f32 to vector<10x8xf32>
    %201 = arith.select %198, %199, %200 : vector<10x8xi1>, vector<10x8xf32>
    %202 = arith.index_cast %c6_i32 : i32 to index
    %c0_100 = arith.constant 0 : index
    %c0_101 = arith.constant 0 : index
    %203 = vector.load %arg6[%202, %c0_100, %c0_101] : memref<25x10x8xf32, #tpu.memory_space<vmem>>, vector<1x10x8xf32>
    %204 = vector.shape_cast %203 : vector<1x10x8xf32> to vector<10x8xf32>
    %205 = vector.shape_cast %201 : vector<10x8xf32> to vector<1x10x8xf32>
    tpu.vector_store %arg6[%202, %c0_100, %c0_101], %205 {strides = array<i32>} : memref<25x10x8xf32, #tpu.memory_space<vmem>>, vector<1x10x8xf32>,
    %206 = arith.index_cast %c6_i32 : i32 to index
    %c0_102 = arith.constant 0 : index
    %c0_103 = arith.constant 0 : index
    %207 = vector.load %arg7[%206, %c0_102, %c0_103] : memref<25x10x8xf32, #tpu.memory_space<vmem>>, vector<1x10x8xf32>
    %208 = vector.shape_cast %207 : vector<1x10x8xf32> to vector<10x8xf32>
    %209 = vector.shape_cast %196 : vector<10x8xf32> to vector<1x10x8xf32>
    tpu.vector_store %arg7[%206, %c0_102, %c0_103], %209 {strides = array<i32>} : memref<25x10x8xf32, #tpu.memory_space<vmem>>, vector<1x10x8xf32>,
    %c7_i32 = arith.constant 7 : i32
    %cst_104 = arith.constant 0.949999988 : f32
    %210 = vector.broadcast %cst_104 : f32 to vector<64x8xf32>
    %211 = arith.mulf %210, %185 : vector<64x8xf32>
    %212 = arith.addf %211, %7 : vector<64x8xf32>
    %213 = arith.subf %212, %190 : vector<64x8xf32>
    %cst_105 = arith.constant 1.000000e+00 : f32
    %214 = vector.broadcast %cst_105 : f32 to vector<64x8xf32>
    %215 = arith.cmpf ogt, %213, %214 : vector<64x8xf32>
    %cst_106 = arith.constant 1.000000e+00 : f32
    %cst_107 = arith.constant 0.000000e+00 : f32
    %216 = vector.broadcast %cst_106 : f32 to vector<64x8xf32>
    %217 = vector.broadcast %cst_107 : f32 to vector<64x8xf32>
    %218 = arith.select %215, %216, %217 : vector<64x8xi1>, vector<64x8xf32>
    %cst_108 = arith.constant dense<0.000000e+00> : vector<10x8xf32>
    %219 = tpu.matmul %3, %218, %cst_108 {dimension_numbers = #tpu.dot_dimension_numbers<[1], [0], [0], [1], [0, 0, 1, 1], [], []>} : vector<10x64xf32>, vector<64x8xf32>, vector<10x8xf32> -> vector<10x8xf32>
    %220 = arith.addf %219, %9 : vector<10x8xf32>
    %cst_109 = arith.constant 0.949999988 : f32
    %221 = vector.broadcast %cst_109 : f32 to vector<10x8xf32>
    %222 = arith.mulf %221, %196 : vector<10x8xf32>
    %223 = arith.addf %222, %220 : vector<10x8xf32>
    %224 = arith.subf %223, %201 : vector<10x8xf32>
    %cst_110 = arith.constant 1.000000e+00 : f32
    %225 = vector.broadcast %cst_110 : f32 to vector<10x8xf32>
    %226 = arith.cmpf ogt, %224, %225 : vector<10x8xf32>
    %cst_111 = arith.constant 1.000000e+00 : f32
    %cst_112 = arith.constant 0.000000e+00 : f32
    %227 = vector.broadcast %cst_111 : f32 to vector<10x8xf32>
    %228 = vector.broadcast %cst_112 : f32 to vector<10x8xf32>
    %229 = arith.select %226, %227, %228 : vector<10x8xi1>, vector<10x8xf32>
    %230 = arith.index_cast %c7_i32 : i32 to index
    %c0_113 = arith.constant 0 : index
    %c0_114 = arith.constant 0 : index
    %231 = vector.load %arg6[%230, %c0_113, %c0_114] : memref<25x10x8xf32, #tpu.memory_space<vmem>>, vector<1x10x8xf32>
    %232 = vector.shape_cast %231 : vector<1x10x8xf32> to vector<10x8xf32>
    %233 = vector.shape_cast %229 : vector<10x8xf32> to vector<1x10x8xf32>
    tpu.vector_store %arg6[%230, %c0_113, %c0_114], %233 {strides = array<i32>} : memref<25x10x8xf32, #tpu.memory_space<vmem>>, vector<1x10x8xf32>,
    %234 = arith.index_cast %c7_i32 : i32 to index
    %c0_115 = arith.constant 0 : index
    %c0_116 = arith.constant 0 : index
    %235 = vector.load %arg7[%234, %c0_115, %c0_116] : memref<25x10x8xf32, #tpu.memory_space<vmem>>, vector<1x10x8xf32>
    %236 = vector.shape_cast %235 : vector<1x10x8xf32> to vector<10x8xf32>
    %237 = vector.shape_cast %224 : vector<10x8xf32> to vector<1x10x8xf32>
    tpu.vector_store %arg7[%234, %c0_115, %c0_116], %237 {strides = array<i32>} : memref<25x10x8xf32, #tpu.memory_space<vmem>>, vector<1x10x8xf32>,
    %c8_i32 = arith.constant 8 : i32
    %cst_117 = arith.constant 0.949999988 : f32
    %238 = vector.broadcast %cst_117 : f32 to vector<64x8xf32>
    %239 = arith.mulf %238, %213 : vector<64x8xf32>
    %240 = arith.addf %239, %7 : vector<64x8xf32>
    %241 = arith.subf %240, %218 : vector<64x8xf32>
    %cst_118 = arith.constant 1.000000e+00 : f32
    %242 = vector.broadcast %cst_118 : f32 to vector<64x8xf32>
    %243 = arith.cmpf ogt, %241, %242 : vector<64x8xf32>
    %cst_119 = arith.constant 1.000000e+00 : f32
    %cst_120 = arith.constant 0.000000e+00 : f32
    %244 = vector.broadcast %cst_119 : f32 to vector<64x8xf32>
    %245 = vector.broadcast %cst_120 : f32 to vector<64x8xf32>
    %246 = arith.select %243, %244, %245 : vector<64x8xi1>, vector<64x8xf32>
    %cst_121 = arith.constant dense<0.000000e+00> : vector<10x8xf32>
    %247 = tpu.matmul %3, %246, %cst_121 {dimension_numbers = #tpu.dot_dimension_numbers<[1], [0], [0], [1], [0, 0, 1, 1], [], []>} : vector<10x64xf32>, vector<64x8xf32>, vector<10x8xf32> -> vector<10x8xf32>
    %248 = arith.addf %247, %9 : vector<10x8xf32>
    %cst_122 = arith.constant 0.949999988 : f32
    %249 = vector.broadcast %cst_122 : f32 to vector<10x8xf32>
    %250 = arith.mulf %249, %224 : vector<10x8xf32>
    %251 = arith.addf %250, %248 : vector<10x8xf32>
    %252 = arith.subf %251, %229 : vector<10x8xf32>
    %cst_123 = arith.constant 1.000000e+00 : f32
    %253 = vector.broadcast %cst_123 : f32 to vector<10x8xf32>
    %254 = arith.cmpf ogt, %252, %253 : vector<10x8xf32>
    %cst_124 = arith.constant 1.000000e+00 : f32
    %cst_125 = arith.constant 0.000000e+00 : f32
    %255 = vector.broadcast %cst_124 : f32 to vector<10x8xf32>
    %256 = vector.broadcast %cst_125 : f32 to vector<10x8xf32>
    %257 = arith.select %254, %255, %256 : vector<10x8xi1>, vector<10x8xf32>
    %258 = arith.index_cast %c8_i32 : i32 to index
    %c0_126 = arith.constant 0 : index
    %c0_127 = arith.constant 0 : index
    %259 = vector.load %arg6[%258, %c0_126, %c0_127] : memref<25x10x8xf32, #tpu.memory_space<vmem>>, vector<1x10x8xf32>
    %260 = vector.shape_cast %259 : vector<1x10x8xf32> to vector<10x8xf32>
    %261 = vector.shape_cast %257 : vector<10x8xf32> to vector<1x10x8xf32>
    tpu.vector_store %arg6[%258, %c0_126, %c0_127], %261 {strides = array<i32>} : memref<25x10x8xf32, #tpu.memory_space<vmem>>, vector<1x10x8xf32>,
    %262 = arith.index_cast %c8_i32 : i32 to index
    %c0_128 = arith.constant 0 : index
    %c0_129 = arith.constant 0 : index
    %263 = vector.load %arg7[%262, %c0_128, %c0_129] : memref<25x10x8xf32, #tpu.memory_space<vmem>>, vector<1x10x8xf32>
    %264 = vector.shape_cast %263 : vector<1x10x8xf32> to vector<10x8xf32>
    %265 = vector.shape_cast %252 : vector<10x8xf32> to vector<1x10x8xf32>
    tpu.vector_store %arg7[%262, %c0_128, %c0_129], %265 {strides = array<i32>} : memref<25x10x8xf32, #tpu.memory_space<vmem>>, vector<1x10x8xf32>,
    %c9_i32 = arith.constant 9 : i32
    %cst_130 = arith.constant 0.949999988 : f32
    %266 = vector.broadcast %cst_130 : f32 to vector<64x8xf32>
    %267 = arith.mulf %266, %241 : vector<64x8xf32>
    %268 = arith.addf %267, %7 : vector<64x8xf32>
    %269 = arith.subf %268, %246 : vector<64x8xf32>
    %cst_131 = arith.constant 1.000000e+00 : f32
    %270 = vector.broadcast %cst_131 : f32 to vector<64x8xf32>
    %271 = arith.cmpf ogt, %269, %270 : vector<64x8xf32>
    %cst_132 = arith.constant 1.000000e+00 : f32
    %cst_133 = arith.constant 0.000000e+00 : f32
    %272 = vector.broadcast %cst_132 : f32 to vector<64x8xf32>
    %273 = vector.broadcast %cst_133 : f32 to vector<64x8xf32>
    %274 = arith.select %271, %272, %273 : vector<64x8xi1>, vector<64x8xf32>
    %cst_134 = arith.constant dense<0.000000e+00> : vector<10x8xf32>
    %275 = tpu.matmul %3, %274, %cst_134 {dimension_numbers = #tpu.dot_dimension_numbers<[1], [0], [0], [1], [0, 0, 1, 1], [], []>} : vector<10x64xf32>, vector<64x8xf32>, vector<10x8xf32> -> vector<10x8xf32>
    %276 = arith.addf %275, %9 : vector<10x8xf32>
    %cst_135 = arith.constant 0.949999988 : f32
    %277 = vector.broadcast %cst_135 : f32 to vector<10x8xf32>
    %278 = arith.mulf %277, %252 : vector<10x8xf32>
    %279 = arith.addf %278, %276 : vector<10x8xf32>
    %280 = arith.subf %279, %257 : vector<10x8xf32>
    %cst_136 = arith.constant 1.000000e+00 : f32
    %281 = vector.broadcast %cst_136 : f32 to vector<10x8xf32>
    %282 = arith.cmpf ogt, %280, %281 : vector<10x8xf32>
    %cst_137 = arith.constant 1.000000e+00 : f32
    %cst_138 = arith.constant 0.000000e+00 : f32
    %283 = vector.broadcast %cst_137 : f32 to vector<10x8xf32>
    %284 = vector.broadcast %cst_138 : f32 to vector<10x8xf32>
    %285 = arith.select %282, %283, %284 : vector<10x8xi1>, vector<10x8xf32>
    %286 = arith.index_cast %c9_i32 : i32 to index
    %c0_139 = arith.constant 0 : index
    %c0_140 = arith.constant 0 : index
    %287 = vector.load %arg6[%286, %c0_139, %c0_140] : memref<25x10x8xf32, #tpu.memory_space<vmem>>, vector<1x10x8xf32>
    %288 = vector.shape_cast %287 : vector<1x10x8xf32> to vector<10x8xf32>
    %289 = vector.shape_cast %285 : vector<10x8xf32> to vector<1x10x8xf32>
    tpu.vector_store %arg6[%286, %c0_139, %c0_140], %289 {strides = array<i32>} : memref<25x10x8xf32, #tpu.memory_space<vmem>>, vector<1x10x8xf32>,
    %290 = arith.index_cast %c9_i32 : i32 to index
    %c0_141 = arith.constant 0 : index
    %c0_142 = arith.constant 0 : index
    %291 = vector.load %arg7[%290, %c0_141, %c0_142] : memref<25x10x8xf32, #tpu.memory_space<vmem>>, vector<1x10x8xf32>
    %292 = vector.shape_cast %291 : vector<1x10x8xf32> to vector<10x8xf32>
    %293 = vector.shape_cast %280 : vector<10x8xf32> to vector<1x10x8xf32>
    tpu.vector_store %arg7[%290, %c0_141, %c0_142], %293 {strides = array<i32>} : memref<25x10x8xf32, #tpu.memory_space<vmem>>, vector<1x10x8xf32>,
    %c10_i32 = arith.constant 10 : i32
    %cst_143 = arith.constant 0.949999988 : f32
    %294 = vector.broadcast %cst_143 : f32 to vector<64x8xf32>
    %295 = arith.mulf %294, %269 : vector<64x8xf32>
    %296 = arith.addf %295, %7 : vector<64x8xf32>
    %297 = arith.subf %296, %274 : vector<64x8xf32>
    %cst_144 = arith.constant 1.000000e+00 : f32
    %298 = vector.broadcast %cst_144 : f32 to vector<64x8xf32>
    %299 = arith.cmpf ogt, %297, %298 : vector<64x8xf32>
    %cst_145 = arith.constant 1.000000e+00 : f32
    %cst_146 = arith.constant 0.000000e+00 : f32
    %300 = vector.broadcast %cst_145 : f32 to vector<64x8xf32>
    %301 = vector.broadcast %cst_146 : f32 to vector<64x8xf32>
    %302 = arith.select %299, %300, %301 : vector<64x8xi1>, vector<64x8xf32>
    %cst_147 = arith.constant dense<0.000000e+00> : vector<10x8xf32>
    %303 = tpu.matmul %3, %302, %cst_147 {dimension_numbers = #tpu.dot_dimension_numbers<[1], [0], [0], [1], [0, 0, 1, 1], [], []>} : vector<10x64xf32>, vector<64x8xf32>, vector<10x8xf32> -> vector<10x8xf32>
    %304 = arith.addf %303, %9 : vector<10x8xf32>
    %cst_148 = arith.constant 0.949999988 : f32
    %305 = vector.broadcast %cst_148 : f32 to vector<10x8xf32>
    %306 = arith.mulf %305, %280 : vector<10x8xf32>
    %307 = arith.addf %306, %304 : vector<10x8xf32>
    %308 = arith.subf %307, %285 : vector<10x8xf32>
    %cst_149 = arith.constant 1.000000e+00 : f32
    %309 = vector.broadcast %cst_149 : f32 to vector<10x8xf32>
    %310 = arith.cmpf ogt, %308, %309 : vector<10x8xf32>
    %cst_150 = arith.constant 1.000000e+00 : f32
    %cst_151 = arith.constant 0.000000e+00 : f32
    %311 = vector.broadcast %cst_150 : f32 to vector<10x8xf32>
    %312 = vector.broadcast %cst_151 : f32 to vector<10x8xf32>
    %313 = arith.select %310, %311, %312 : vector<10x8xi1>, vector<10x8xf32>
    %314 = arith.index_cast %c10_i32 : i32 to index
    %c0_152 = arith.constant 0 : index
    %c0_153 = arith.constant 0 : index
    %315 = vector.load %arg6[%314, %c0_152, %c0_153] : memref<25x10x8xf32, #tpu.memory_space<vmem>>, vector<1x10x8xf32>
    %316 = vector.shape_cast %315 : vector<1x10x8xf32> to vector<10x8xf32>
    %317 = vector.shape_cast %313 : vector<10x8xf32> to vector<1x10x8xf32>
    tpu.vector_store %arg6[%314, %c0_152, %c0_153], %317 {strides = array<i32>} : memref<25x10x8xf32, #tpu.memory_space<vmem>>, vector<1x10x8xf32>,
    %318 = arith.index_cast %c10_i32 : i32 to index
    %c0_154 = arith.constant 0 : index
    %c0_155 = arith.constant 0 : index
    %319 = vector.load %arg7[%318, %c0_154, %c0_155] : memref<25x10x8xf32, #tpu.memory_space<vmem>>, vector<1x10x8xf32>
    %320 = vector.shape_cast %319 : vector<1x10x8xf32> to vector<10x8xf32>
    %321 = vector.shape_cast %308 : vector<10x8xf32> to vector<1x10x8xf32>
    tpu.vector_store %arg7[%318, %c0_154, %c0_155], %321 {strides = array<i32>} : memref<25x10x8xf32, #tpu.memory_space<vmem>>, vector<1x10x8xf32>,
    %c11_i32 = arith.constant 11 : i32
    %cst_156 = arith.constant 0.949999988 : f32
    %322 = vector.broadcast %cst_156 : f32 to vector<64x8xf32>
    %323 = arith.mulf %322, %297 : vector<64x8xf32>
    %324 = arith.addf %323, %7 : vector<64x8xf32>
    %325 = arith.subf %324, %302 : vector<64x8xf32>
    %cst_157 = arith.constant 1.000000e+00 : f32
    %326 = vector.broadcast %cst_157 : f32 to vector<64x8xf32>
    %327 = arith.cmpf ogt, %325, %326 : vector<64x8xf32>
    %cst_158 = arith.constant 1.000000e+00 : f32
    %cst_159 = arith.constant 0.000000e+00 : f32
    %328 = vector.broadcast %cst_158 : f32 to vector<64x8xf32>
    %329 = vector.broadcast %cst_159 : f32 to vector<64x8xf32>
    %330 = arith.select %327, %328, %329 : vector<64x8xi1>, vector<64x8xf32>
    %cst_160 = arith.constant dense<0.000000e+00> : vector<10x8xf32>
    %331 = tpu.matmul %3, %330, %cst_160 {dimension_numbers = #tpu.dot_dimension_numbers<[1], [0], [0], [1], [0, 0, 1, 1], [], []>} : vector<10x64xf32>, vector<64x8xf32>, vector<10x8xf32> -> vector<10x8xf32>
    %332 = arith.addf %331, %9 : vector<10x8xf32>
    %cst_161 = arith.constant 0.949999988 : f32
    %333 = vector.broadcast %cst_161 : f32 to vector<10x8xf32>
    %334 = arith.mulf %333, %308 : vector<10x8xf32>
    %335 = arith.addf %334, %332 : vector<10x8xf32>
    %336 = arith.subf %335, %313 : vector<10x8xf32>
    %cst_162 = arith.constant 1.000000e+00 : f32
    %337 = vector.broadcast %cst_162 : f32 to vector<10x8xf32>
    %338 = arith.cmpf ogt, %336, %337 : vector<10x8xf32>
    %cst_163 = arith.constant 1.000000e+00 : f32
    %cst_164 = arith.constant 0.000000e+00 : f32
    %339 = vector.broadcast %cst_163 : f32 to vector<10x8xf32>
    %340 = vector.broadcast %cst_164 : f32 to vector<10x8xf32>
    %341 = arith.select %338, %339, %340 : vector<10x8xi1>, vector<10x8xf32>
    %342 = arith.index_cast %c11_i32 : i32 to index
    %c0_165 = arith.constant 0 : index
    %c0_166 = arith.constant 0 : index
    %343 = vector.load %arg6[%342, %c0_165, %c0_166] : memref<25x10x8xf32, #tpu.memory_space<vmem>>, vector<1x10x8xf32>
    %344 = vector.shape_cast %343 : vector<1x10x8xf32> to vector<10x8xf32>
    %345 = vector.shape_cast %341 : vector<10x8xf32> to vector<1x10x8xf32>
    tpu.vector_store %arg6[%342, %c0_165, %c0_166], %345 {strides = array<i32>} : memref<25x10x8xf32, #tpu.memory_space<vmem>>, vector<1x10x8xf32>,
    %346 = arith.index_cast %c11_i32 : i32 to index
    %c0_167 = arith.constant 0 : index
    %c0_168 = arith.constant 0 : index
    %347 = vector.load %arg7[%346, %c0_167, %c0_168] : memref<25x10x8xf32, #tpu.memory_space<vmem>>, vector<1x10x8xf32>
    %348 = vector.shape_cast %347 : vector<1x10x8xf32> to vector<10x8xf32>
    %349 = vector.shape_cast %336 : vector<10x8xf32> to vector<1x10x8xf32>
    tpu.vector_store %arg7[%346, %c0_167, %c0_168], %349 {strides = array<i32>} : memref<25x10x8xf32, #tpu.memory_space<vmem>>, vector<1x10x8xf32>,
    %c12_i32 = arith.constant 12 : i32
    %cst_169 = arith.constant 0.949999988 : f32
    %350 = vector.broadcast %cst_169 : f32 to vector<64x8xf32>
    %351 = arith.mulf %350, %325 : vector<64x8xf32>
    %352 = arith.addf %351, %7 : vector<64x8xf32>
    %353 = arith.subf %352, %330 : vector<64x8xf32>
    %cst_170 = arith.constant 1.000000e+00 : f32
    %354 = vector.broadcast %cst_170 : f32 to vector<64x8xf32>
    %355 = arith.cmpf ogt, %353, %354 : vector<64x8xf32>
    %cst_171 = arith.constant 1.000000e+00 : f32
    %cst_172 = arith.constant 0.000000e+00 : f32
    %356 = vector.broadcast %cst_171 : f32 to vector<64x8xf32>
    %357 = vector.broadcast %cst_172 : f32 to vector<64x8xf32>
    %358 = arith.select %355, %356, %357 : vector<64x8xi1>, vector<64x8xf32>
    %cst_173 = arith.constant dense<0.000000e+00> : vector<10x8xf32>
    %359 = tpu.matmul %3, %358, %cst_173 {dimension_numbers = #tpu.dot_dimension_numbers<[1], [0], [0], [1], [0, 0, 1, 1], [], []>} : vector<10x64xf32>, vector<64x8xf32>, vector<10x8xf32> -> vector<10x8xf32>
    %360 = arith.addf %359, %9 : vector<10x8xf32>
    %cst_174 = arith.constant 0.949999988 : f32
    %361 = vector.broadcast %cst_174 : f32 to vector<10x8xf32>
    %362 = arith.mulf %361, %336 : vector<10x8xf32>
    %363 = arith.addf %362, %360 : vector<10x8xf32>
    %364 = arith.subf %363, %341 : vector<10x8xf32>
    %cst_175 = arith.constant 1.000000e+00 : f32
    %365 = vector.broadcast %cst_175 : f32 to vector<10x8xf32>
    %366 = arith.cmpf ogt, %364, %365 : vector<10x8xf32>
    %cst_176 = arith.constant 1.000000e+00 : f32
    %cst_177 = arith.constant 0.000000e+00 : f32
    %367 = vector.broadcast %cst_176 : f32 to vector<10x8xf32>
    %368 = vector.broadcast %cst_177 : f32 to vector<10x8xf32>
    %369 = arith.select %366, %367, %368 : vector<10x8xi1>, vector<10x8xf32>
    %370 = arith.index_cast %c12_i32 : i32 to index
    %c0_178 = arith.constant 0 : index
    %c0_179 = arith.constant 0 : index
    %371 = vector.load %arg6[%370, %c0_178, %c0_179] : memref<25x10x8xf32, #tpu.memory_space<vmem>>, vector<1x10x8xf32>
    %372 = vector.shape_cast %371 : vector<1x10x8xf32> to vector<10x8xf32>
    %373 = vector.shape_cast %369 : vector<10x8xf32> to vector<1x10x8xf32>
    tpu.vector_store %arg6[%370, %c0_178, %c0_179], %373 {strides = array<i32>} : memref<25x10x8xf32, #tpu.memory_space<vmem>>, vector<1x10x8xf32>,
    %374 = arith.index_cast %c12_i32 : i32 to index
    %c0_180 = arith.constant 0 : index
    %c0_181 = arith.constant 0 : index
    %375 = vector.load %arg7[%374, %c0_180, %c0_181] : memref<25x10x8xf32, #tpu.memory_space<vmem>>, vector<1x10x8xf32>
    %376 = vector.shape_cast %375 : vector<1x10x8xf32> to vector<10x8xf32>
    %377 = vector.shape_cast %364 : vector<10x8xf32> to vector<1x10x8xf32>
    tpu.vector_store %arg7[%374, %c0_180, %c0_181], %377 {strides = array<i32>} : memref<25x10x8xf32, #tpu.memory_space<vmem>>, vector<1x10x8xf32>,
    %c13_i32 = arith.constant 13 : i32
    %cst_182 = arith.constant 0.949999988 : f32
    %378 = vector.broadcast %cst_182 : f32 to vector<64x8xf32>
    %379 = arith.mulf %378, %353 : vector<64x8xf32>
    %380 = arith.addf %379, %7 : vector<64x8xf32>
    %381 = arith.subf %380, %358 : vector<64x8xf32>
    %cst_183 = arith.constant 1.000000e+00 : f32
    %382 = vector.broadcast %cst_183 : f32 to vector<64x8xf32>
    %383 = arith.cmpf ogt, %381, %382 : vector<64x8xf32>
    %cst_184 = arith.constant 1.000000e+00 : f32
    %cst_185 = arith.constant 0.000000e+00 : f32
    %384 = vector.broadcast %cst_184 : f32 to vector<64x8xf32>
    %385 = vector.broadcast %cst_185 : f32 to vector<64x8xf32>
    %386 = arith.select %383, %384, %385 : vector<64x8xi1>, vector<64x8xf32>
    %cst_186 = arith.constant dense<0.000000e+00> : vector<10x8xf32>
    %387 = tpu.matmul %3, %386, %cst_186 {dimension_numbers = #tpu.dot_dimension_numbers<[1], [0], [0], [1], [0, 0, 1, 1], [], []>} : vector<10x64xf32>, vector<64x8xf32>, vector<10x8xf32> -> vector<10x8xf32>
    %388 = arith.addf %387, %9 : vector<10x8xf32>
    %cst_187 = arith.constant 0.949999988 : f32
    %389 = vector.broadcast %cst_187 : f32 to vector<10x8xf32>
    %390 = arith.mulf %389, %364 : vector<10x8xf32>
    %391 = arith.addf %390, %388 : vector<10x8xf32>
    %392 = arith.subf %391, %369 : vector<10x8xf32>
    %cst_188 = arith.constant 1.000000e+00 : f32
    %393 = vector.broadcast %cst_188 : f32 to vector<10x8xf32>
    %394 = arith.cmpf ogt, %392, %393 : vector<10x8xf32>
    %cst_189 = arith.constant 1.000000e+00 : f32
    %cst_190 = arith.constant 0.000000e+00 : f32
    %395 = vector.broadcast %cst_189 : f32 to vector<10x8xf32>
    %396 = vector.broadcast %cst_190 : f32 to vector<10x8xf32>
    %397 = arith.select %394, %395, %396 : vector<10x8xi1>, vector<10x8xf32>
    %398 = arith.index_cast %c13_i32 : i32 to index
    %c0_191 = arith.constant 0 : index
    %c0_192 = arith.constant 0 : index
    %399 = vector.load %arg6[%398, %c0_191, %c0_192] : memref<25x10x8xf32, #tpu.memory_space<vmem>>, vector<1x10x8xf32>
    %400 = vector.shape_cast %399 : vector<1x10x8xf32> to vector<10x8xf32>
    %401 = vector.shape_cast %397 : vector<10x8xf32> to vector<1x10x8xf32>
    tpu.vector_store %arg6[%398, %c0_191, %c0_192], %401 {strides = array<i32>} : memref<25x10x8xf32, #tpu.memory_space<vmem>>, vector<1x10x8xf32>,
    %402 = arith.index_cast %c13_i32 : i32 to index
    %c0_193 = arith.constant 0 : index
    %c0_194 = arith.constant 0 : index
    %403 = vector.load %arg7[%402, %c0_193, %c0_194] : memref<25x10x8xf32, #tpu.memory_space<vmem>>, vector<1x10x8xf32>
    %404 = vector.shape_cast %403 : vector<1x10x8xf32> to vector<10x8xf32>
    %405 = vector.shape_cast %392 : vector<10x8xf32> to vector<1x10x8xf32>
    tpu.vector_store %arg7[%402, %c0_193, %c0_194], %405 {strides = array<i32>} : memref<25x10x8xf32, #tpu.memory_space<vmem>>, vector<1x10x8xf32>,
    %c14_i32 = arith.constant 14 : i32
    %cst_195 = arith.constant 0.949999988 : f32
    %406 = vector.broadcast %cst_195 : f32 to vector<64x8xf32>
    %407 = arith.mulf %406, %381 : vector<64x8xf32>
    %408 = arith.addf %407, %7 : vector<64x8xf32>
    %409 = arith.subf %408, %386 : vector<64x8xf32>
    %cst_196 = arith.constant 1.000000e+00 : f32
    %410 = vector.broadcast %cst_196 : f32 to vector<64x8xf32>
    %411 = arith.cmpf ogt, %409, %410 : vector<64x8xf32>
    %cst_197 = arith.constant 1.000000e+00 : f32
    %cst_198 = arith.constant 0.000000e+00 : f32
    %412 = vector.broadcast %cst_197 : f32 to vector<64x8xf32>
    %413 = vector.broadcast %cst_198 : f32 to vector<64x8xf32>
    %414 = arith.select %411, %412, %413 : vector<64x8xi1>, vector<64x8xf32>
    %cst_199 = arith.constant dense<0.000000e+00> : vector<10x8xf32>
    %415 = tpu.matmul %3, %414, %cst_199 {dimension_numbers = #tpu.dot_dimension_numbers<[1], [0], [0], [1], [0, 0, 1, 1], [], []>} : vector<10x64xf32>, vector<64x8xf32>, vector<10x8xf32> -> vector<10x8xf32>
    %416 = arith.addf %415, %9 : vector<10x8xf32>
    %cst_200 = arith.constant 0.949999988 : f32
    %417 = vector.broadcast %cst_200 : f32 to vector<10x8xf32>
    %418 = arith.mulf %417, %392 : vector<10x8xf32>
    %419 = arith.addf %418, %416 : vector<10x8xf32>
    %420 = arith.subf %419, %397 : vector<10x8xf32>
    %cst_201 = arith.constant 1.000000e+00 : f32
    %421 = vector.broadcast %cst_201 : f32 to vector<10x8xf32>
    %422 = arith.cmpf ogt, %420, %421 : vector<10x8xf32>
    %cst_202 = arith.constant 1.000000e+00 : f32
    %cst_203 = arith.constant 0.000000e+00 : f32
    %423 = vector.broadcast %cst_202 : f32 to vector<10x8xf32>
    %424 = vector.broadcast %cst_203 : f32 to vector<10x8xf32>
    %425 = arith.select %422, %423, %424 : vector<10x8xi1>, vector<10x8xf32>
    %426 = arith.index_cast %c14_i32 : i32 to index
    %c0_204 = arith.constant 0 : index
    %c0_205 = arith.constant 0 : index
    %427 = vector.load %arg6[%426, %c0_204, %c0_205] : memref<25x10x8xf32, #tpu.memory_space<vmem>>, vector<1x10x8xf32>
    %428 = vector.shape_cast %427 : vector<1x10x8xf32> to vector<10x8xf32>
    %429 = vector.shape_cast %425 : vector<10x8xf32> to vector<1x10x8xf32>
    tpu.vector_store %arg6[%426, %c0_204, %c0_205], %429 {strides = array<i32>} : memref<25x10x8xf32, #tpu.memory_space<vmem>>, vector<1x10x8xf32>,
    %430 = arith.index_cast %c14_i32 : i32 to index
    %c0_206 = arith.constant 0 : index
    %c0_207 = arith.constant 0 : index
    %431 = vector.load %arg7[%430, %c0_206, %c0_207] : memref<25x10x8xf32, #tpu.memory_space<vmem>>, vector<1x10x8xf32>
    %432 = vector.shape_cast %431 : vector<1x10x8xf32> to vector<10x8xf32>
    %433 = vector.shape_cast %420 : vector<10x8xf32> to vector<1x10x8xf32>
    tpu.vector_store %arg7[%430, %c0_206, %c0_207], %433 {strides = array<i32>} : memref<25x10x8xf32, #tpu.memory_space<vmem>>, vector<1x10x8xf32>,
    %c15_i32 = arith.constant 15 : i32
    %cst_208 = arith.constant 0.949999988 : f32
    %434 = vector.broadcast %cst_208 : f32 to vector<64x8xf32>
    %435 = arith.mulf %434, %409 : vector<64x8xf32>
    %436 = arith.addf %435, %7 : vector<64x8xf32>
    %437 = arith.subf %436, %414 : vector<64x8xf32>
    %cst_209 = arith.constant 1.000000e+00 : f32
    %438 = vector.broadcast %cst_209 : f32 to vector<64x8xf32>
    %439 = arith.cmpf ogt, %437, %438 : vector<64x8xf32>
    %cst_210 = arith.constant 1.000000e+00 : f32
    %cst_211 = arith.constant 0.000000e+00 : f32
    %440 = vector.broadcast %cst_210 : f32 to vector<64x8xf32>
    %441 = vector.broadcast %cst_211 : f32 to vector<64x8xf32>
    %442 = arith.select %439, %440, %441 : vector<64x8xi1>, vector<64x8xf32>
    %cst_212 = arith.constant dense<0.000000e+00> : vector<10x8xf32>
    %443 = tpu.matmul %3, %442, %cst_212 {dimension_numbers = #tpu.dot_dimension_numbers<[1], [0], [0], [1], [0, 0, 1, 1], [], []>} : vector<10x64xf32>, vector<64x8xf32>, vector<10x8xf32> -> vector<10x8xf32>
    %444 = arith.addf %443, %9 : vector<10x8xf32>
    %cst_213 = arith.constant 0.949999988 : f32
    %445 = vector.broadcast %cst_213 : f32 to vector<10x8xf32>
    %446 = arith.mulf %445, %420 : vector<10x8xf32>
    %447 = arith.addf %446, %444 : vector<10x8xf32>
    %448 = arith.subf %447, %425 : vector<10x8xf32>
    %cst_214 = arith.constant 1.000000e+00 : f32
    %449 = vector.broadcast %cst_214 : f32 to vector<10x8xf32>
    %450 = arith.cmpf ogt, %448, %449 : vector<10x8xf32>
    %cst_215 = arith.constant 1.000000e+00 : f32
    %cst_216 = arith.constant 0.000000e+00 : f32
    %451 = vector.broadcast %cst_215 : f32 to vector<10x8xf32>
    %452 = vector.broadcast %cst_216 : f32 to vector<10x8xf32>
    %453 = arith.select %450, %451, %452 : vector<10x8xi1>, vector<10x8xf32>
    %454 = arith.index_cast %c15_i32 : i32 to index
    %c0_217 = arith.constant 0 : index
    %c0_218 = arith.constant 0 : index
    %455 = vector.load %arg6[%454, %c0_217, %c0_218] : memref<25x10x8xf32, #tpu.memory_space<vmem>>, vector<1x10x8xf32>
    %456 = vector.shape_cast %455 : vector<1x10x8xf32> to vector<10x8xf32>
    %457 = vector.shape_cast %453 : vector<10x8xf32> to vector<1x10x8xf32>
    tpu.vector_store %arg6[%454, %c0_217, %c0_218], %457 {strides = array<i32>} : memref<25x10x8xf32, #tpu.memory_space<vmem>>, vector<1x10x8xf32>,
    %458 = arith.index_cast %c15_i32 : i32 to index
    %c0_219 = arith.constant 0 : index
    %c0_220 = arith.constant 0 : index
    %459 = vector.load %arg7[%458, %c0_219, %c0_220] : memref<25x10x8xf32, #tpu.memory_space<vmem>>, vector<1x10x8xf32>
    %460 = vector.shape_cast %459 : vector<1x10x8xf32> to vector<10x8xf32>
    %461 = vector.shape_cast %448 : vector<10x8xf32> to vector<1x10x8xf32>
    tpu.vector_store %arg7[%458, %c0_219, %c0_220], %461 {strides = array<i32>} : memref<25x10x8xf32, #tpu.memory_space<vmem>>, vector<1x10x8xf32>,
    %c16_i32 = arith.constant 16 : i32
    %cst_221 = arith.constant 0.949999988 : f32
    %462 = vector.broadcast %cst_221 : f32 to vector<64x8xf32>
    %463 = arith.mulf %462, %437 : vector<64x8xf32>
    %464 = arith.addf %463, %7 : vector<64x8xf32>
    %465 = arith.subf %464, %442 : vector<64x8xf32>
    %cst_222 = arith.constant 1.000000e+00 : f32
    %466 = vector.broadcast %cst_222 : f32 to vector<64x8xf32>
    %467 = arith.cmpf ogt, %465, %466 : vector<64x8xf32>
    %cst_223 = arith.constant 1.000000e+00 : f32
    %cst_224 = arith.constant 0.000000e+00 : f32
    %468 = vector.broadcast %cst_223 : f32 to vector<64x8xf32>
    %469 = vector.broadcast %cst_224 : f32 to vector<64x8xf32>
    %470 = arith.select %467, %468, %469 : vector<64x8xi1>, vector<64x8xf32>
    %cst_225 = arith.constant dense<0.000000e+00> : vector<10x8xf32>
    %471 = tpu.matmul %3, %470, %cst_225 {dimension_numbers = #tpu.dot_dimension_numbers<[1], [0], [0], [1], [0, 0, 1, 1], [], []>} : vector<10x64xf32>, vector<64x8xf32>, vector<10x8xf32> -> vector<10x8xf32>
    %472 = arith.addf %471, %9 : vector<10x8xf32>
    %cst_226 = arith.constant 0.949999988 : f32
    %473 = vector.broadcast %cst_226 : f32 to vector<10x8xf32>
    %474 = arith.mulf %473, %448 : vector<10x8xf32>
    %475 = arith.addf %474, %472 : vector<10x8xf32>
    %476 = arith.subf %475, %453 : vector<10x8xf32>
    %cst_227 = arith.constant 1.000000e+00 : f32
    %477 = vector.broadcast %cst_227 : f32 to vector<10x8xf32>
    %478 = arith.cmpf ogt, %476, %477 : vector<10x8xf32>
    %cst_228 = arith.constant 1.000000e+00 : f32
    %cst_229 = arith.constant 0.000000e+00 : f32
    %479 = vector.broadcast %cst_228 : f32 to vector<10x8xf32>
    %480 = vector.broadcast %cst_229 : f32 to vector<10x8xf32>
    %481 = arith.select %478, %479, %480 : vector<10x8xi1>, vector<10x8xf32>
    %482 = arith.index_cast %c16_i32 : i32 to index
    %c0_230 = arith.constant 0 : index
    %c0_231 = arith.constant 0 : index
    %483 = vector.load %arg6[%482, %c0_230, %c0_231] : memref<25x10x8xf32, #tpu.memory_space<vmem>>, vector<1x10x8xf32>
    %484 = vector.shape_cast %483 : vector<1x10x8xf32> to vector<10x8xf32>
    %485 = vector.shape_cast %481 : vector<10x8xf32> to vector<1x10x8xf32>
    tpu.vector_store %arg6[%482, %c0_230, %c0_231], %485 {strides = array<i32>} : memref<25x10x8xf32, #tpu.memory_space<vmem>>, vector<1x10x8xf32>,
    %486 = arith.index_cast %c16_i32 : i32 to index
    %c0_232 = arith.constant 0 : index
    %c0_233 = arith.constant 0 : index
    %487 = vector.load %arg7[%486, %c0_232, %c0_233] : memref<25x10x8xf32, #tpu.memory_space<vmem>>, vector<1x10x8xf32>
    %488 = vector.shape_cast %487 : vector<1x10x8xf32> to vector<10x8xf32>
    %489 = vector.shape_cast %476 : vector<10x8xf32> to vector<1x10x8xf32>
    tpu.vector_store %arg7[%486, %c0_232, %c0_233], %489 {strides = array<i32>} : memref<25x10x8xf32, #tpu.memory_space<vmem>>, vector<1x10x8xf32>,
    %c17_i32 = arith.constant 17 : i32
    %cst_234 = arith.constant 0.949999988 : f32
    %490 = vector.broadcast %cst_234 : f32 to vector<64x8xf32>
    %491 = arith.mulf %490, %465 : vector<64x8xf32>
    %492 = arith.addf %491, %7 : vector<64x8xf32>
    %493 = arith.subf %492, %470 : vector<64x8xf32>
    %cst_235 = arith.constant 1.000000e+00 : f32
    %494 = vector.broadcast %cst_235 : f32 to vector<64x8xf32>
    %495 = arith.cmpf ogt, %493, %494 : vector<64x8xf32>
    %cst_236 = arith.constant 1.000000e+00 : f32
    %cst_237 = arith.constant 0.000000e+00 : f32
    %496 = vector.broadcast %cst_236 : f32 to vector<64x8xf32>
    %497 = vector.broadcast %cst_237 : f32 to vector<64x8xf32>
    %498 = arith.select %495, %496, %497 : vector<64x8xi1>, vector<64x8xf32>
    %cst_238 = arith.constant dense<0.000000e+00> : vector<10x8xf32>
    %499 = tpu.matmul %3, %498, %cst_238 {dimension_numbers = #tpu.dot_dimension_numbers<[1], [0], [0], [1], [0, 0, 1, 1], [], []>} : vector<10x64xf32>, vector<64x8xf32>, vector<10x8xf32> -> vector<10x8xf32>
    %500 = arith.addf %499, %9 : vector<10x8xf32>
    %cst_239 = arith.constant 0.949999988 : f32
    %501 = vector.broadcast %cst_239 : f32 to vector<10x8xf32>
    %502 = arith.mulf %501, %476 : vector<10x8xf32>
    %503 = arith.addf %502, %500 : vector<10x8xf32>
    %504 = arith.subf %503, %481 : vector<10x8xf32>
    %cst_240 = arith.constant 1.000000e+00 : f32
    %505 = vector.broadcast %cst_240 : f32 to vector<10x8xf32>
    %506 = arith.cmpf ogt, %504, %505 : vector<10x8xf32>
    %cst_241 = arith.constant 1.000000e+00 : f32
    %cst_242 = arith.constant 0.000000e+00 : f32
    %507 = vector.broadcast %cst_241 : f32 to vector<10x8xf32>
    %508 = vector.broadcast %cst_242 : f32 to vector<10x8xf32>
    %509 = arith.select %506, %507, %508 : vector<10x8xi1>, vector<10x8xf32>
    %510 = arith.index_cast %c17_i32 : i32 to index
    %c0_243 = arith.constant 0 : index
    %c0_244 = arith.constant 0 : index
    %511 = vector.load %arg6[%510, %c0_243, %c0_244] : memref<25x10x8xf32, #tpu.memory_space<vmem>>, vector<1x10x8xf32>
    %512 = vector.shape_cast %511 : vector<1x10x8xf32> to vector<10x8xf32>
    %513 = vector.shape_cast %509 : vector<10x8xf32> to vector<1x10x8xf32>
    tpu.vector_store %arg6[%510, %c0_243, %c0_244], %513 {strides = array<i32>} : memref<25x10x8xf32, #tpu.memory_space<vmem>>, vector<1x10x8xf32>,
    %514 = arith.index_cast %c17_i32 : i32 to index
    %c0_245 = arith.constant 0 : index
    %c0_246 = arith.constant 0 : index
    %515 = vector.load %arg7[%514, %c0_245, %c0_246] : memref<25x10x8xf32, #tpu.memory_space<vmem>>, vector<1x10x8xf32>
    %516 = vector.shape_cast %515 : vector<1x10x8xf32> to vector<10x8xf32>
    %517 = vector.shape_cast %504 : vector<10x8xf32> to vector<1x10x8xf32>
    tpu.vector_store %arg7[%514, %c0_245, %c0_246], %517 {strides = array<i32>} : memref<25x10x8xf32, #tpu.memory_space<vmem>>, vector<1x10x8xf32>,
    %c18_i32 = arith.constant 18 : i32
    %cst_247 = arith.constant 0.949999988 : f32
    %518 = vector.broadcast %cst_247 : f32 to vector<64x8xf32>
    %519 = arith.mulf %518, %493 : vector<64x8xf32>
    %520 = arith.addf %519, %7 : vector<64x8xf32>
    %521 = arith.subf %520, %498 : vector<64x8xf32>
    %cst_248 = arith.constant 1.000000e+00 : f32
    %522 = vector.broadcast %cst_248 : f32 to vector<64x8xf32>
    %523 = arith.cmpf ogt, %521, %522 : vector<64x8xf32>
    %cst_249 = arith.constant 1.000000e+00 : f32
    %cst_250 = arith.constant 0.000000e+00 : f32
    %524 = vector.broadcast %cst_249 : f32 to vector<64x8xf32>
    %525 = vector.broadcast %cst_250 : f32 to vector<64x8xf32>
    %526 = arith.select %523, %524, %525 : vector<64x8xi1>, vector<64x8xf32>
    %cst_251 = arith.constant dense<0.000000e+00> : vector<10x8xf32>
    %527 = tpu.matmul %3, %526, %cst_251 {dimension_numbers = #tpu.dot_dimension_numbers<[1], [0], [0], [1], [0, 0, 1, 1], [], []>} : vector<10x64xf32>, vector<64x8xf32>, vector<10x8xf32> -> vector<10x8xf32>
    %528 = arith.addf %527, %9 : vector<10x8xf32>
    %cst_252 = arith.constant 0.949999988 : f32
    %529 = vector.broadcast %cst_252 : f32 to vector<10x8xf32>
    %530 = arith.mulf %529, %504 : vector<10x8xf32>
    %531 = arith.addf %530, %528 : vector<10x8xf32>
    %532 = arith.subf %531, %509 : vector<10x8xf32>
    %cst_253 = arith.constant 1.000000e+00 : f32
    %533 = vector.broadcast %cst_253 : f32 to vector<10x8xf32>
    %534 = arith.cmpf ogt, %532, %533 : vector<10x8xf32>
    %cst_254 = arith.constant 1.000000e+00 : f32
    %cst_255 = arith.constant 0.000000e+00 : f32
    %535 = vector.broadcast %cst_254 : f32 to vector<10x8xf32>
    %536 = vector.broadcast %cst_255 : f32 to vector<10x8xf32>
    %537 = arith.select %534, %535, %536 : vector<10x8xi1>, vector<10x8xf32>
    %538 = arith.index_cast %c18_i32 : i32 to index
    %c0_256 = arith.constant 0 : index
    %c0_257 = arith.constant 0 : index
    %539 = vector.load %arg6[%538, %c0_256, %c0_257] : memref<25x10x8xf32, #tpu.memory_space<vmem>>, vector<1x10x8xf32>
    %540 = vector.shape_cast %539 : vector<1x10x8xf32> to vector<10x8xf32>
    %541 = vector.shape_cast %537 : vector<10x8xf32> to vector<1x10x8xf32>
    tpu.vector_store %arg6[%538, %c0_256, %c0_257], %541 {strides = array<i32>} : memref<25x10x8xf32, #tpu.memory_space<vmem>>, vector<1x10x8xf32>,
    %542 = arith.index_cast %c18_i32 : i32 to index
    %c0_258 = arith.constant 0 : index
    %c0_259 = arith.constant 0 : index
    %543 = vector.load %arg7[%542, %c0_258, %c0_259] : memref<25x10x8xf32, #tpu.memory_space<vmem>>, vector<1x10x8xf32>
    %544 = vector.shape_cast %543 : vector<1x10x8xf32> to vector<10x8xf32>
    %545 = vector.shape_cast %532 : vector<10x8xf32> to vector<1x10x8xf32>
    tpu.vector_store %arg7[%542, %c0_258, %c0_259], %545 {strides = array<i32>} : memref<25x10x8xf32, #tpu.memory_space<vmem>>, vector<1x10x8xf32>,
    %c19_i32 = arith.constant 19 : i32
    %cst_260 = arith.constant 0.949999988 : f32
    %546 = vector.broadcast %cst_260 : f32 to vector<64x8xf32>
    %547 = arith.mulf %546, %521 : vector<64x8xf32>
    %548 = arith.addf %547, %7 : vector<64x8xf32>
    %549 = arith.subf %548, %526 : vector<64x8xf32>
    %cst_261 = arith.constant 1.000000e+00 : f32
    %550 = vector.broadcast %cst_261 : f32 to vector<64x8xf32>
    %551 = arith.cmpf ogt, %549, %550 : vector<64x8xf32>
    %cst_262 = arith.constant 1.000000e+00 : f32
    %cst_263 = arith.constant 0.000000e+00 : f32
    %552 = vector.broadcast %cst_262 : f32 to vector<64x8xf32>
    %553 = vector.broadcast %cst_263 : f32 to vector<64x8xf32>
    %554 = arith.select %551, %552, %553 : vector<64x8xi1>, vector<64x8xf32>
    %cst_264 = arith.constant dense<0.000000e+00> : vector<10x8xf32>
    %555 = tpu.matmul %3, %554, %cst_264 {dimension_numbers = #tpu.dot_dimension_numbers<[1], [0], [0], [1], [0, 0, 1, 1], [], []>} : vector<10x64xf32>, vector<64x8xf32>, vector<10x8xf32> -> vector<10x8xf32>
    %556 = arith.addf %555, %9 : vector<10x8xf32>
    %cst_265 = arith.constant 0.949999988 : f32
    %557 = vector.broadcast %cst_265 : f32 to vector<10x8xf32>
    %558 = arith.mulf %557, %532 : vector<10x8xf32>
    %559 = arith.addf %558, %556 : vector<10x8xf32>
    %560 = arith.subf %559, %537 : vector<10x8xf32>
    %cst_266 = arith.constant 1.000000e+00 : f32
    %561 = vector.broadcast %cst_266 : f32 to vector<10x8xf32>
    %562 = arith.cmpf ogt, %560, %561 : vector<10x8xf32>
    %cst_267 = arith.constant 1.000000e+00 : f32
    %cst_268 = arith.constant 0.000000e+00 : f32
    %563 = vector.broadcast %cst_267 : f32 to vector<10x8xf32>
    %564 = vector.broadcast %cst_268 : f32 to vector<10x8xf32>
    %565 = arith.select %562, %563, %564 : vector<10x8xi1>, vector<10x8xf32>
    %566 = arith.index_cast %c19_i32 : i32 to index
    %c0_269 = arith.constant 0 : index
    %c0_270 = arith.constant 0 : index
    %567 = vector.load %arg6[%566, %c0_269, %c0_270] : memref<25x10x8xf32, #tpu.memory_space<vmem>>, vector<1x10x8xf32>
    %568 = vector.shape_cast %567 : vector<1x10x8xf32> to vector<10x8xf32>
    %569 = vector.shape_cast %565 : vector<10x8xf32> to vector<1x10x8xf32>
    tpu.vector_store %arg6[%566, %c0_269, %c0_270], %569 {strides = array<i32>} : memref<25x10x8xf32, #tpu.memory_space<vmem>>, vector<1x10x8xf32>,
    %570 = arith.index_cast %c19_i32 : i32 to index
    %c0_271 = arith.constant 0 : index
    %c0_272 = arith.constant 0 : index
    %571 = vector.load %arg7[%570, %c0_271, %c0_272] : memref<25x10x8xf32, #tpu.memory_space<vmem>>, vector<1x10x8xf32>
    %572 = vector.shape_cast %571 : vector<1x10x8xf32> to vector<10x8xf32>
    %573 = vector.shape_cast %560 : vector<10x8xf32> to vector<1x10x8xf32>
    tpu.vector_store %arg7[%570, %c0_271, %c0_272], %573 {strides = array<i32>} : memref<25x10x8xf32, #tpu.memory_space<vmem>>, vector<1x10x8xf32>,
    %c20_i32 = arith.constant 20 : i32
    %cst_273 = arith.constant 0.949999988 : f32
    %574 = vector.broadcast %cst_273 : f32 to vector<64x8xf32>
    %575 = arith.mulf %574, %549 : vector<64x8xf32>
    %576 = arith.addf %575, %7 : vector<64x8xf32>
    %577 = arith.subf %576, %554 : vector<64x8xf32>
    %cst_274 = arith.constant 1.000000e+00 : f32
    %578 = vector.broadcast %cst_274 : f32 to vector<64x8xf32>
    %579 = arith.cmpf ogt, %577, %578 : vector<64x8xf32>
    %cst_275 = arith.constant 1.000000e+00 : f32
    %cst_276 = arith.constant 0.000000e+00 : f32
    %580 = vector.broadcast %cst_275 : f32 to vector<64x8xf32>
    %581 = vector.broadcast %cst_276 : f32 to vector<64x8xf32>
    %582 = arith.select %579, %580, %581 : vector<64x8xi1>, vector<64x8xf32>
    %cst_277 = arith.constant dense<0.000000e+00> : vector<10x8xf32>
    %583 = tpu.matmul %3, %582, %cst_277 {dimension_numbers = #tpu.dot_dimension_numbers<[1], [0], [0], [1], [0, 0, 1, 1], [], []>} : vector<10x64xf32>, vector<64x8xf32>, vector<10x8xf32> -> vector<10x8xf32>
    %584 = arith.addf %583, %9 : vector<10x8xf32>
    %cst_278 = arith.constant 0.949999988 : f32
    %585 = vector.broadcast %cst_278 : f32 to vector<10x8xf32>
    %586 = arith.mulf %585, %560 : vector<10x8xf32>
    %587 = arith.addf %586, %584 : vector<10x8xf32>
    %588 = arith.subf %587, %565 : vector<10x8xf32>
    %cst_279 = arith.constant 1.000000e+00 : f32
    %589 = vector.broadcast %cst_279 : f32 to vector<10x8xf32>
    %590 = arith.cmpf ogt, %588, %589 : vector<10x8xf32>
    %cst_280 = arith.constant 1.000000e+00 : f32
    %cst_281 = arith.constant 0.000000e+00 : f32
    %591 = vector.broadcast %cst_280 : f32 to vector<10x8xf32>
    %592 = vector.broadcast %cst_281 : f32 to vector<10x8xf32>
    %593 = arith.select %590, %591, %592 : vector<10x8xi1>, vector<10x8xf32>
    %594 = arith.index_cast %c20_i32 : i32 to index
    %c0_282 = arith.constant 0 : index
    %c0_283 = arith.constant 0 : index
    %595 = vector.load %arg6[%594, %c0_282, %c0_283] : memref<25x10x8xf32, #tpu.memory_space<vmem>>, vector<1x10x8xf32>
    %596 = vector.shape_cast %595 : vector<1x10x8xf32> to vector<10x8xf32>
    %597 = vector.shape_cast %593 : vector<10x8xf32> to vector<1x10x8xf32>
    tpu.vector_store %arg6[%594, %c0_282, %c0_283], %597 {strides = array<i32>} : memref<25x10x8xf32, #tpu.memory_space<vmem>>, vector<1x10x8xf32>,
    %598 = arith.index_cast %c20_i32 : i32 to index
    %c0_284 = arith.constant 0 : index
    %c0_285 = arith.constant 0 : index
    %599 = vector.load %arg7[%598, %c0_284, %c0_285] : memref<25x10x8xf32, #tpu.memory_space<vmem>>, vector<1x10x8xf32>
    %600 = vector.shape_cast %599 : vector<1x10x8xf32> to vector<10x8xf32>
    %601 = vector.shape_cast %588 : vector<10x8xf32> to vector<1x10x8xf32>
    tpu.vector_store %arg7[%598, %c0_284, %c0_285], %601 {strides = array<i32>} : memref<25x10x8xf32, #tpu.memory_space<vmem>>, vector<1x10x8xf32>,
    %c21_i32 = arith.constant 21 : i32
    %cst_286 = arith.constant 0.949999988 : f32
    %602 = vector.broadcast %cst_286 : f32 to vector<64x8xf32>
    %603 = arith.mulf %602, %577 : vector<64x8xf32>
    %604 = arith.addf %603, %7 : vector<64x8xf32>
    %605 = arith.subf %604, %582 : vector<64x8xf32>
    %cst_287 = arith.constant 1.000000e+00 : f32
    %606 = vector.broadcast %cst_287 : f32 to vector<64x8xf32>
    %607 = arith.cmpf ogt, %605, %606 : vector<64x8xf32>
    %cst_288 = arith.constant 1.000000e+00 : f32
    %cst_289 = arith.constant 0.000000e+00 : f32
    %608 = vector.broadcast %cst_288 : f32 to vector<64x8xf32>
    %609 = vector.broadcast %cst_289 : f32 to vector<64x8xf32>
    %610 = arith.select %607, %608, %609 : vector<64x8xi1>, vector<64x8xf32>
    %cst_290 = arith.constant dense<0.000000e+00> : vector<10x8xf32>
    %611 = tpu.matmul %3, %610, %cst_290 {dimension_numbers = #tpu.dot_dimension_numbers<[1], [0], [0], [1], [0, 0, 1, 1], [], []>} : vector<10x64xf32>, vector<64x8xf32>, vector<10x8xf32> -> vector<10x8xf32>
    %612 = arith.addf %611, %9 : vector<10x8xf32>
    %cst_291 = arith.constant 0.949999988 : f32
    %613 = vector.broadcast %cst_291 : f32 to vector<10x8xf32>
    %614 = arith.mulf %613, %588 : vector<10x8xf32>
    %615 = arith.addf %614, %612 : vector<10x8xf32>
    %616 = arith.subf %615, %593 : vector<10x8xf32>
    %cst_292 = arith.constant 1.000000e+00 : f32
    %617 = vector.broadcast %cst_292 : f32 to vector<10x8xf32>
    %618 = arith.cmpf ogt, %616, %617 : vector<10x8xf32>
    %cst_293 = arith.constant 1.000000e+00 : f32
    %cst_294 = arith.constant 0.000000e+00 : f32
    %619 = vector.broadcast %cst_293 : f32 to vector<10x8xf32>
    %620 = vector.broadcast %cst_294 : f32 to vector<10x8xf32>
    %621 = arith.select %618, %619, %620 : vector<10x8xi1>, vector<10x8xf32>
    %622 = arith.index_cast %c21_i32 : i32 to index
    %c0_295 = arith.constant 0 : index
    %c0_296 = arith.constant 0 : index
    %623 = vector.load %arg6[%622, %c0_295, %c0_296] : memref<25x10x8xf32, #tpu.memory_space<vmem>>, vector<1x10x8xf32>
    %624 = vector.shape_cast %623 : vector<1x10x8xf32> to vector<10x8xf32>
    %625 = vector.shape_cast %621 : vector<10x8xf32> to vector<1x10x8xf32>
    tpu.vector_store %arg6[%622, %c0_295, %c0_296], %625 {strides = array<i32>} : memref<25x10x8xf32, #tpu.memory_space<vmem>>, vector<1x10x8xf32>,
    %626 = arith.index_cast %c21_i32 : i32 to index
    %c0_297 = arith.constant 0 : index
    %c0_298 = arith.constant 0 : index
    %627 = vector.load %arg7[%626, %c0_297, %c0_298] : memref<25x10x8xf32, #tpu.memory_space<vmem>>, vector<1x10x8xf32>
    %628 = vector.shape_cast %627 : vector<1x10x8xf32> to vector<10x8xf32>
    %629 = vector.shape_cast %616 : vector<10x8xf32> to vector<1x10x8xf32>
    tpu.vector_store %arg7[%626, %c0_297, %c0_298], %629 {strides = array<i32>} : memref<25x10x8xf32, #tpu.memory_space<vmem>>, vector<1x10x8xf32>,
    %c22_i32 = arith.constant 22 : i32
    %cst_299 = arith.constant 0.949999988 : f32
    %630 = vector.broadcast %cst_299 : f32 to vector<64x8xf32>
    %631 = arith.mulf %630, %605 : vector<64x8xf32>
    %632 = arith.addf %631, %7 : vector<64x8xf32>
    %633 = arith.subf %632, %610 : vector<64x8xf32>
    %cst_300 = arith.constant 1.000000e+00 : f32
    %634 = vector.broadcast %cst_300 : f32 to vector<64x8xf32>
    %635 = arith.cmpf ogt, %633, %634 : vector<64x8xf32>
    %cst_301 = arith.constant 1.000000e+00 : f32
    %cst_302 = arith.constant 0.000000e+00 : f32
    %636 = vector.broadcast %cst_301 : f32 to vector<64x8xf32>
    %637 = vector.broadcast %cst_302 : f32 to vector<64x8xf32>
    %638 = arith.select %635, %636, %637 : vector<64x8xi1>, vector<64x8xf32>
    %cst_303 = arith.constant dense<0.000000e+00> : vector<10x8xf32>
    %639 = tpu.matmul %3, %638, %cst_303 {dimension_numbers = #tpu.dot_dimension_numbers<[1], [0], [0], [1], [0, 0, 1, 1], [], []>} : vector<10x64xf32>, vector<64x8xf32>, vector<10x8xf32> -> vector<10x8xf32>
    %640 = arith.addf %639, %9 : vector<10x8xf32>
    %cst_304 = arith.constant 0.949999988 : f32
    %641 = vector.broadcast %cst_304 : f32 to vector<10x8xf32>
    %642 = arith.mulf %641, %616 : vector<10x8xf32>
    %643 = arith.addf %642, %640 : vector<10x8xf32>
    %644 = arith.subf %643, %621 : vector<10x8xf32>
    %cst_305 = arith.constant 1.000000e+00 : f32
    %645 = vector.broadcast %cst_305 : f32 to vector<10x8xf32>
    %646 = arith.cmpf ogt, %644, %645 : vector<10x8xf32>
    %cst_306 = arith.constant 1.000000e+00 : f32
    %cst_307 = arith.constant 0.000000e+00 : f32
    %647 = vector.broadcast %cst_306 : f32 to vector<10x8xf32>
    %648 = vector.broadcast %cst_307 : f32 to vector<10x8xf32>
    %649 = arith.select %646, %647, %648 : vector<10x8xi1>, vector<10x8xf32>
    %650 = arith.index_cast %c22_i32 : i32 to index
    %c0_308 = arith.constant 0 : index
    %c0_309 = arith.constant 0 : index
    %651 = vector.load %arg6[%650, %c0_308, %c0_309] : memref<25x10x8xf32, #tpu.memory_space<vmem>>, vector<1x10x8xf32>
    %652 = vector.shape_cast %651 : vector<1x10x8xf32> to vector<10x8xf32>
    %653 = vector.shape_cast %649 : vector<10x8xf32> to vector<1x10x8xf32>
    tpu.vector_store %arg6[%650, %c0_308, %c0_309], %653 {strides = array<i32>} : memref<25x10x8xf32, #tpu.memory_space<vmem>>, vector<1x10x8xf32>,
    %654 = arith.index_cast %c22_i32 : i32 to index
    %c0_310 = arith.constant 0 : index
    %c0_311 = arith.constant 0 : index
    %655 = vector.load %arg7[%654, %c0_310, %c0_311] : memref<25x10x8xf32, #tpu.memory_space<vmem>>, vector<1x10x8xf32>
    %656 = vector.shape_cast %655 : vector<1x10x8xf32> to vector<10x8xf32>
    %657 = vector.shape_cast %644 : vector<10x8xf32> to vector<1x10x8xf32>
    tpu.vector_store %arg7[%654, %c0_310, %c0_311], %657 {strides = array<i32>} : memref<25x10x8xf32, #tpu.memory_space<vmem>>, vector<1x10x8xf32>,
    %c23_i32 = arith.constant 23 : i32
    %cst_312 = arith.constant 0.949999988 : f32
    %658 = vector.broadcast %cst_312 : f32 to vector<64x8xf32>
    %659 = arith.mulf %658, %633 : vector<64x8xf32>
    %660 = arith.addf %659, %7 : vector<64x8xf32>
    %661 = arith.subf %660, %638 : vector<64x8xf32>
    %cst_313 = arith.constant 1.000000e+00 : f32
    %662 = vector.broadcast %cst_313 : f32 to vector<64x8xf32>
    %663 = arith.cmpf ogt, %661, %662 : vector<64x8xf32>
    %cst_314 = arith.constant 1.000000e+00 : f32
    %cst_315 = arith.constant 0.000000e+00 : f32
    %664 = vector.broadcast %cst_314 : f32 to vector<64x8xf32>
    %665 = vector.broadcast %cst_315 : f32 to vector<64x8xf32>
    %666 = arith.select %663, %664, %665 : vector<64x8xi1>, vector<64x8xf32>
    %cst_316 = arith.constant dense<0.000000e+00> : vector<10x8xf32>
    %667 = tpu.matmul %3, %666, %cst_316 {dimension_numbers = #tpu.dot_dimension_numbers<[1], [0], [0], [1], [0, 0, 1, 1], [], []>} : vector<10x64xf32>, vector<64x8xf32>, vector<10x8xf32> -> vector<10x8xf32>
    %668 = arith.addf %667, %9 : vector<10x8xf32>
    %cst_317 = arith.constant 0.949999988 : f32
    %669 = vector.broadcast %cst_317 : f32 to vector<10x8xf32>
    %670 = arith.mulf %669, %644 : vector<10x8xf32>
    %671 = arith.addf %670, %668 : vector<10x8xf32>
    %672 = arith.subf %671, %649 : vector<10x8xf32>
    %cst_318 = arith.constant 1.000000e+00 : f32
    %673 = vector.broadcast %cst_318 : f32 to vector<10x8xf32>
    %674 = arith.cmpf ogt, %672, %673 : vector<10x8xf32>
    %cst_319 = arith.constant 1.000000e+00 : f32
    %cst_320 = arith.constant 0.000000e+00 : f32
    %675 = vector.broadcast %cst_319 : f32 to vector<10x8xf32>
    %676 = vector.broadcast %cst_320 : f32 to vector<10x8xf32>
    %677 = arith.select %674, %675, %676 : vector<10x8xi1>, vector<10x8xf32>
    %678 = arith.index_cast %c23_i32 : i32 to index
    %c0_321 = arith.constant 0 : index
    %c0_322 = arith.constant 0 : index
    %679 = vector.load %arg6[%678, %c0_321, %c0_322] : memref<25x10x8xf32, #tpu.memory_space<vmem>>, vector<1x10x8xf32>
    %680 = vector.shape_cast %679 : vector<1x10x8xf32> to vector<10x8xf32>
    %681 = vector.shape_cast %677 : vector<10x8xf32> to vector<1x10x8xf32>
    tpu.vector_store %arg6[%678, %c0_321, %c0_322], %681 {strides = array<i32>} : memref<25x10x8xf32, #tpu.memory_space<vmem>>, vector<1x10x8xf32>,
    %682 = arith.index_cast %c23_i32 : i32 to index
    %c0_323 = arith.constant 0 : index
    %c0_324 = arith.constant 0 : index
    %683 = vector.load %arg7[%682, %c0_323, %c0_324] : memref<25x10x8xf32, #tpu.memory_space<vmem>>, vector<1x10x8xf32>
    %684 = vector.shape_cast %683 : vector<1x10x8xf32> to vector<10x8xf32>
    %685 = vector.shape_cast %672 : vector<10x8xf32> to vector<1x10x8xf32>
    tpu.vector_store %arg7[%682, %c0_323, %c0_324], %685 {strides = array<i32>} : memref<25x10x8xf32, #tpu.memory_space<vmem>>, vector<1x10x8xf32>,
    %c24_i32 = arith.constant 24 : i32
    %cst_325 = arith.constant 0.949999988 : f32
    %686 = vector.broadcast %cst_325 : f32 to vector<64x8xf32>
    %687 = arith.mulf %686, %661 : vector<64x8xf32>
    %688 = arith.addf %687, %7 : vector<64x8xf32>
    %689 = arith.subf %688, %666 : vector<64x8xf32>
    %cst_326 = arith.constant 1.000000e+00 : f32
    %690 = vector.broadcast %cst_326 : f32 to vector<64x8xf32>
    %691 = arith.cmpf ogt, %689, %690 : vector<64x8xf32>
    %cst_327 = arith.constant 1.000000e+00 : f32
    %cst_328 = arith.constant 0.000000e+00 : f32
    %692 = vector.broadcast %cst_327 : f32 to vector<64x8xf32>
    %693 = vector.broadcast %cst_328 : f32 to vector<64x8xf32>
    %694 = arith.select %691, %692, %693 : vector<64x8xi1>, vector<64x8xf32>
    %cst_329 = arith.constant dense<0.000000e+00> : vector<10x8xf32>
    %695 = tpu.matmul %3, %694, %cst_329 {dimension_numbers = #tpu.dot_dimension_numbers<[1], [0], [0], [1], [0, 0, 1, 1], [], []>} : vector<10x64xf32>, vector<64x8xf32>, vector<10x8xf32> -> vector<10x8xf32>
    %696 = arith.addf %695, %9 : vector<10x8xf32>
    %cst_330 = arith.constant 0.949999988 : f32
    %697 = vector.broadcast %cst_330 : f32 to vector<10x8xf32>
    %698 = arith.mulf %697, %672 : vector<10x8xf32>
    %699 = arith.addf %698, %696 : vector<10x8xf32>
    %700 = arith.subf %699, %677 : vector<10x8xf32>
    %cst_331 = arith.constant 1.000000e+00 : f32
    %701 = vector.broadcast %cst_331 : f32 to vector<10x8xf32>
    %702 = arith.cmpf ogt, %700, %701 : vector<10x8xf32>
    %cst_332 = arith.constant 1.000000e+00 : f32
    %cst_333 = arith.constant 0.000000e+00 : f32
    %703 = vector.broadcast %cst_332 : f32 to vector<10x8xf32>
    %704 = vector.broadcast %cst_333 : f32 to vector<10x8xf32>
    %705 = arith.select %702, %703, %704 : vector<10x8xi1>, vector<10x8xf32>
    %706 = arith.index_cast %c24_i32 : i32 to index
    %c0_334 = arith.constant 0 : index
    %c0_335 = arith.constant 0 : index
    %707 = vector.load %arg6[%706, %c0_334, %c0_335] : memref<25x10x8xf32, #tpu.memory_space<vmem>>, vector<1x10x8xf32>
    %708 = vector.shape_cast %707 : vector<1x10x8xf32> to vector<10x8xf32>
    %709 = vector.shape_cast %705 : vector<10x8xf32> to vector<1x10x8xf32>
    tpu.vector_store %arg6[%706, %c0_334, %c0_335], %709 {strides = array<i32>} : memref<25x10x8xf32, #tpu.memory_space<vmem>>, vector<1x10x8xf32>,
    %710 = arith.index_cast %c24_i32 : i32 to index
    %c0_336 = arith.constant 0 : index
    %c0_337 = arith.constant 0 : index
    %711 = vector.load %arg7[%710, %c0_336, %c0_337] : memref<25x10x8xf32, #tpu.memory_space<vmem>>, vector<1x10x8xf32>
    %712 = vector.shape_cast %711 : vector<1x10x8xf32> to vector<10x8xf32>
    %713 = vector.shape_cast %700 : vector<10x8xf32> to vector<1x10x8xf32>
    tpu.vector_store %arg7[%710, %c0_336, %c0_337], %713 {strides = array<i32>} : memref<25x10x8xf32, #tpu.memory_space<vmem>>, vector<1x10x8xf32>,
    %c25_i32 = arith.constant 25 : i32
    return
  }
  func.func @transform_0(%arg0: i32) -> (i32, i32) {
    %c0_i32 = arith.constant 0 : i32
    %c0_i32_0 = arith.constant 0 : i32
    return %arg0, %c0_i32 : i32, i32
  }
  func.func @transform_1(%arg0: i32) -> (i32, i32) {
    %c0_i32 = arith.constant 0 : i32
    %c0_i32_0 = arith.constant 0 : i32
    %c0_i32_1 = arith.constant 0 : i32
    return %c0_i32, %c0_i32_0 : i32, i32
  }
  func.func @transform_2(%arg0: i32) -> (i32, i32) {
    %c0_i32 = arith.constant 0 : i32
    %c0_i32_0 = arith.constant 0 : i32
    %c0_i32_1 = arith.constant 0 : i32
    return %c0_i32, %c0_i32_0 : i32, i32
  }
  func.func @transform_3(%arg0: i32) -> (i32, i32) {
    %c0_i32 = arith.constant 0 : i32
    %c0_i32_0 = arith.constant 0 : i32
    %c0_i32_1 = arith.constant 0 : i32
    return %c0_i32, %c0_i32_0 : i32, i32
  }
  func.func @transform_4(%arg0: i32) -> (i32, i32) {
    %c0_i32 = arith.constant 0 : i32
    %c0_i32_0 = arith.constant 0 : i32
    %c0_i32_1 = arith.constant 0 : i32
    return %c0_i32, %c0_i32_0 : i32, i32
  }
  func.func @transform_5(%arg0: i32) -> (i32, i32, i32) {
    %c0_i32 = arith.constant 0 : i32
    %c0_i32_0 = arith.constant 0 : i32
    %c0_i32_1 = arith.constant 0 : i32
    return %c0_i32, %c0_i32_0, %arg0 : i32, i32, i32
  }
  func.func @transform_6(%arg0: i32) -> (i32, i32, i32) {
    %c0_i32 = arith.constant 0 : i32
    %c0_i32_0 = arith.constant 0 : i32
    %c0_i32_1 = arith.constant 0 : i32
    return %c0_i32, %c0_i32_0, %arg0 : i32, i32, i32
  }
}

</mosaic_0001>

<llo_original>
// kernel: tpu_custom_call.1
$region0: #{tpu_custom_call.1}
  #allocation0 [shape = 'u32[]', space=smem, size = 0x4, offset = 0x4, fixed_abs, tag = 'smem constant byte address 0x4 - core index']
  #allocation1 [shape = 'u32[72,128]{1,0:T(1,128)}', space=vmem, size = 0x9000, scoped, tag = 'internal scratch']
  %s0 = inlined_call_operand.vmem [shape: f32[8,784], index: 0, kind: input, shape index: {}]
  %s1 = inlined_call_operand.hbm [shape: f32[64,784], index: 1, kind: input, shape index: {}]
  %s2 = inlined_call_operand.vmem [shape: f32[64,1], index: 2, kind: input, shape index: {}]
  %s3 = inlined_call_operand.vmem [shape: f32[10,64], index: 3, kind: input, shape index: {}]
  %s4 = inlined_call_operand.vmem [shape: f32[10,1], index: 4, kind: input, shape index: {}]
  %s5 = inlined_call_operand.vmem [shape: f32[25,10,8], index: 5, kind: output, shape index: {0}]
  %s6 = inlined_call_operand.vmem [shape: f32[25,10,8], index: 6, kind: output, shape index: {1}]
  %7 = xla_tuple %s5, %s6
  %s8 = sld [smem:[#allocation0]]
  $region42: #{tpu_custom_call.1} parent=0
    _
  %s10 = ssub.s32 1, %s8
  %s11 = scalar_select 0, %s10, %s8
  $region1: #{tpu_custom_call.1} parent=0
    #allocation2 [shape = 'u8[229376]{0}', space=vmem, size = 0x38000, scoped, tag = 'input window, operand 1, single buffered']
    #allocation3 [shape = 's32[1]{0}', space=sflag, size = 0x4, scoped, tag = 'scoped memory for tpu_custom_call.1']
    %12 = vsyncpa [#allocation3], 0
    // Predicated region
    $region2: #{tpu_custom_call.1} parent=1 // pred_check
      _
    $region3: #{tpu_custom_call.1} parent=1 // pred_check_branch
      %14 = sbr.rel (0) target = $region5
    $region4: #{tpu_custom_call.1} parent=1 // pred_region
      _
    $region5: #{tpu_custom_call.1} parent=1 // pred_fallthru
      _
    // Predicated region
    $region6: #{tpu_custom_call.1} parent=1 // pred_check
      _
    $region7: #{tpu_custom_call.1} parent=1 // pred_check_branch
      %16 = sbr.rel (0) target = $region9
    $region8: #{tpu_custom_call.1} parent=1 // pred_region
      %18 = vsyncadd [#allocation3], 0
      %s19 = sshll.u32 %s1, 4
      %s20 = int_to_ptr.hbm [resolvable:$true] %s19
      %s21 = sshll.u32 [#allocation2], 4
      %s22 = int_to_ptr.vmem [resolvable:$true] %s21
      %27 = dma.hbm_to_vmem [thread:$0]  %s20, 7168, %s22, [#allocation3], 896, 896, 56
    $region9: #{tpu_custom_call.1} parent=1 // pred_fallthru
      _
    // Predicated region
    $region10: #{tpu_custom_call.1} parent=1 // pred_check
      _
    $region11: #{tpu_custom_call.1} parent=1 // pred_check_branch
      %29 = sbr.rel (0) target = $region13
    $region12: #{tpu_custom_call.1} parent=1 // pred_region
      _
    $region13: #{tpu_custom_call.1} parent=1 // pred_fallthru
      _
    // Predicated region
    $region14: #{tpu_custom_call.1} parent=1 // pred_check
      _
    $region15: #{tpu_custom_call.1} parent=1 // pred_check_branch
      %31 = sbr.rel (0) target = $region17
    $region16: #{tpu_custom_call.1} parent=1 // pred_region
      _
    $region17: #{tpu_custom_call.1} parent=1 // pred_fallthru
      _
    // Predicated region
    $region18: #{tpu_custom_call.1} parent=1 // pred_check
      _
    $region19: #{tpu_custom_call.1} parent=1 // pred_check_branch
      %33 = sbr.rel (0) target = $region21
    $region20: #{tpu_custom_call.1} parent=1 // pred_region
      _
    $region21: #{tpu_custom_call.1} parent=1 // pred_fallthru
      _
    // Predicated region
    $region22: #{tpu_custom_call.1} parent=1 // pred_check
      _
    $region23: #{tpu_custom_call.1} parent=1 // pred_check_branch
      %35 = sbr.rel (0) target = $region25
    $region24: #{tpu_custom_call.1} parent=1 // pred_region
      %37 = dma.done [#allocation3], 7168
    $region25: #{tpu_custom_call.1} parent=1 // pred_fallthru
      _
    %v38 = vld [vmem:[%s0] sm:$0xff]
    %v39 = vld [vmem:[%s0 + $0x8] sm:$0xff]
    %v40 = vld [vmem:[%s0 + $0x10] sm:$0xff]
    %v41 = vld [vmem:[%s0 + $0x18] sm:$0xff]
    %v42 = vld [vmem:[%s0 + $0x20] sm:$0xff]
    %v43 = vld [vmem:[%s0 + $0x28] sm:$0xff]
    %v44 = vld [vmem:[%s0 + $0x30] sm:$0xff]
    %v45 = vld [vmem:[#allocation2] sm:$0xff]
    %v46 = vld [vmem:[#allocation2 + $0x8] sm:$0xff]
    %v47 = vld [vmem:[#allocation2 + $0x10] sm:$0xff]
    %v48 = vld [vmem:[#allocation2 + $0x18] sm:$0xff]
    %v49 = vld [vmem:[#allocation2 + $0x20] sm:$0xff]
    %v50 = vld [vmem:[#allocation2 + $0x28] sm:$0xff]
    %v51 = vld [vmem:[#allocation2 + $0x30] sm:$0xff]
    %v52 = vld [vmem:[#allocation2 + $0x38] sm:$0xff]
    %v53 = vld [vmem:[#allocation2 + $0x40] sm:$0xff]
    %v54 = vld [vmem:[#allocation2 + $0x48] sm:$0xff]
    %v55 = vld [vmem:[#allocation2 + $0x50] sm:$0xff]
    %v56 = vld [vmem:[#allocation2 + $0x58] sm:$0xff]
    %v57 = vld [vmem:[#allocation2 + $0x60] sm:$0xff]
    %v58 = vld [vmem:[#allocation2 + $0x68] sm:$0xff]
    %v59 = vld [vmem:[#allocation2 + $0x70] sm:$0xff]
    %v60 = vld [vmem:[#allocation2 + $0x78] sm:$0xff]
    %v61 = vld [vmem:[#allocation2 + $0x80] sm:$0xff]
    %v62 = vld [vmem:[#allocation2 + $0x88] sm:$0xff]
    %v63 = vld [vmem:[#allocation2 + $0x90] sm:$0xff]
    %v64 = vld [vmem:[#allocation2 + $0x98] sm:$0xff]
    %v65 = vld [vmem:[#allocation2 + $0xa0] sm:$0xff]
    %v66 = vld [vmem:[#allocation2 + $0xa8] sm:$0xff]
    %v67 = vld [vmem:[#allocation2 + $0xb0] sm:$0xff]
    %v68 = vld [vmem:[#allocation2 + $0xb8] sm:$0xff]
    %v69 = vld [vmem:[#allocation2 + $0xc0] sm:$0xff]
    %v70 = vld [vmem:[#allocation2 + $0xc8] sm:$0xff]
    %v71 = vld [vmem:[#allocation2 + $0xd0] sm:$0xff]
    %v72 = vld [vmem:[#allocation2 + $0xd8] sm:$0xff]
    %v73 = vld [vmem:[#allocation2 + $0xe0] sm:$0xff]
    %v74 = vld [vmem:[#allocation2 + $0xe8] sm:$0xff]
    %v75 = vld [vmem:[#allocation2 + $0xf0] sm:$0xff]
    %v76 = vld [vmem:[#allocation2 + $0xf8] sm:$0xff]
    %v77 = vld [vmem:[#allocation2 + $0x100] sm:$0xff]
    %v78 = vld [vmem:[#allocation2 + $0x108] sm:$0xff]
    %v79 = vld [vmem:[#allocation2 + $0x110] sm:$0xff]
    %v80 = vld [vmem:[#allocation2 + $0x118] sm:$0xff]
    %v81 = vld [vmem:[#allocation2 + $0x120] sm:$0xff]
    %v82 = vld [vmem:[#allocation2 + $0x128] sm:$0xff]
    %v83 = vld [vmem:[#allocation2 + $0x130] sm:$0xff]
    %v84 = vld [vmem:[#allocation2 + $0x138] sm:$0xff]
    %v85 = vld [vmem:[#allocation2 + $0x140] sm:$0xff]
    %v86 = vld [vmem:[#allocation2 + $0x148] sm:$0xff]
    %v87 = vld [vmem:[#allocation2 + $0x150] sm:$0xff]
    %v88 = vld [vmem:[#allocation2 + $0x158] sm:$0xff]
    %v89 = vld [vmem:[#allocation2 + $0x160] sm:$0xff]
    %v90 = vld [vmem:[#allocation2 + $0x168] sm:$0xff]
    %v91 = vld [vmem:[#allocation2 + $0x170] sm:$0xff]
    %v92 = vld [vmem:[#allocation2 + $0x178] sm:$0xff]
    %v93 = vld [vmem:[#allocation2 + $0x180] sm:$0xff]
    %v94 = vld [vmem:[#allocation2 + $0x188] sm:$0xff]
    %v95 = vld [vmem:[#allocation2 + $0x190] sm:$0xff]
    %v96 = vld [vmem:[#allocation2 + $0x198] sm:$0xff]
    %v97 = vld [vmem:[#allocation2 + $0x1a0] sm:$0xff]
    %v98 = vld [vmem:[#allocation2 + $0x1a8] sm:$0xff]
    %v99 = vld [vmem:[#allocation2 + $0x1b0] sm:$0xff]
    %v100 = vld [vmem:[#allocation2 + $0x1b8] sm:$0xff]
    %v101 = vld [vmem:[%s2] sm:$0xff]
    %v102 = vld [vmem:[%s2 + $0x8] sm:$0xff]
    %v103 = vld [vmem:[%s2 + $0x10] sm:$0xff]
    %v104 = vld [vmem:[%s2 + $0x18] sm:$0xff]
    %v105 = vld [vmem:[%s2 + $0x20] sm:$0xff]
    %v106 = vld [vmem:[%s2 + $0x28] sm:$0xff]
    %v107 = vld [vmem:[%s2 + $0x30] sm:$0xff]
    %v108 = vld [vmem:[%s2 + $0x38] sm:$0xff]
    %v109 = vld [vmem:[%s3] sm:$0xff]
    %v110 = vld [vmem:[%s3 + $0x8] sm:$0x3]
    %v111 = vld [vmem:[%s4] sm:$0xff]
    %v112 = vld [vmem:[%s4 + $0x8] sm:$0x3]
    %114 = vset.pattern.permute.xlu0 0
    %115 = vperm.xlu0 %114, %v101
    %v116 = vpop.permute.xlu0 %115
    %119 = vset.pattern.permute.xlu0 0
    %120 = vperm.xlu0 %119, %v102
    %v121 = vpop.permute.xlu0 %120
    %124 = vset.pattern.permute.xlu0 0
    %125 = vperm.xlu0 %124, %v103
    %v126 = vpop.permute.xlu0 %125
    %129 = vset.pattern.permute.xlu0 0
    %130 = vperm.xlu0 %129, %v104
    %v131 = vpop.permute.xlu0 %130
    %134 = vset.pattern.permute.xlu0 0
    %135 = vperm.xlu0 %134, %v105
    %v136 = vpop.permute.xlu0 %135
    %139 = vset.pattern.permute.xlu0 0
    %140 = vperm.xlu0 %139, %v106
    %v141 = vpop.permute.xlu0 %140
    %144 = vset.pattern.permute.xlu0 0
    %145 = vperm.xlu0 %144, %v107
    %v146 = vpop.permute.xlu0 %145
    %149 = vset.pattern.permute.xlu0 0
    %150 = vperm.xlu0 %149, %v108
    %v151 = vpop.permute.xlu0 %150
    %vm153 = vcmask 130048
    %v155 = vsel %vm153, %v51, 0
    %v158 = vsel %vm153, %v58, 0
    %v161 = vsel %vm153, %v65, 0
    %v164 = vsel %vm153, %v72, 0
    %v167 = vsel %vm153, %v79, 0
    %v170 = vsel %vm153, %v86, 0
    %v173 = vsel %vm153, %v93, 0
    %v176 = vsel %vm153, %v100, 0
    %v179 = vsel %vm153, %v44, 0
    %181 = vmatpush.xpose.msra.mxu0 0.0
    %182 = vmatpush.xpose.msra.mxu0 0.0
    %183 = vmatpush.xpose.msra.mxu0 0.0
    %184 = vmatpush.xpose.msra.mxu0 0.0
    %185 = vmatpush.xpose.msra.mxu0 0.0
    %186 = vmatpush.xpose.msra.mxu0 0.0
    %187 = vmatpush.xpose.msra.mxu0 0.0
    %188 = vmatpush.xpose.msra.mxu0 0.0
    %189 = vmatpush.xpose.msra.mxu0 0.0
    %190 = vmatpush.xpose.msra.mxu0 0.0
    %191 = vmatpush.xpose.msra.mxu0 0.0
    %192 = vmatpush.xpose.msra.mxu0 0.0
    %193 = vmatpush.xpose.msra.mxu0 0.0
    %194 = vmatpush.xpose.msra.mxu0 0.0
    %195 = vmatpush.xpose.msra.mxu0 0.0
    %196 = vmatpush.xpose.msra.mxu0 %v38
    %197 = vmatmul.f32.gmra.mxu0 %v45
    %v198 = vpop.f32.mrf.mxu0
    %v199 = vadd.f32 %v116, %v198
    %200 = vmatmul.f32.gmra.mxu0 %v52
    %v201 = vpop.f32.mrf.mxu0
    %v202 = vadd.f32 %v121, %v201
    %203 = vmatmul.f32.gmra.mxu0 %v59
    %v204 = vpop.f32.mrf.mxu0
    %v205 = vadd.f32 %v126, %v204
    %206 = vmatmul.f32.gmra.mxu0 %v66
    %v207 = vpop.f32.mrf.mxu0
    %v208 = vadd.f32 %v131, %v207
    %209 = vmatmul.f32.gmra.mxu0 %v73
    %v210 = vpop.f32.mrf.mxu0
    %v211 = vadd.f32 %v136, %v210
    %212 = vmatmul.f32.gmra.mxu0 %v80
    %v213 = vpop.f32.mrf.mxu0
    %v214 = vadd.f32 %v141, %v213
    %215 = vmatmul.f32.gmra.mxu0 %v87
    %v216 = vpop.f32.mrf.mxu0
    %v217 = vadd.f32 %v146, %v216
    %218 = vmatmul.f32.gmra.mxu0 %v94
    %v219 = vpop.f32.mrf.mxu0
    %v220 = vadd.f32 %v151, %v219
    %221 = vdwg.mxu0
    %222 = vmatpush.xpose.msra.mxu0 0.0
    %223 = vmatpush.xpose.msra.mxu0 0.0
    %224 = vmatpush.xpose.msra.mxu0 0.0
    %225 = vmatpush.xpose.msra.mxu0 0.0
    %226 = vmatpush.xpose.msra.mxu0 0.0
    %227 = vmatpush.xpose.msra.mxu0 0.0
    %228 = vmatpush.xpose.msra.mxu0 0.0
    %229 = vmatpush.xpose.msra.mxu0 0.0
    %230 = vmatpush.xpose.msra.mxu0 0.0
    %231 = vmatpush.xpose.msra.mxu0 0.0
    %232 = vmatpush.xpose.msra.mxu0 0.0
    %233 = vmatpush.xpose.msra.mxu0 0.0
    %234 = vmatpush.xpose.msra.mxu0 0.0
    %235 = vmatpush.xpose.msra.mxu0 0.0
    %236 = vmatpush.xpose.msra.mxu0 0.0
    %237 = vmatpush.xpose.msra.mxu0 %v39
    %238 = vmatmul.f32.gmra.mxu0 %v46
    %v239 = vpop.f32.mrf.mxu0
    %v240 = vadd.f32 %v199, %v239
    %241 = vmatmul.f32.gmra.mxu0 %v53
    %v242 = vpop.f32.mrf.mxu0
    %v243 = vadd.f32 %v202, %v242
    %244 = vmatmul.f32.gmra.mxu0 %v60
    %v245 = vpop.f32.mrf.mxu0
    %v246 = vadd.f32 %v205, %v245
    %247 = vmatmul.f32.gmra.mxu0 %v67
    %v248 = vpop.f32.mrf.mxu0
    %v249 = vadd.f32 %v208, %v248
    %250 = vmatmul.f32.gmra.mxu0 %v74
    %v251 = vpop.f32.mrf.mxu0
    %v252 = vadd.f32 %v211, %v251
    %253 = vmatmul.f32.gmra.mxu0 %v81
    %v254 = vpop.f32.mrf.mxu0
    %v255 = vadd.f32 %v214, %v254
    %256 = vmatmul.f32.gmra.mxu0 %v88
    %v257 = vpop.f32.mrf.mxu0
    %v258 = vadd.f32 %v217, %v257
    %259 = vmatmul.f32.gmra.mxu0 %v95
    %v260 = vpop.f32.mrf.mxu0
    %v261 = vadd.f32 %v220, %v260
    %262 = vdwg.mxu0
    %263 = vmatpush.xpose.msra.mxu0 0.0
    %264 = vmatpush.xpose.msra.mxu0 0.0
    %265 = vmatpush.xpose.msra.mxu0 0.0
    %266 = vmatpush.xpose.msra.mxu0 0.0
    %267 = vmatpush.xpose.msra.mxu0 0.0
    %268 = vmatpush.xpose.msra.mxu0 0.0
    %269 = vmatpush.xpose.msra.mxu0 0.0
    %270 = vmatpush.xpose.msra.mxu0 0.0
    %271 = vmatpush.xpose.msra.mxu0 0.0
    %272 = vmatpush.xpose.msra.mxu0 0.0
    %273 = vmatpush.xpose.msra.mxu0 0.0
    %274 = vmatpush.xpose.msra.mxu0 0.0
    %275 = vmatpush.xpose.msra.mxu0 0.0
    %276 = vmatpush.xpose.msra.mxu0 0.0
    %277 = vmatpush.xpose.msra.mxu0 0.0
    %278 = vmatpush.xpose.msra.mxu0 %v40
    %279 = vmatmul.f32.gmra.mxu0 %v47
    %v280 = vpop.f32.mrf.mxu0
    %v281 = vadd.f32 %v240, %v280
    %282 = vmatmul.f32.gmra.mxu0 %v54
    %v283 = vpop.f32.mrf.mxu0
    %v284 = vadd.f32 %v243, %v283
    %285 = vmatmul.f32.gmra.mxu0 %v61
    %v286 = vpop.f32.mrf.mxu0
    %v287 = vadd.f32 %v246, %v286
    %288 = vmatmul.f32.gmra.mxu0 %v68
    %v289 = vpop.f32.mrf.mxu0
    %v290 = vadd.f32 %v249, %v289
    %291 = vmatmul.f32.gmra.mxu0 %v75
    %v292 = vpop.f32.mrf.mxu0
    %v293 = vadd.f32 %v252, %v292
    %294 = vmatmul.f32.gmra.mxu0 %v82
    %v295 = vpop.f32.mrf.mxu0
    %v296 = vadd.f32 %v255, %v295
    %297 = vmatmul.f32.gmra.mxu0 %v89
    %v298 = vpop.f32.mrf.mxu0
    %v299 = vadd.f32 %v258, %v298
    %300 = vmatmul.f32.gmra.mxu0 %v96
    %v301 = vpop.f32.mrf.mxu0
    %v302 = vadd.f32 %v261, %v301
    %303 = vdwg.mxu0
    %304 = vmatpush.xpose.msra.mxu0 0.0
    %305 = vmatpush.xpose.msra.mxu0 0.0
    %306 = vmatpush.xpose.msra.mxu0 0.0
    %307 = vmatpush.xpose.msra.mxu0 0.0
    %308 = vmatpush.xpose.msra.mxu0 0.0
    %309 = vmatpush.xpose.msra.mxu0 0.0
    %310 = vmatpush.xpose.msra.mxu0 0.0
    %311 = vmatpush.xpose.msra.mxu0 0.0
    %312 = vmatpush.xpose.msra.mxu0 0.0
    %313 = vmatpush.xpose.msra.mxu0 0.0
    %314 = vmatpush.xpose.msra.mxu0 0.0
    %315 = vmatpush.xpose.msra.mxu0 0.0
    %316 = vmatpush.xpose.msra.mxu0 0.0
    %317 = vmatpush.xpose.msra.mxu0 0.0
    %318 = vmatpush.xpose.msra.mxu0 0.0
    %319 = vmatpush.xpose.msra.mxu0 %v41
    %320 = vmatmul.f32.gmra.mxu0 %v48
    %v321 = vpop.f32.mrf.mxu0
    %v322 = vadd.f32 %v281, %v321
    %323 = vmatmul.f32.gmra.mxu0 %v55
    %v324 = vpop.f32.mrf.mxu0
    %v325 = vadd.f32 %v284, %v324
    %326 = vmatmul.f32.gmra.mxu0 %v62
    %v327 = vpop.f32.mrf.mxu0
    %v328 = vadd.f32 %v287, %v327
    %329 = vmatmul.f32.gmra.mxu0 %v69
    %v330 = vpop.f32.mrf.mxu0
    %v331 = vadd.f32 %v290, %v330
    %332 = vmatmul.f32.gmra.mxu0 %v76
    %v333 = vpop.f32.mrf.mxu0
    %v334 = vadd.f32 %v293, %v333
    %335 = vmatmul.f32.gmra.mxu0 %v83
    %v336 = vpop.f32.mrf.mxu0
    %v337 = vadd.f32 %v296, %v336
    %338 = vmatmul.f32.gmra.mxu0 %v90
    %v339 = vpop.f32.mrf.mxu0
    %v340 = vadd.f32 %v299, %v339
    %341 = vmatmul.f32.gmra.mxu0 %v97
    %v342 = vpop.f32.mrf.mxu0
    %v343 = vadd.f32 %v302, %v342
    %344 = vdwg.mxu0
    %345 = vmatpush.xpose.msra.mxu0 0.0
    %346 = vmatpush.xpose.msra.mxu0 0.0
    %347 = vmatpush.xpose.msra.mxu0 0.0
    %348 = vmatpush.xpose.msra.mxu0 0.0
    %349 = vmatpush.xpose.msra.mxu0 0.0
    %350 = vmatpush.xpose.msra.mxu0 0.0
    %351 = vmatpush.xpose.msra.mxu0 0.0
    %352 = vmatpush.xpose.msra.mxu0 0.0
    %353 = vmatpush.xpose.msra.mxu0 0.0
    %354 = vmatpush.xpose.msra.mxu0 0.0
    %355 = vmatpush.xpose.msra.mxu0 0.0
    %356 = vmatpush.xpose.msra.mxu0 0.0
    %357 = vmatpush.xpose.msra.mxu0 0.0
    %358 = vmatpush.xpose.msra.mxu0 0.0
    %359 = vmatpush.xpose.msra.mxu0 0.0
    %360 = vmatpush.xpose.msra.mxu0 %v42
    %361 = vmatmul.f32.gmra.mxu0 %v49
    %v362 = vpop.f32.mrf.mxu0
    %v363 = vadd.f32 %v322, %v362
    %364 = vmatmul.f32.gmra.mxu0 %v56
    %v365 = vpop.f32.mrf.mxu0
    %v366 = vadd.f32 %v325, %v365
    %367 = vmatmul.f32.gmra.mxu0 %v63
    %v368 = vpop.f32.mrf.mxu0
    %v369 = vadd.f32 %v328, %v368
    %370 = vmatmul.f32.gmra.mxu0 %v70
    %v371 = vpop.f32.mrf.mxu0
    %v372 = vadd.f32 %v331, %v371
    %373 = vmatmul.f32.gmra.mxu0 %v77
    %v374 = vpop.f32.mrf.mxu0
    %v375 = vadd.f32 %v334, %v374
    %376 = vmatmul.f32.gmra.mxu0 %v84
    %v377 = vpop.f32.mrf.mxu0
    %v378 = vadd.f32 %v337, %v377
    %379 = vmatmul.f32.gmra.mxu0 %v91
    %v380 = vpop.f32.mrf.mxu0
    %v381 = vadd.f32 %v340, %v380
    %382 = vmatmul.f32.gmra.mxu0 %v98
    %v383 = vpop.f32.mrf.mxu0
    %v384 = vadd.f32 %v343, %v383
    %385 = vdwg.mxu0
    %386 = vmatpush.xpose.msra.mxu0 0.0
    %387 = vmatpush.xpose.msra.mxu0 0.0
    %388 = vmatpush.xpose.msra.mxu0 0.0
    %389 = vmatpush.xpose.msra.mxu0 0.0
    %390 = vmatpush.xpose.msra.mxu0 0.0
    %391 = vmatpush.xpose.msra.mxu0 0.0
    %392 = vmatpush.xpose.msra.mxu0 0.0
    %393 = vmatpush.xpose.msra.mxu0 0.0
    %394 = vmatpush.xpose.msra.mxu0 0.0
    %395 = vmatpush.xpose.msra.mxu0 0.0
    %396 = vmatpush.xpose.msra.mxu0 0.0
    %397 = vmatpush.xpose.msra.mxu0 0.0
    %398 = vmatpush.xpose.msra.mxu0 0.0
    %399 = vmatpush.xpose.msra.mxu0 0.0
    %400 = vmatpush.xpose.msra.mxu0 0.0
    %401 = vmatpush.xpose.msra.mxu0 %v43
    %402 = vmatmul.f32.gmra.mxu0 %v50
    %v403 = vpop.f32.mrf.mxu0
    %v404 = vadd.f32 %v363, %v403
    %405 = vmatmul.f32.gmra.mxu0 %v57
    %v406 = vpop.f32.mrf.mxu0
    %v407 = vadd.f32 %v366, %v406
    %408 = vmatmul.f32.gmra.mxu0 %v64
    %v409 = vpop.f32.mrf.mxu0
    %v410 = vadd.f32 %v369, %v409
    %411 = vmatmul.f32.gmra.mxu0 %v71
    %v412 = vpop.f32.mrf.mxu0
    %v413 = vadd.f32 %v372, %v412
    %414 = vmatmul.f32.gmra.mxu0 %v78
    %v415 = vpop.f32.mrf.mxu0
    %v416 = vadd.f32 %v375, %v415
    %417 = vmatmul.f32.gmra.mxu0 %v85
    %v418 = vpop.f32.mrf.mxu0
    %v419 = vadd.f32 %v378, %v418
    %420 = vmatmul.f32.gmra.mxu0 %v92
    %v421 = vpop.f32.mrf.mxu0
    %v422 = vadd.f32 %v381, %v421
    %423 = vmatmul.f32.gmra.mxu0 %v99
    %v424 = vpop.f32.mrf.mxu0
    %v425 = vadd.f32 %v384, %v424
    %426 = vdwg.mxu0
    %427 = vmatpush.xpose.msra.mxu0 0.0
    %428 = vmatpush.xpose.msra.mxu0 0.0
    %429 = vmatpush.xpose.msra.mxu0 0.0
    %430 = vmatpush.xpose.msra.mxu0 0.0
    %431 = vmatpush.xpose.msra.mxu0 0.0
    %432 = vmatpush.xpose.msra.mxu0 0.0
    %433 = vmatpush.xpose.msra.mxu0 0.0
    %434 = vmatpush.xpose.msra.mxu0 0.0
    %435 = vmatpush.xpose.msra.mxu0 0.0
    %436 = vmatpush.xpose.msra.mxu0 0.0
    %437 = vmatpush.xpose.msra.mxu0 0.0
    %438 = vmatpush.xpose.msra.mxu0 0.0
    %439 = vmatpush.xpose.msra.mxu0 0.0
    %440 = vmatpush.xpose.msra.mxu0 0.0
    %441 = vmatpush.xpose.msra.mxu0 0.0
    %442 = vmatpush.xpose.msra.mxu0 %v179
    %443 = vmatmul.f32.gmra.mxu0 %v155
    %v444 = vpop.f32.mrf.mxu0
    %v445 = vadd.f32 %v404, %v444
    %446 = vmatmul.f32.gmra.mxu0 %v158
    %v447 = vpop.f32.mrf.mxu0
    %v448 = vadd.f32 %v407, %v447
    %449 = vmatmul.f32.gmra.mxu0 %v161
    %v450 = vpop.f32.mrf.mxu0
    %v451 = vadd.f32 %v410, %v450
    %452 = vmatmul.f32.gmra.mxu0 %v164
    %v453 = vpop.f32.mrf.mxu0
    %v454 = vadd.f32 %v413, %v453
    %455 = vmatmul.f32.gmra.mxu0 %v167
    %v456 = vpop.f32.mrf.mxu0
    %v457 = vadd.f32 %v416, %v456
    %458 = vmatmul.f32.gmra.mxu0 %v170
    %v459 = vpop.f32.mrf.mxu0
    %v460 = vadd.f32 %v419, %v459
    %461 = vmatmul.f32.gmra.mxu0 %v173
    %v462 = vpop.f32.mrf.mxu0
    %v463 = vadd.f32 %v422, %v462
    %464 = vmatmul.f32.gmra.mxu0 %v176
    %v465 = vpop.f32.mrf.mxu0
    %v466 = vadd.f32 %v425, %v465
    %467 = vdwg.mxu0
    %469 = vset.pattern.permute.xlu0 0
    %470 = vperm.xlu0 %469, %v111
    %v471 = vpop.permute.xlu0 %470
    %474 = vset.pattern.permute.xlu0 0
    %475 = vperm.xlu0 %474, %v112
    %v476 = vpop.permute.xlu0 %475
    %v478 = vadd.f32 %v445, 0.0
    %v479 = vadd.f32 %v448, 0.0
    %v480 = vadd.f32 %v451, 0.0
    %v481 = vadd.f32 %v454, 0.0
    %v482 = vadd.f32 %v457, 0.0
    %v483 = vadd.f32 %v460, 0.0
    %v484 = vadd.f32 %v463, 0.0
    %v485 = vadd.f32 %v466, 0.0
    %vm486 = vcmp.gt.f32.partialorder %v478, 1.0
    %vm487 = vcmp.gt.f32.partialorder %v479, 1.0
    %vm488 = vcmp.gt.f32.partialorder %v480, 1.0
    %vm489 = vcmp.gt.f32.partialorder %v481, 1.0
    %vm490 = vcmp.gt.f32.partialorder %v482, 1.0
    %vm491 = vcmp.gt.f32.partialorder %v483, 1.0
    %vm492 = vcmp.gt.f32.partialorder %v484, 1.0
    %vm493 = vcmp.gt.f32.partialorder %v485, 1.0
    %v494 = vsel %vm486, 1.0, 0.0
    %v495 = vsel %vm487, 1.0, 0.0
    %v496 = vsel %vm488, 1.0, 0.0
    %v497 = vsel %vm489, 1.0, 0.0
    %v498 = vsel %vm490, 1.0, 0.0
    %v499 = vsel %vm491, 1.0, 0.0
    %v500 = vsel %vm492, 1.0, 0.0
    %v501 = vsel %vm493, 1.0, 0.0
    %vm502 = vcmask 523264
    %v504 = vsel %vm502, %v109, 0
    %v507 = vsel %vm502, %v110, 0
    %509 = vmatpush.msra.mxu0 0.0
    %510 = vmatpush.msra.mxu0 0.0
    %511 = vmatpush.msra.mxu0 0.0
    %512 = vmatpush.msra.mxu0 0.0
    %513 = vmatpush.msra.mxu0 0.0
    %514 = vmatpush.msra.mxu0 0.0
    %515 = vmatpush.msra.mxu0 0.0
    %516 = vmatpush.msra.mxu0 0.0
    %517 = vmatpush.msra.mxu0 %v501
    %518 = vmatpush.msra.mxu0 %v500
    %519 = vmatpush.msra.mxu0 %v499
    %520 = vmatpush.msra.mxu0 %v498
    %521 = vmatpush.msra.mxu0 %v497
    %522 = vmatpush.msra.mxu0 %v496
    %523 = vmatpush.msra.mxu0 %v495
    %524 = vmatpush.msra.mxu0 %v494
    %525 = vmatmul.f32.gmra.mxu0 %v504
    %v526 = vpop.f32.mrf.mxu0
    %v527 = vadd.f32 %v471, %v526
    %528 = vmatmul.f32.gmra.mxu0 %v507
    %v529 = vpop.f32.mrf.mxu0
    %v530 = vadd.f32 %v476, %v529
    %531 = vdwg.mxu0
    %v532 = vadd.f32 %v527, 0.0
    %v533 = vadd.f32 %v530, 0.0
    %vm534 = vcmp.gt.f32.partialorder %v532, 1.0
    %vm535 = vcmp.gt.f32.partialorder %v533, 1.0
    %v536 = vsel %vm534, 1.0, 0.0
    %v537 = vsel %vm535, 1.0, 0.0
    %vm538 = vcmask 64512
    %539 = vst.msk [vmem:[%s5] sm:$0xff] %vm538, %v536
    %vm540 = vcmask 58368
    %541 = vst.msk [vmem:[%s5 + $0x8] sm:$0x3] %vm540, %v537
    %542 = vst.msk [vmem:[%s6] sm:$0xff] %vm538, %v532
    %543 = vst.msk [vmem:[%s6 + $0x8] sm:$0x3] %vm540, %v533
    %v544 = vmul.f32 %v478, 0.95
    %v545 = vmul.f32 %v479, 0.95
    %v546 = vmul.f32 %v480, 0.95
    %v547 = vmul.f32 %v481, 0.95
    %v548 = vmul.f32 %v482, 0.95
    %v549 = vmul.f32 %v483, 0.95
    %v550 = vmul.f32 %v484, 0.95
    %v551 = vmul.f32 %v485, 0.95
    %v552 = vadd.f32 %v544, %v445
    %v553 = vadd.f32 %v545, %v448
    %v554 = vadd.f32 %v546, %v451
    %v555 = vadd.f32 %v547, %v454
    %v556 = vadd.f32 %v548, %v457
    %v557 = vadd.f32 %v549, %v460
    %v558 = vadd.f32 %v550, %v463
    %v559 = vadd.f32 %v551, %v466
    %v560 = vsub.f32 %v552, %v494
    %v561 = vsub.f32 %v553, %v495
    %v562 = vsub.f32 %v554, %v496
    %v563 = vsub.f32 %v555, %v497
    %v564 = vsub.f32 %v556, %v498
    %v565 = vsub.f32 %v557, %v499
    %v566 = vsub.f32 %v558, %v500
    %v567 = vsub.f32 %v559, %v501
    %vm568 = vcmp.gt.f32.partialorder %v560, 1.0
    %vm569 = vcmp.gt.f32.partialorder %v561, 1.0
    %vm570 = vcmp.gt.f32.partialorder %v562, 1.0
    %vm571 = vcmp.gt.f32.partialorder %v563, 1.0
    %vm572 = vcmp.gt.f32.partialorder %v564, 1.0
    %vm573 = vcmp.gt.f32.partialorder %v565, 1.0
    %vm574 = vcmp.gt.f32.partialorder %v566, 1.0
    %vm575 = vcmp.gt.f32.partialorder %v567, 1.0
    %v576 = vsel %vm568, 1.0, 0.0
    %v577 = vsel %vm569, 1.0, 0.0
    %v578 = vsel %vm570, 1.0, 0.0
    %v579 = vsel %vm571, 1.0, 0.0
    %v580 = vsel %vm572, 1.0, 0.0
    %v581 = vsel %vm573, 1.0, 0.0
    %v582 = vsel %vm574, 1.0, 0.0
    %v583 = vsel %vm575, 1.0, 0.0
    %584 = vmatpush.msra.mxu0 0.0
    %585 = vmatpush.msra.mxu0 0.0
    %586 = vmatpush.msra.mxu0 0.0
    %587 = vmatpush.msra.mxu0 0.0
    %588 = vmatpush.msra.mxu0 0.0
    %589 = vmatpush.msra.mxu0 0.0
    %590 = vmatpush.msra.mxu0 0.0
    %591 = vmatpush.msra.mxu0 0.0
    %592 = vmatpush.msra.mxu0 %v583
    %593 = vmatpush.msra.mxu0 %v582
    %594 = vmatpush.msra.mxu0 %v581
    %595 = vmatpush.msra.mxu0 %v580
    %596 = vmatpush.msra.mxu0 %v579
    %597 = vmatpush.msra.mxu0 %v578
    %598 = vmatpush.msra.mxu0 %v577
    %599 = vmatpush.msra.mxu0 %v576
    %600 = vmatmul.f32.gmra.mxu0 %v504
    %v601 = vpop.f32.mrf.mxu0
    %v602 = vadd.f32 %v471, %v601
    %603 = vmatmul.f32.gmra.mxu0 %v507
    %v604 = vpop.f32.mrf.mxu0
    %v605 = vadd.f32 %v476, %v604
    %606 = vdwg.mxu0
    %v607 = vmul.f32 %v532, 0.95
    %v608 = vmul.f32 %v533, 0.95
    %v609 = vadd.f32 %v607, %v602
    %v610 = vadd.f32 %v608, %v605
    %v611 = vsub.f32 %v609, %v536
    %v612 = vsub.f32 %v610, %v537
    %vm613 = vcmp.gt.f32.partialorder %v611, 1.0
    %vm614 = vcmp.gt.f32.partialorder %v612, 1.0
    %v615 = vsel %vm613, 1.0, 0.0
    %v616 = vsel %vm614, 1.0, 0.0
    %s617 = scalar_lea.vmem %s5, 16
    %618 = vst.msk [vmem:[%s617] sm:$0xff] %vm538, %v615
    %619 = vst.msk [vmem:[%s617 + $0x8] sm:$0x3] %vm540, %v616
    %s620 = scalar_lea.vmem %s6, 16
    %621 = vst.msk [vmem:[%s620] sm:$0xff] %vm538, %v611
    %622 = vst.msk [vmem:[%s620 + $0x8] sm:$0x3] %vm540, %v612
    %v623 = vmul.f32 %v560, 0.95
    %v624 = vmul.f32 %v561, 0.95
    %v625 = vmul.f32 %v562, 0.95
    %v626 = vmul.f32 %v563, 0.95
    %v627 = vmul.f32 %v564, 0.95
    %v628 = vmul.f32 %v565, 0.95
    %v629 = vmul.f32 %v566, 0.95
    %v630 = vmul.f32 %v567, 0.95
    %v631 = vadd.f32 %v623, %v445
    %v632 = vadd.f32 %v624, %v448
    %v633 = vadd.f32 %v625, %v451
    %v634 = vadd.f32 %v626, %v454
    %v635 = vadd.f32 %v627, %v457
    %v636 = vadd.f32 %v628, %v460
    %v637 = vadd.f32 %v629, %v463
    %v638 = vadd.f32 %v630, %v466
    %v639 = vsub.f32 %v631, %v576
    %v640 = vsub.f32 %v632, %v577
    %v641 = vsub.f32 %v633, %v578
    %v642 = vsub.f32 %v634, %v579
    %v643 = vsub.f32 %v635, %v580
    %v644 = vsub.f32 %v636, %v581
    %v645 = vsub.f32 %v637, %v582
    %v646 = vsub.f32 %v638, %v583
    %vm647 = vcmp.gt.f32.partialorder %v639, 1.0
    %vm648 = vcmp.gt.f32.partialorder %v640, 1.0
    %vm649 = vcmp.gt.f32.partialorder %v641, 1.0
    %vm650 = vcmp.gt.f32.partialorder %v642, 1.0
    %vm651 = vcmp.gt.f32.partialorder %v643, 1.0
    %vm652 = vcmp.gt.f32.partialorder %v644, 1.0
    %vm653 = vcmp.gt.f32.partialorder %v645, 1.0
    %vm654 = vcmp.gt.f32.partialorder %v646, 1.0
    %v655 = vsel %vm647, 1.0, 0.0
    %v656 = vsel %vm648, 1.0, 0.0
    %v657 = vsel %vm649, 1.0, 0.0
    %v658 = vsel %vm650, 1.0, 0.0
    %v659 = vsel %vm651, 1.0, 0.0
    %v660 = vsel %vm652, 1.0, 0.0
    %v661 = vsel %vm653, 1.0, 0.0
    %v662 = vsel %vm654, 1.0, 0.0
    %663 = vmatpush.msra.mxu0 0.0
    %664 = vmatpush.msra.mxu0 0.0
    %665 = vmatpush.msra.mxu0 0.0
    %666 = vmatpush.msra.mxu0 0.0
    %667 = vmatpush.msra.mxu0 0.0
    %668 = vmatpush.msra.mxu0 0.0
    %669 = vmatpush.msra.mxu0 0.0
    %670 = vmatpush.msra.mxu0 0.0
    %671 = vmatpush.msra.mxu0 %v662
    %672 = vmatpush.msra.mxu0 %v661
    %673 = vmatpush.msra.mxu0 %v660
    %674 = vmatpush.msra.mxu0 %v659
    %675 = vmatpush.msra.mxu0 %v658
    %676 = vmatpush.msra.mxu0 %v657
    %677 = vmatpush.msra.mxu0 %v656
    %678 = vmatpush.msra.mxu0 %v655
    %679 = vmatmul.f32.gmra.mxu0 %v504
    %v680 = vpop.f32.mrf.mxu0
    %v681 = vadd.f32 %v471, %v680
    %682 = vmatmul.f32.gmra.mxu0 %v507
    %v683 = vpop.f32.mrf.mxu0
    %v684 = vadd.f32 %v476, %v683
    %685 = vdwg.mxu0
    %v686 = vmul.f32 %v611, 0.95
    %v687 = vmul.f32 %v612, 0.95
    %v688 = vadd.f32 %v686, %v681
    %v689 = vadd.f32 %v687, %v684
    %v690 = vsub.f32 %v688, %v615
    %v691 = vsub.f32 %v689, %v616
    %vm692 = vcmp.gt.f32.partialorder %v690, 1.0
    %vm693 = vcmp.gt.f32.partialorder %v691, 1.0
    %v694 = vsel %vm692, 1.0, 0.0
    %v695 = vsel %vm693, 1.0, 0.0
    %s696 = scalar_lea.vmem %s5, 32
    %697 = vst.msk [vmem:[%s696] sm:$0xff] %vm538, %v694
    %698 = vst.msk [vmem:[%s696 + $0x8] sm:$0x3] %vm540, %v695
    %s699 = scalar_lea.vmem %s6, 32
    %700 = vst.msk [vmem:[%s699] sm:$0xff] %vm538, %v690
    %701 = vst.msk [vmem:[%s699 + $0x8] sm:$0x3] %vm540, %v691
    %v702 = vmul.f32 %v639, 0.95
    %v703 = vmul.f32 %v640, 0.95
    %v704 = vmul.f32 %v641, 0.95
    %v705 = vmul.f32 %v642, 0.95
    %v706 = vmul.f32 %v643, 0.95
    %v707 = vmul.f32 %v644, 0.95
    %v708 = vmul.f32 %v645, 0.95
    %v709 = vmul.f32 %v646, 0.95
    %v710 = vadd.f32 %v702, %v445
    %v711 = vadd.f32 %v703, %v448
    %v712 = vadd.f32 %v704, %v451
    %v713 = vadd.f32 %v705, %v454
    %v714 = vadd.f32 %v706, %v457
    %v715 = vadd.f32 %v707, %v460
    %v716 = vadd.f32 %v708, %v463
    %v717 = vadd.f32 %v709, %v466
    %v718 = vsub.f32 %v710, %v655
    %v719 = vsub.f32 %v711, %v656
    %v720 = vsub.f32 %v712, %v657
    %v721 = vsub.f32 %v713, %v658
    %v722 = vsub.f32 %v714, %v659
    %v723 = vsub.f32 %v715, %v660
    %v724 = vsub.f32 %v716, %v661
    %v725 = vsub.f32 %v717, %v662
    %vm726 = vcmp.gt.f32.partialorder %v718, 1.0
    %vm727 = vcmp.gt.f32.partialorder %v719, 1.0
    %vm728 = vcmp.gt.f32.partialorder %v720, 1.0
    %vm729 = vcmp.gt.f32.partialorder %v721, 1.0
    %vm730 = vcmp.gt.f32.partialorder %v722, 1.0
    %vm731 = vcmp.gt.f32.partialorder %v723, 1.0
    %vm732 = vcmp.gt.f32.partialorder %v724, 1.0
    %vm733 = vcmp.gt.f32.partialorder %v725, 1.0
    %v734 = vsel %vm726, 1.0, 0.0
    %v735 = vsel %vm727, 1.0, 0.0
    %v736 = vsel %vm728, 1.0, 0.0
    %v737 = vsel %vm729, 1.0, 0.0
    %v738 = vsel %vm730, 1.0, 0.0
    %v739 = vsel %vm731, 1.0, 0.0
    %v740 = vsel %vm732, 1.0, 0.0
    %v741 = vsel %vm733, 1.0, 0.0
    %742 = vmatpush.msra.mxu0 0.0
    %743 = vmatpush.msra.mxu0 0.0
    %744 = vmatpush.msra.mxu0 0.0
    %745 = vmatpush.msra.mxu0 0.0
    %746 = vmatpush.msra.mxu0 0.0
    %747 = vmatpush.msra.mxu0 0.0
    %748 = vmatpush.msra.mxu0 0.0
    %749 = vmatpush.msra.mxu0 0.0
    %750 = vmatpush.msra.mxu0 %v741
    %751 = vmatpush.msra.mxu0 %v740
    %752 = vmatpush.msra.mxu0 %v739
    %753 = vmatpush.msra.mxu0 %v738
    %754 = vmatpush.msra.mxu0 %v737
    %755 = vmatpush.msra.mxu0 %v736
    %756 = vmatpush.msra.mxu0 %v735
    %757 = vmatpush.msra.mxu0 %v734
    %758 = vmatmul.f32.gmra.mxu0 %v504
    %v759 = vpop.f32.mrf.mxu0
    %v760 = vadd.f32 %v471, %v759
    %761 = vmatmul.f32.gmra.mxu0 %v507
    %v762 = vpop.f32.mrf.mxu0
    %v763 = vadd.f32 %v476, %v762
    %764 = vdwg.mxu0
    %v765 = vmul.f32 %v690, 0.95
    %v766 = vmul.f32 %v691, 0.95
    %v767 = vadd.f32 %v765, %v760
    %v768 = vadd.f32 %v766, %v763
    %v769 = vsub.f32 %v767, %v694
    %v770 = vsub.f32 %v768, %v695
    %vm771 = vcmp.gt.f32.partialorder %v769, 1.0
    %vm772 = vcmp.gt.f32.partialorder %v770, 1.0
    %v773 = vsel %vm771, 1.0, 0.0
    %v774 = vsel %vm772, 1.0, 0.0
    %s775 = scalar_lea.vmem %s5, 48
    %776 = vst.msk [vmem:[%s775] sm:$0xff] %vm538, %v773
    %777 = vst.msk [vmem:[%s775 + $0x8] sm:$0x3] %vm540, %v774
    %s778 = scalar_lea.vmem %s6, 48
    %779 = vst.msk [vmem:[%s778] sm:$0xff] %vm538, %v769
    %780 = vst.msk [vmem:[%s778 + $0x8] sm:$0x3] %vm540, %v770
    %v781 = vmul.f32 %v718, 0.95
    %v782 = vmul.f32 %v719, 0.95
    %v783 = vmul.f32 %v720, 0.95
    %v784 = vmul.f32 %v721, 0.95
    %v785 = vmul.f32 %v722, 0.95
    %v786 = vmul.f32 %v723, 0.95
    %v787 = vmul.f32 %v724, 0.95
    %v788 = vmul.f32 %v725, 0.95
    %v789 = vadd.f32 %v781, %v445
    %v790 = vadd.f32 %v782, %v448
    %v791 = vadd.f32 %v783, %v451
    %v792 = vadd.f32 %v784, %v454
    %v793 = vadd.f32 %v785, %v457
    %v794 = vadd.f32 %v786, %v460
    %v795 = vadd.f32 %v787, %v463
    %v796 = vadd.f32 %v788, %v466
    %v797 = vsub.f32 %v789, %v734
    %v798 = vsub.f32 %v790, %v735
    %v799 = vsub.f32 %v791, %v736
    %v800 = vsub.f32 %v792, %v737
    %v801 = vsub.f32 %v793, %v738
    %v802 = vsub.f32 %v794, %v739
    %v803 = vsub.f32 %v795, %v740
    %v804 = vsub.f32 %v796, %v741
    %vm805 = vcmp.gt.f32.partialorder %v797, 1.0
    %vm806 = vcmp.gt.f32.partialorder %v798, 1.0
    %vm807 = vcmp.gt.f32.partialorder %v799, 1.0
    %vm808 = vcmp.gt.f32.partialorder %v800, 1.0
    %vm809 = vcmp.gt.f32.partialorder %v801, 1.0
    %vm810 = vcmp.gt.f32.partialorder %v802, 1.0
    %vm811 = vcmp.gt.f32.partialorder %v803, 1.0
    %vm812 = vcmp.gt.f32.partialorder %v804, 1.0
    %v813 = vsel %vm805, 1.0, 0.0
    %v814 = vsel %vm806, 1.0, 0.0
    %v815 = vsel %vm807, 1.0, 0.0
    %v816 = vsel %vm808, 1.0, 0.0
    %v817 = vsel %vm809, 1.0, 0.0
    %v818 = vsel %vm810, 1.0, 0.0
    %v819 = vsel %vm811, 1.0, 0.0
    %v820 = vsel %vm812, 1.0, 0.0
    %821 = vmatpush.msra.mxu0 0.0
    %822 = vmatpush.msra.mxu0 0.0
    %823 = vmatpush.msra.mxu0 0.0
    %824 = vmatpush.msra.mxu0 0.0
    %825 = vmatpush.msra.mxu0 0.0
    %826 = vmatpush.msra.mxu0 0.0
    %827 = vmatpush.msra.mxu0 0.0
    %828 = vmatpush.msra.mxu0 0.0
    %829 = vmatpush.msra.mxu0 %v820
    %830 = vmatpush.msra.mxu0 %v819
    %831 = vmatpush.msra.mxu0 %v818
    %832 = vmatpush.msra.mxu0 %v817
    %833 = vmatpush.msra.mxu0 %v816
    %834 = vmatpush.msra.mxu0 %v815
    %835 = vmatpush.msra.mxu0 %v814
    %836 = vmatpush.msra.mxu0 %v813
    %837 = vmatmul.f32.gmra.mxu0 %v504
    %v838 = vpop.f32.mrf.mxu0
    %v839 = vadd.f32 %v471, %v838
    %840 = vmatmul.f32.gmra.mxu0 %v507
    %v841 = vpop.f32.mrf.mxu0
    %v842 = vadd.f32 %v476, %v841
    %843 = vdwg.mxu0
    %v844 = vmul.f32 %v769, 0.95
    %v845 = vmul.f32 %v770, 0.95
    %v846 = vadd.f32 %v844, %v839
    %v847 = vadd.f32 %v845, %v842
    %v848 = vsub.f32 %v846, %v773
    %v849 = vsub.f32 %v847, %v774
    %vm850 = vcmp.gt.f32.partialorder %v848, 1.0
    %vm851 = vcmp.gt.f32.partialorder %v849, 1.0
    %v852 = vsel %vm850, 1.0, 0.0
    %v853 = vsel %vm851, 1.0, 0.0
    %s854 = scalar_lea.vmem %s5, 64
    %855 = vst.msk [vmem:[%s854] sm:$0xff] %vm538, %v852
    %856 = vst.msk [vmem:[%s854 + $0x8] sm:$0x3] %vm540, %v853
    %s857 = scalar_lea.vmem %s6, 64
    %858 = vst.msk [vmem:[%s857] sm:$0xff] %vm538, %v848
    %859 = vst.msk [vmem:[%s857 + $0x8] sm:$0x3] %vm540, %v849
    %v860 = vmul.f32 %v797, 0.95
    %v861 = vmul.f32 %v798, 0.95
    %v862 = vmul.f32 %v799, 0.95
    %v863 = vmul.f32 %v800, 0.95
    %v864 = vmul.f32 %v801, 0.95
    %v865 = vmul.f32 %v802, 0.95
    %v866 = vmul.f32 %v803, 0.95
    %v867 = vmul.f32 %v804, 0.95
    %v868 = vadd.f32 %v860, %v445
    %v869 = vadd.f32 %v861, %v448
    %v870 = vadd.f32 %v862, %v451
    %v871 = vadd.f32 %v863, %v454
    %v872 = vadd.f32 %v864, %v457
    %v873 = vadd.f32 %v865, %v460
    %v874 = vadd.f32 %v866, %v463
    %v875 = vadd.f32 %v867, %v466
    %v876 = vsub.f32 %v868, %v813
    %v877 = vsub.f32 %v869, %v814
    %v878 = vsub.f32 %v870, %v815
    %v879 = vsub.f32 %v871, %v816
    %v880 = vsub.f32 %v872, %v817
    %v881 = vsub.f32 %v873, %v818
    %v882 = vsub.f32 %v874, %v819
    %v883 = vsub.f32 %v875, %v820
    %vm884 = vcmp.gt.f32.partialorder %v876, 1.0
    %vm885 = vcmp.gt.f32.partialorder %v877, 1.0
    %vm886 = vcmp.gt.f32.partialorder %v878, 1.0
    %vm887 = vcmp.gt.f32.partialorder %v879, 1.0
    %vm888 = vcmp.gt.f32.partialorder %v880, 1.0
    %vm889 = vcmp.gt.f32.partialorder %v881, 1.0
    %vm890 = vcmp.gt.f32.partialorder %v882, 1.0
    %vm891 = vcmp.gt.f32.partialorder %v883, 1.0
    %v892 = vsel %vm884, 1.0, 0.0
    %v893 = vsel %vm885, 1.0, 0.0
    %v894 = vsel %vm886, 1.0, 0.0
    %v895 = vsel %vm887, 1.0, 0.0
    %v896 = vsel %vm888, 1.0, 0.0
    %v897 = vsel %vm889, 1.0, 0.0
    %v898 = vsel %vm890, 1.0, 0.0
    %v899 = vsel %vm891, 1.0, 0.0
    %900 = vmatpush.msra.mxu0 0.0
    %901 = vmatpush.msra.mxu0 0.0
    %902 = vmatpush.msra.mxu0 0.0
    %903 = vmatpush.msra.mxu0 0.0
    %904 = vmatpush.msra.mxu0 0.0
    %905 = vmatpush.msra.mxu0 0.0
    %906 = vmatpush.msra.mxu0 0.0
    %907 = vmatpush.msra.mxu0 0.0
    %908 = vmatpush.msra.mxu0 %v899
    %909 = vmatpush.msra.mxu0 %v898
    %910 = vmatpush.msra.mxu0 %v897
    %911 = vmatpush.msra.mxu0 %v896
    %912 = vmatpush.msra.mxu0 %v895
    %913 = vmatpush.msra.mxu0 %v894
    %914 = vmatpush.msra.mxu0 %v893
    %915 = vmatpush.msra.mxu0 %v892
    %916 = vmatmul.f32.gmra.mxu0 %v504
    %v917 = vpop.f32.mrf.mxu0
    %v918 = vadd.f32 %v471, %v917
    %919 = vmatmul.f32.gmra.mxu0 %v507
    %v920 = vpop.f32.mrf.mxu0
    %v921 = vadd.f32 %v476, %v920
    %922 = vdwg.mxu0
    %v923 = vmul.f32 %v848, 0.95
    %v924 = vmul.f32 %v849, 0.95
    %v925 = vadd.f32 %v923, %v918
    %v926 = vadd.f32 %v924, %v921
    %v927 = vsub.f32 %v925, %v852
    %v928 = vsub.f32 %v926, %v853
    %vm929 = vcmp.gt.f32.partialorder %v927, 1.0
    %vm930 = vcmp.gt.f32.partialorder %v928, 1.0
    %v931 = vsel %vm929, 1.0, 0.0
    %v932 = vsel %vm930, 1.0, 0.0
    %s933 = scalar_lea.vmem %s5, 80
    %934 = vst.msk [vmem:[%s933] sm:$0xff] %vm538, %v931
    %935 = vst.msk [vmem:[%s933 + $0x8] sm:$0x3] %vm540, %v932
    %s936 = scalar_lea.vmem %s6, 80
    %937 = vst.msk [vmem:[%s936] sm:$0xff] %vm538, %v927
    %938 = vst.msk [vmem:[%s936 + $0x8] sm:$0x3] %vm540, %v928
    %v939 = vmul.f32 %v876, 0.95
    %v940 = vmul.f32 %v877, 0.95
    %v941 = vmul.f32 %v878, 0.95
    %v942 = vmul.f32 %v879, 0.95
    %v943 = vmul.f32 %v880, 0.95
    %v944 = vmul.f32 %v881, 0.95
    %v945 = vmul.f32 %v882, 0.95
    %v946 = vmul.f32 %v883, 0.95
    %v947 = vadd.f32 %v939, %v445
    %v948 = vadd.f32 %v940, %v448
    %v949 = vadd.f32 %v941, %v451
    %v950 = vadd.f32 %v942, %v454
    %v951 = vadd.f32 %v943, %v457
    %v952 = vadd.f32 %v944, %v460
    %v953 = vadd.f32 %v945, %v463
    %v954 = vadd.f32 %v946, %v466
    %v955 = vsub.f32 %v947, %v892
    %v956 = vsub.f32 %v948, %v893
    %v957 = vsub.f32 %v949, %v894
    %v958 = vsub.f32 %v950, %v895
    %v959 = vsub.f32 %v951, %v896
    %v960 = vsub.f32 %v952, %v897
    %v961 = vsub.f32 %v953, %v898
    %v962 = vsub.f32 %v954, %v899
    %vm963 = vcmp.gt.f32.partialorder %v955, 1.0
    %vm964 = vcmp.gt.f32.partialorder %v956, 1.0
    %vm965 = vcmp.gt.f32.partialorder %v957, 1.0
    %vm966 = vcmp.gt.f32.partialorder %v958, 1.0
    %vm967 = vcmp.gt.f32.partialorder %v959, 1.0
    %vm968 = vcmp.gt.f32.partialorder %v960, 1.0
    %vm969 = vcmp.gt.f32.partialorder %v961, 1.0
    %vm970 = vcmp.gt.f32.partialorder %v962, 1.0
    %v971 = vsel %vm963, 1.0, 0.0
    %v972 = vsel %vm964, 1.0, 0.0
    %v973 = vsel %vm965, 1.0, 0.0
    %v974 = vsel %vm966, 1.0, 0.0
    %v975 = vsel %vm967, 1.0, 0.0
    %v976 = vsel %vm968, 1.0, 0.0
    %v977 = vsel %vm969, 1.0, 0.0
    %v978 = vsel %vm970, 1.0, 0.0
    %979 = vmatpush.msra.mxu0 0.0
    %980 = vmatpush.msra.mxu0 0.0
    %981 = vmatpush.msra.mxu0 0.0
    %982 = vmatpush.msra.mxu0 0.0
    %983 = vmatpush.msra.mxu0 0.0
    %984 = vmatpush.msra.mxu0 0.0
    %985 = vmatpush.msra.mxu0 0.0
    %986 = vmatpush.msra.mxu0 0.0
    %987 = vmatpush.msra.mxu0 %v978
    %988 = vmatpush.msra.mxu0 %v977
    %989 = vmatpush.msra.mxu0 %v976
    %990 = vmatpush.msra.mxu0 %v975
    %991 = vmatpush.msra.mxu0 %v974
    %992 = vmatpush.msra.mxu0 %v973
    %993 = vmatpush.msra.mxu0 %v972
    %994 = vmatpush.msra.mxu0 %v971
    %995 = vmatmul.f32.gmra.mxu0 %v504
    %v996 = vpop.f32.mrf.mxu0
    %v997 = vadd.f32 %v471, %v996
    %998 = vmatmul.f32.gmra.mxu0 %v507
    %v999 = vpop.f32.mrf.mxu0
    %v1000 = vadd.f32 %v476, %v999
    %1001 = vdwg.mxu0
    %v1002 = vmul.f32 %v927, 0.95
    %v1003 = vmul.f32 %v928, 0.95
    %v1004 = vadd.f32 %v1002, %v997
    %v1005 = vadd.f32 %v1003, %v1000
    %v1006 = vsub.f32 %v1004, %v931
    %v1007 = vsub.f32 %v1005, %v932
    %vm1008 = vcmp.gt.f32.partialorder %v1006, 1.0
    %vm1009 = vcmp.gt.f32.partialorder %v1007, 1.0
    %v1010 = vsel %vm1008, 1.0, 0.0
    %v1011 = vsel %vm1009, 1.0, 0.0
    %s1012 = scalar_lea.vmem %s5, 96
    %1013 = vst.msk [vmem:[%s1012] sm:$0xff] %vm538, %v1010
    %1014 = vst.msk [vmem:[%s1012 + $0x8] sm:$0x3] %vm540, %v1011
    %s1015 = scalar_lea.vmem %s6, 96
    %1016 = vst.msk [vmem:[%s1015] sm:$0xff] %vm538, %v1006
    %1017 = vst.msk [vmem:[%s1015 + $0x8] sm:$0x3] %vm540, %v1007
    %v1018 = vmul.f32 %v955, 0.95
    %v1019 = vmul.f32 %v956, 0.95
    %v1020 = vmul.f32 %v957, 0.95
    %v1021 = vmul.f32 %v958, 0.95
    %v1022 = vmul.f32 %v959, 0.95
    %v1023 = vmul.f32 %v960, 0.95
    %v1024 = vmul.f32 %v961, 0.95
    %v1025 = vmul.f32 %v962, 0.95
    %v1026 = vadd.f32 %v1018, %v445
    %v1027 = vadd.f32 %v1019, %v448
    %v1028 = vadd.f32 %v1020, %v451
    %v1029 = vadd.f32 %v1021, %v454
    %v1030 = vadd.f32 %v1022, %v457
    %v1031 = vadd.f32 %v1023, %v460
    %v1032 = vadd.f32 %v1024, %v463
    %v1033 = vadd.f32 %v1025, %v466
    %v1034 = vsub.f32 %v1026, %v971
    %v1035 = vsub.f32 %v1027, %v972
    %v1036 = vsub.f32 %v1028, %v973
    %v1037 = vsub.f32 %v1029, %v974
    %v1038 = vsub.f32 %v1030, %v975
    %v1039 = vsub.f32 %v1031, %v976
    %v1040 = vsub.f32 %v1032, %v977
    %v1041 = vsub.f32 %v1033, %v978
    %vm1042 = vcmp.gt.f32.partialorder %v1034, 1.0
    %vm1043 = vcmp.gt.f32.partialorder %v1035, 1.0
    %vm1044 = vcmp.gt.f32.partialorder %v1036, 1.0
    %vm1045 = vcmp.gt.f32.partialorder %v1037, 1.0
    %vm1046 = vcmp.gt.f32.partialorder %v1038, 1.0
    %vm1047 = vcmp.gt.f32.partialorder %v1039, 1.0
    %vm1048 = vcmp.gt.f32.partialorder %v1040, 1.0
    %vm1049 = vcmp.gt.f32.partialorder %v1041, 1.0
    %v1050 = vsel %vm1042, 1.0, 0.0
    %v1051 = vsel %vm1043, 1.0, 0.0
    %v1052 = vsel %vm1044, 1.0, 0.0
    %v1053 = vsel %vm1045, 1.0, 0.0
    %v1054 = vsel %vm1046, 1.0, 0.0
    %v1055 = vsel %vm1047, 1.0, 0.0
    %v1056 = vsel %vm1048, 1.0, 0.0
    %v1057 = vsel %vm1049, 1.0, 0.0
    %1058 = vmatpush.msra.mxu0 0.0
    %1059 = vmatpush.msra.mxu0 0.0
    %1060 = vmatpush.msra.mxu0 0.0
    %1061 = vmatpush.msra.mxu0 0.0
    %1062 = vmatpush.msra.mxu0 0.0
    %1063 = vmatpush.msra.mxu0 0.0
    %1064 = vmatpush.msra.mxu0 0.0
    %1065 = vmatpush.msra.mxu0 0.0
    %1066 = vmatpush.msra.mxu0 %v1057
    %1067 = vmatpush.msra.mxu0 %v1056
    %1068 = vmatpush.msra.mxu0 %v1055
    %1069 = vmatpush.msra.mxu0 %v1054
    %1070 = vmatpush.msra.mxu0 %v1053
    %1071 = vmatpush.msra.mxu0 %v1052
    %1072 = vmatpush.msra.mxu0 %v1051
    %1073 = vmatpush.msra.mxu0 %v1050
    %1074 = vmatmul.f32.gmra.mxu0 %v504
    %v1075 = vpop.f32.mrf.mxu0
    %v1076 = vadd.f32 %v471, %v1075
    %1077 = vmatmul.f32.gmra.mxu0 %v507
    %v1078 = vpop.f32.mrf.mxu0
    %v1079 = vadd.f32 %v476, %v1078
    %1080 = vdwg.mxu0
    %v1081 = vmul.f32 %v1006, 0.95
    %v1082 = vmul.f32 %v1007, 0.95
    %v1083 = vadd.f32 %v1081, %v1076
    %v1084 = vadd.f32 %v1082, %v1079
    %v1085 = vsub.f32 %v1083, %v1010
    %v1086 = vsub.f32 %v1084, %v1011
    %vm1087 = vcmp.gt.f32.partialorder %v1085, 1.0
    %vm1088 = vcmp.gt.f32.partialorder %v1086, 1.0
    %v1089 = vsel %vm1087, 1.0, 0.0
    %v1090 = vsel %vm1088, 1.0, 0.0
    %s1091 = scalar_lea.vmem %s5, 112
    %1092 = vst.msk [vmem:[%s1091] sm:$0xff] %vm538, %v1089
    %1093 = vst.msk [vmem:[%s1091 + $0x8] sm:$0x3] %vm540, %v1090
    %s1094 = scalar_lea.vmem %s6, 112
    %1095 = vst.msk [vmem:[%s1094] sm:$0xff] %vm538, %v1085
    %1096 = vst.msk [vmem:[%s1094 + $0x8] sm:$0x3] %vm540, %v1086
    %v1097 = vmul.f32 %v1034, 0.95
    %v1098 = vmul.f32 %v1035, 0.95
    %v1099 = vmul.f32 %v1036, 0.95
    %v1100 = vmul.f32 %v1037, 0.95
    %v1101 = vmul.f32 %v1038, 0.95
    %v1102 = vmul.f32 %v1039, 0.95
    %v1103 = vmul.f32 %v1040, 0.95
    %v1104 = vmul.f32 %v1041, 0.95
    %v1105 = vadd.f32 %v1097, %v445
    %v1106 = vadd.f32 %v1098, %v448
    %v1107 = vadd.f32 %v1099, %v451
    %v1108 = vadd.f32 %v1100, %v454
    %v1109 = vadd.f32 %v1101, %v457
    %v1110 = vadd.f32 %v1102, %v460
    %v1111 = vadd.f32 %v1103, %v463
    %v1112 = vadd.f32 %v1104, %v466
    %v1113 = vsub.f32 %v1105, %v1050
    %v1114 = vsub.f32 %v1106, %v1051
    %v1115 = vsub.f32 %v1107, %v1052
    %v1116 = vsub.f32 %v1108, %v1053
    %v1117 = vsub.f32 %v1109, %v1054
    %v1118 = vsub.f32 %v1110, %v1055
    %v1119 = vsub.f32 %v1111, %v1056
    %v1120 = vsub.f32 %v1112, %v1057
    %vm1121 = vcmp.gt.f32.partialorder %v1113, 1.0
    %vm1122 = vcmp.gt.f32.partialorder %v1114, 1.0
    %vm1123 = vcmp.gt.f32.partialorder %v1115, 1.0
    %vm1124 = vcmp.gt.f32.partialorder %v1116, 1.0
    %vm1125 = vcmp.gt.f32.partialorder %v1117, 1.0
    %vm1126 = vcmp.gt.f32.partialorder %v1118, 1.0
    %vm1127 = vcmp.gt.f32.partialorder %v1119, 1.0
    %vm1128 = vcmp.gt.f32.partialorder %v1120, 1.0
    %v1129 = vsel %vm1121, 1.0, 0.0
    %v1130 = vsel %vm1122, 1.0, 0.0
    %v1131 = vsel %vm1123, 1.0, 0.0
    %v1132 = vsel %vm1124, 1.0, 0.0
    %v1133 = vsel %vm1125, 1.0, 0.0
    %v1134 = vsel %vm1126, 1.0, 0.0
    %v1135 = vsel %vm1127, 1.0, 0.0
    %v1136 = vsel %vm1128, 1.0, 0.0
    %1137 = vmatpush.msra.mxu0 0.0
    %1138 = vmatpush.msra.mxu0 0.0
    %1139 = vmatpush.msra.mxu0 0.0
    %1140 = vmatpush.msra.mxu0 0.0
    %1141 = vmatpush.msra.mxu0 0.0
    %1142 = vmatpush.msra.mxu0 0.0
    %1143 = vmatpush.msra.mxu0 0.0
    %1144 = vmatpush.msra.mxu0 0.0
    %1145 = vmatpush.msra.mxu0 %v1136
    %1146 = vmatpush.msra.mxu0 %v1135
    %1147 = vmatpush.msra.mxu0 %v1134
    %1148 = vmatpush.msra.mxu0 %v1133
    %1149 = vmatpush.msra.mxu0 %v1132
    %1150 = vmatpush.msra.mxu0 %v1131
    %1151 = vmatpush.msra.mxu0 %v1130
    %1152 = vmatpush.msra.mxu0 %v1129
    %1153 = vmatmul.f32.gmra.mxu0 %v504
    %v1154 = vpop.f32.mrf.mxu0
    %v1155 = vadd.f32 %v471, %v1154
    %1156 = vmatmul.f32.gmra.mxu0 %v507
    %v1157 = vpop.f32.mrf.mxu0
    %v1158 = vadd.f32 %v476, %v1157
    %1159 = vdwg.mxu0
    %v1160 = vmul.f32 %v1085, 0.95
    %v1161 = vmul.f32 %v1086, 0.95
    %v1162 = vadd.f32 %v1160, %v1155
    %v1163 = vadd.f32 %v1161, %v1158
    %v1164 = vsub.f32 %v1162, %v1089
    %v1165 = vsub.f32 %v1163, %v1090
    %vm1166 = vcmp.gt.f32.partialorder %v1164, 1.0
    %vm1167 = vcmp.gt.f32.partialorder %v1165, 1.0
    %v1168 = vsel %vm1166, 1.0, 0.0
    %v1169 = vsel %vm1167, 1.0, 0.0
    %s1170 = scalar_lea.vmem %s5, 128
    %1171 = vst.msk [vmem:[%s1170] sm:$0xff] %vm538, %v1168
    %1172 = vst.msk [vmem:[%s1170 + $0x8] sm:$0x3] %vm540, %v1169
    %s1173 = scalar_lea.vmem %s6, 128
    %1174 = vst.msk [vmem:[%s1173] sm:$0xff] %vm538, %v1164
    %1175 = vst.msk [vmem:[%s1173 + $0x8] sm:$0x3] %vm540, %v1165
    %v1176 = vmul.f32 %v1113, 0.95
    %v1177 = vmul.f32 %v1114, 0.95
    %v1178 = vmul.f32 %v1115, 0.95
    %v1179 = vmul.f32 %v1116, 0.95
    %v1180 = vmul.f32 %v1117, 0.95
    %v1181 = vmul.f32 %v1118, 0.95
    %v1182 = vmul.f32 %v1119, 0.95
    %v1183 = vmul.f32 %v1120, 0.95
    %v1184 = vadd.f32 %v1176, %v445
    %v1185 = vadd.f32 %v1177, %v448
    %v1186 = vadd.f32 %v1178, %v451
    %v1187 = vadd.f32 %v1179, %v454
    %v1188 = vadd.f32 %v1180, %v457
    %v1189 = vadd.f32 %v1181, %v460
    %v1190 = vadd.f32 %v1182, %v463
    %v1191 = vadd.f32 %v1183, %v466
    %v1192 = vsub.f32 %v1184, %v1129
    %v1193 = vsub.f32 %v1185, %v1130
    %v1194 = vsub.f32 %v1186, %v1131
    %v1195 = vsub.f32 %v1187, %v1132
    %v1196 = vsub.f32 %v1188, %v1133
    %v1197 = vsub.f32 %v1189, %v1134
    %v1198 = vsub.f32 %v1190, %v1135
    %v1199 = vsub.f32 %v1191, %v1136
    %vm1200 = vcmp.gt.f32.partialorder %v1192, 1.0
    %vm1201 = vcmp.gt.f32.partialorder %v1193, 1.0
    %vm1202 = vcmp.gt.f32.partialorder %v1194, 1.0
    %vm1203 = vcmp.gt.f32.partialorder %v1195, 1.0
    %vm1204 = vcmp.gt.f32.partialorder %v1196, 1.0
    %vm1205 = vcmp.gt.f32.partialorder %v1197, 1.0
    %vm1206 = vcmp.gt.f32.partialorder %v1198, 1.0
    %vm1207 = vcmp.gt.f32.partialorder %v1199, 1.0
    %v1208 = vsel %vm1200, 1.0, 0.0
    %v1209 = vsel %vm1201, 1.0, 0.0
    %v1210 = vsel %vm1202, 1.0, 0.0
    %v1211 = vsel %vm1203, 1.0, 0.0
    %v1212 = vsel %vm1204, 1.0, 0.0
    %v1213 = vsel %vm1205, 1.0, 0.0
    %v1214 = vsel %vm1206, 1.0, 0.0
    %v1215 = vsel %vm1207, 1.0, 0.0
    %1216 = vmatpush.msra.mxu0 0.0
    %1217 = vmatpush.msra.mxu0 0.0
    %1218 = vmatpush.msra.mxu0 0.0
    %1219 = vmatpush.msra.mxu0 0.0
    %1220 = vmatpush.msra.mxu0 0.0
    %1221 = vmatpush.msra.mxu0 0.0
    %1222 = vmatpush.msra.mxu0 0.0
    %1223 = vmatpush.msra.mxu0 0.0
    %1224 = vmatpush.msra.mxu0 %v1215
    %1225 = vmatpush.msra.mxu0 %v1214
    %1226 = vmatpush.msra.mxu0 %v1213
    %1227 = vmatpush.msra.mxu0 %v1212
    %1228 = vmatpush.msra.mxu0 %v1211
    %1229 = vmatpush.msra.mxu0 %v1210
    %1230 = vmatpush.msra.mxu0 %v1209
    %1231 = vmatpush.msra.mxu0 %v1208
    %1232 = vmatmul.f32.gmra.mxu0 %v504
    %v1233 = vpop.f32.mrf.mxu0
    %v1234 = vadd.f32 %v471, %v1233
    %1235 = vmatmul.f32.gmra.mxu0 %v507
    %v1236 = vpop.f32.mrf.mxu0
    %v1237 = vadd.f32 %v476, %v1236
    %1238 = vdwg.mxu0
    %v1239 = vmul.f32 %v1164, 0.95
    %v1240 = vmul.f32 %v1165, 0.95
    %v1241 = vadd.f32 %v1239, %v1234
    %v1242 = vadd.f32 %v1240, %v1237
    %v1243 = vsub.f32 %v1241, %v1168
    %v1244 = vsub.f32 %v1242, %v1169
    %vm1245 = vcmp.gt.f32.partialorder %v1243, 1.0
    %vm1246 = vcmp.gt.f32.partialorder %v1244, 1.0
    %v1247 = vsel %vm1245, 1.0, 0.0
    %v1248 = vsel %vm1246, 1.0, 0.0
    %s1249 = scalar_lea.vmem %s5, 144
    %1250 = vst.msk [vmem:[%s1249] sm:$0xff] %vm538, %v1247
    %1251 = vst.msk [vmem:[%s1249 + $0x8] sm:$0x3] %vm540, %v1248
    %s1252 = scalar_lea.vmem %s6, 144
    %1253 = vst.msk [vmem:[%s1252] sm:$0xff] %vm538, %v1243
    %1254 = vst.msk [vmem:[%s1252 + $0x8] sm:$0x3] %vm540, %v1244
    %v1255 = vmul.f32 %v1192, 0.95
    %v1256 = vmul.f32 %v1193, 0.95
    %v1257 = vmul.f32 %v1194, 0.95
    %v1258 = vmul.f32 %v1195, 0.95
    %v1259 = vmul.f32 %v1196, 0.95
    %v1260 = vmul.f32 %v1197, 0.95
    %v1261 = vmul.f32 %v1198, 0.95
    %v1262 = vmul.f32 %v1199, 0.95
    %v1263 = vadd.f32 %v1255, %v445
    %v1264 = vadd.f32 %v1256, %v448
    %v1265 = vadd.f32 %v1257, %v451
    %v1266 = vadd.f32 %v1258, %v454
    %v1267 = vadd.f32 %v1259, %v457
    %v1268 = vadd.f32 %v1260, %v460
    %v1269 = vadd.f32 %v1261, %v463
    %v1270 = vadd.f32 %v1262, %v466
    %v1271 = vsub.f32 %v1263, %v1208
    %v1272 = vsub.f32 %v1264, %v1209
    %v1273 = vsub.f32 %v1265, %v1210
    %v1274 = vsub.f32 %v1266, %v1211
    %v1275 = vsub.f32 %v1267, %v1212
    %v1276 = vsub.f32 %v1268, %v1213
    %v1277 = vsub.f32 %v1269, %v1214
    %v1278 = vsub.f32 %v1270, %v1215
    %vm1279 = vcmp.gt.f32.partialorder %v1271, 1.0
    %vm1280 = vcmp.gt.f32.partialorder %v1272, 1.0
    %vm1281 = vcmp.gt.f32.partialorder %v1273, 1.0
    %vm1282 = vcmp.gt.f32.partialorder %v1274, 1.0
    %vm1283 = vcmp.gt.f32.partialorder %v1275, 1.0
    %vm1284 = vcmp.gt.f32.partialorder %v1276, 1.0
    %vm1285 = vcmp.gt.f32.partialorder %v1277, 1.0
    %vm1286 = vcmp.gt.f32.partialorder %v1278, 1.0
    %v1287 = vsel %vm1279, 1.0, 0.0
    %v1288 = vsel %vm1280, 1.0, 0.0
    %v1289 = vsel %vm1281, 1.0, 0.0
    %v1290 = vsel %vm1282, 1.0, 0.0
    %v1291 = vsel %vm1283, 1.0, 0.0
    %v1292 = vsel %vm1284, 1.0, 0.0
    %v1293 = vsel %vm1285, 1.0, 0.0
    %v1294 = vsel %vm1286, 1.0, 0.0
    %1295 = vmatpush.msra.mxu0 0.0
    %1296 = vmatpush.msra.mxu0 0.0
    %1297 = vmatpush.msra.mxu0 0.0
    %1298 = vmatpush.msra.mxu0 0.0
    %1299 = vmatpush.msra.mxu0 0.0
    %1300 = vmatpush.msra.mxu0 0.0
    %1301 = vmatpush.msra.mxu0 0.0
    %1302 = vmatpush.msra.mxu0 0.0
    %1303 = vmatpush.msra.mxu0 %v1294
    %1304 = vmatpush.msra.mxu0 %v1293
    %1305 = vmatpush.msra.mxu0 %v1292
    %1306 = vmatpush.msra.mxu0 %v1291
    %1307 = vmatpush.msra.mxu0 %v1290
    %1308 = vmatpush.msra.mxu0 %v1289
    %1309 = vmatpush.msra.mxu0 %v1288
    %1310 = vmatpush.msra.mxu0 %v1287
    %1311 = vmatmul.f32.gmra.mxu0 %v504
    %v1312 = vpop.f32.mrf.mxu0
    %v1313 = vadd.f32 %v471, %v1312
    %1314 = vmatmul.f32.gmra.mxu0 %v507
    %v1315 = vpop.f32.mrf.mxu0
    %v1316 = vadd.f32 %v476, %v1315
    %1317 = vdwg.mxu0
    %v1318 = vmul.f32 %v1243, 0.95
    %v1319 = vmul.f32 %v1244, 0.95
    %v1320 = vadd.f32 %v1318, %v1313
    %v1321 = vadd.f32 %v1319, %v1316
    %v1322 = vsub.f32 %v1320, %v1247
    %v1323 = vsub.f32 %v1321, %v1248
    %vm1324 = vcmp.gt.f32.partialorder %v1322, 1.0
    %vm1325 = vcmp.gt.f32.partialorder %v1323, 1.0
    %v1326 = vsel %vm1324, 1.0, 0.0
    %v1327 = vsel %vm1325, 1.0, 0.0
    %s1328 = scalar_lea.vmem %s5, 160
    %1329 = vst.msk [vmem:[%s1328] sm:$0xff] %vm538, %v1326
    %1330 = vst.msk [vmem:[%s1328 + $0x8] sm:$0x3] %vm540, %v1327
    %s1331 = scalar_lea.vmem %s6, 160
    %1332 = vst.msk [vmem:[%s1331] sm:$0xff] %vm538, %v1322
    %1333 = vst.msk [vmem:[%s1331 + $0x8] sm:$0x3] %vm540, %v1323
    %v1334 = vmul.f32 %v1271, 0.95
    %v1335 = vmul.f32 %v1272, 0.95
    %v1336 = vmul.f32 %v1273, 0.95
    %v1337 = vmul.f32 %v1274, 0.95
    %v1338 = vmul.f32 %v1275, 0.95
    %v1339 = vmul.f32 %v1276, 0.95
    %v1340 = vmul.f32 %v1277, 0.95
    %v1341 = vmul.f32 %v1278, 0.95
    %v1342 = vadd.f32 %v1334, %v445
    %v1343 = vadd.f32 %v1335, %v448
    %v1344 = vadd.f32 %v1336, %v451
    %v1345 = vadd.f32 %v1337, %v454
    %v1346 = vadd.f32 %v1338, %v457
    %v1347 = vadd.f32 %v1339, %v460
    %v1348 = vadd.f32 %v1340, %v463
    %v1349 = vadd.f32 %v1341, %v466
    %v1350 = vsub.f32 %v1342, %v1287
    %v1351 = vsub.f32 %v1343, %v1288
    %v1352 = vsub.f32 %v1344, %v1289
    %v1353 = vsub.f32 %v1345, %v1290
    %v1354 = vsub.f32 %v1346, %v1291
    %v1355 = vsub.f32 %v1347, %v1292
    %v1356 = vsub.f32 %v1348, %v1293
    %v1357 = vsub.f32 %v1349, %v1294
    %vm1358 = vcmp.gt.f32.partialorder %v1350, 1.0
    %vm1359 = vcmp.gt.f32.partialorder %v1351, 1.0
    %vm1360 = vcmp.gt.f32.partialorder %v1352, 1.0
    %vm1361 = vcmp.gt.f32.partialorder %v1353, 1.0
    %vm1362 = vcmp.gt.f32.partialorder %v1354, 1.0
    %vm1363 = vcmp.gt.f32.partialorder %v1355, 1.0
    %vm1364 = vcmp.gt.f32.partialorder %v1356, 1.0
    %vm1365 = vcmp.gt.f32.partialorder %v1357, 1.0
    %v1366 = vsel %vm1358, 1.0, 0.0
    %v1367 = vsel %vm1359, 1.0, 0.0
    %v1368 = vsel %vm1360, 1.0, 0.0
    %v1369 = vsel %vm1361, 1.0, 0.0
    %v1370 = vsel %vm1362, 1.0, 0.0
    %v1371 = vsel %vm1363, 1.0, 0.0
    %v1372 = vsel %vm1364, 1.0, 0.0
    %v1373 = vsel %vm1365, 1.0, 0.0
    %1374 = vmatpush.msra.mxu0 0.0
    %1375 = vmatpush.msra.mxu0 0.0
    %1376 = vmatpush.msra.mxu0 0.0
    %1377 = vmatpush.msra.mxu0 0.0
    %1378 = vmatpush.msra.mxu0 0.0
    %1379 = vmatpush.msra.mxu0 0.0
    %1380 = vmatpush.msra.mxu0 0.0
    %1381 = vmatpush.msra.mxu0 0.0
    %1382 = vmatpush.msra.mxu0 %v1373
    %1383 = vmatpush.msra.mxu0 %v1372
    %1384 = vmatpush.msra.mxu0 %v1371
    %1385 = vmatpush.msra.mxu0 %v1370
    %1386 = vmatpush.msra.mxu0 %v1369
    %1387 = vmatpush.msra.mxu0 %v1368
    %1388 = vmatpush.msra.mxu0 %v1367
    %1389 = vmatpush.msra.mxu0 %v1366
    %1390 = vmatmul.f32.gmra.mxu0 %v504
    %v1391 = vpop.f32.mrf.mxu0
    %v1392 = vadd.f32 %v471, %v1391
    %1393 = vmatmul.f32.gmra.mxu0 %v507
    %v1394 = vpop.f32.mrf.mxu0
    %v1395 = vadd.f32 %v476, %v1394
    %1396 = vdwg.mxu0
    %v1397 = vmul.f32 %v1322, 0.95
    %v1398 = vmul.f32 %v1323, 0.95
    %v1399 = vadd.f32 %v1397, %v1392
    %v1400 = vadd.f32 %v1398, %v1395
    %v1401 = vsub.f32 %v1399, %v1326
    %v1402 = vsub.f32 %v1400, %v1327
    %vm1403 = vcmp.gt.f32.partialorder %v1401, 1.0
    %vm1404 = vcmp.gt.f32.partialorder %v1402, 1.0
    %v1405 = vsel %vm1403, 1.0, 0.0
    %v1406 = vsel %vm1404, 1.0, 0.0
    %s1407 = scalar_lea.vmem %s5, 176
    %1408 = vst.msk [vmem:[%s1407] sm:$0xff] %vm538, %v1405
    %1409 = vst.msk [vmem:[%s1407 + $0x8] sm:$0x3] %vm540, %v1406
    %s1410 = scalar_lea.vmem %s6, 176
    %1411 = vst.msk [vmem:[%s1410] sm:$0xff] %vm538, %v1401
    %1412 = vst.msk [vmem:[%s1410 + $0x8] sm:$0x3] %vm540, %v1402
    %v1413 = vmul.f32 %v1350, 0.95
    %v1414 = vmul.f32 %v1351, 0.95
    %v1415 = vmul.f32 %v1352, 0.95
    %v1416 = vmul.f32 %v1353, 0.95
    %v1417 = vmul.f32 %v1354, 0.95
    %v1418 = vmul.f32 %v1355, 0.95
    %v1419 = vmul.f32 %v1356, 0.95
    %v1420 = vmul.f32 %v1357, 0.95
    %v1421 = vadd.f32 %v1413, %v445
    %v1422 = vadd.f32 %v1414, %v448
    %v1423 = vadd.f32 %v1415, %v451
    %v1424 = vadd.f32 %v1416, %v454
    %v1425 = vadd.f32 %v1417, %v457
    %v1426 = vadd.f32 %v1418, %v460
    %v1427 = vadd.f32 %v1419, %v463
    %v1428 = vadd.f32 %v1420, %v466
    %v1429 = vsub.f32 %v1421, %v1366
    %v1430 = vsub.f32 %v1422, %v1367
    %v1431 = vsub.f32 %v1423, %v1368
    %v1432 = vsub.f32 %v1424, %v1369
    %v1433 = vsub.f32 %v1425, %v1370
    %v1434 = vsub.f32 %v1426, %v1371
    %v1435 = vsub.f32 %v1427, %v1372
    %v1436 = vsub.f32 %v1428, %v1373
    %vm1437 = vcmp.gt.f32.partialorder %v1429, 1.0
    %vm1438 = vcmp.gt.f32.partialorder %v1430, 1.0
    %vm1439 = vcmp.gt.f32.partialorder %v1431, 1.0
    %vm1440 = vcmp.gt.f32.partialorder %v1432, 1.0
    %vm1441 = vcmp.gt.f32.partialorder %v1433, 1.0
    %vm1442 = vcmp.gt.f32.partialorder %v1434, 1.0
    %vm1443 = vcmp.gt.f32.partialorder %v1435, 1.0
    %vm1444 = vcmp.gt.f32.partialorder %v1436, 1.0
    %v1445 = vsel %vm1437, 1.0, 0.0
    %v1446 = vsel %vm1438, 1.0, 0.0
    %v1447 = vsel %vm1439, 1.0, 0.0
    %v1448 = vsel %vm1440, 1.0, 0.0
    %v1449 = vsel %vm1441, 1.0, 0.0
    %v1450 = vsel %vm1442, 1.0, 0.0
    %v1451 = vsel %vm1443, 1.0, 0.0
    %v1452 = vsel %vm1444, 1.0, 0.0
    %1453 = vmatpush.msra.mxu0 0.0
    %1454 = vmatpush.msra.mxu0 0.0
    %1455 = vmatpush.msra.mxu0 0.0
    %1456 = vmatpush.msra.mxu0 0.0
    %1457 = vmatpush.msra.mxu0 0.0
    %1458 = vmatpush.msra.mxu0 0.0
    %1459 = vmatpush.msra.mxu0 0.0
    %1460 = vmatpush.msra.mxu0 0.0
    %1461 = vmatpush.msra.mxu0 %v1452
    %1462 = vmatpush.msra.mxu0 %v1451
    %1463 = vmatpush.msra.mxu0 %v1450
    %1464 = vmatpush.msra.mxu0 %v1449
    %1465 = vmatpush.msra.mxu0 %v1448
    %1466 = vmatpush.msra.mxu0 %v1447
    %1467 = vmatpush.msra.mxu0 %v1446
    %1468 = vmatpush.msra.mxu0 %v1445
    %1469 = vmatmul.f32.gmra.mxu0 %v504
    %v1470 = vpop.f32.mrf.mxu0
    %v1471 = vadd.f32 %v471, %v1470
    %1472 = vmatmul.f32.gmra.mxu0 %v507
    %v1473 = vpop.f32.mrf.mxu0
    %v1474 = vadd.f32 %v476, %v1473
    %1475 = vdwg.mxu0
    %v1476 = vmul.f32 %v1401, 0.95
    %v1477 = vmul.f32 %v1402, 0.95
    %v1478 = vadd.f32 %v1476, %v1471
    %v1479 = vadd.f32 %v1477, %v1474
    %v1480 = vsub.f32 %v1478, %v1405
    %v1481 = vsub.f32 %v1479, %v1406
    %vm1482 = vcmp.gt.f32.partialorder %v1480, 1.0
    %vm1483 = vcmp.gt.f32.partialorder %v1481, 1.0
    %v1484 = vsel %vm1482, 1.0, 0.0
    %v1485 = vsel %vm1483, 1.0, 0.0
    %s1486 = scalar_lea.vmem %s5, 192
    %1487 = vst.msk [vmem:[%s1486] sm:$0xff] %vm538, %v1484
    %1488 = vst.msk [vmem:[%s1486 + $0x8] sm:$0x3] %vm540, %v1485
    %s1489 = scalar_lea.vmem %s6, 192
    %1490 = vst.msk [vmem:[%s1489] sm:$0xff] %vm538, %v1480
    %1491 = vst.msk [vmem:[%s1489 + $0x8] sm:$0x3] %vm540, %v1481
    %v1492 = vmul.f32 %v1429, 0.95
    %v1493 = vmul.f32 %v1430, 0.95
    %v1494 = vmul.f32 %v1431, 0.95
    %v1495 = vmul.f32 %v1432, 0.95
    %v1496 = vmul.f32 %v1433, 0.95
    %v1497 = vmul.f32 %v1434, 0.95
    %v1498 = vmul.f32 %v1435, 0.95
    %v1499 = vmul.f32 %v1436, 0.95
    %v1500 = vadd.f32 %v1492, %v445
    %v1501 = vadd.f32 %v1493, %v448
    %v1502 = vadd.f32 %v1494, %v451
    %v1503 = vadd.f32 %v1495, %v454
    %v1504 = vadd.f32 %v1496, %v457
    %v1505 = vadd.f32 %v1497, %v460
    %v1506 = vadd.f32 %v1498, %v463
    %v1507 = vadd.f32 %v1499, %v466
    %v1508 = vsub.f32 %v1500, %v1445
    %v1509 = vsub.f32 %v1501, %v1446
    %v1510 = vsub.f32 %v1502, %v1447
    %v1511 = vsub.f32 %v1503, %v1448
    %v1512 = vsub.f32 %v1504, %v1449
    %v1513 = vsub.f32 %v1505, %v1450
    %v1514 = vsub.f32 %v1506, %v1451
    %v1515 = vsub.f32 %v1507, %v1452
    %vm1516 = vcmp.gt.f32.partialorder %v1508, 1.0
    %vm1517 = vcmp.gt.f32.partialorder %v1509, 1.0
    %vm1518 = vcmp.gt.f32.partialorder %v1510, 1.0
    %vm1519 = vcmp.gt.f32.partialorder %v1511, 1.0
    %vm1520 = vcmp.gt.f32.partialorder %v1512, 1.0
    %vm1521 = vcmp.gt.f32.partialorder %v1513, 1.0
    %vm1522 = vcmp.gt.f32.partialorder %v1514, 1.0
    %vm1523 = vcmp.gt.f32.partialorder %v1515, 1.0
    %v1524 = vsel %vm1516, 1.0, 0.0
    %v1525 = vsel %vm1517, 1.0, 0.0
    %v1526 = vsel %vm1518, 1.0, 0.0
    %v1527 = vsel %vm1519, 1.0, 0.0
    %v1528 = vsel %vm1520, 1.0, 0.0
    %v1529 = vsel %vm1521, 1.0, 0.0
    %v1530 = vsel %vm1522, 1.0, 0.0
    %v1531 = vsel %vm1523, 1.0, 0.0
    %1532 = vmatpush.msra.mxu0 0.0
    %1533 = vmatpush.msra.mxu0 0.0
    %1534 = vmatpush.msra.mxu0 0.0
    %1535 = vmatpush.msra.mxu0 0.0
    %1536 = vmatpush.msra.mxu0 0.0
    %1537 = vmatpush.msra.mxu0 0.0
    %1538 = vmatpush.msra.mxu0 0.0
    %1539 = vmatpush.msra.mxu0 0.0
    %1540 = vmatpush.msra.mxu0 %v1531
    %1541 = vmatpush.msra.mxu0 %v1530
    %1542 = vmatpush.msra.mxu0 %v1529
    %1543 = vmatpush.msra.mxu0 %v1528
    %1544 = vmatpush.msra.mxu0 %v1527
    %1545 = vmatpush.msra.mxu0 %v1526
    %1546 = vmatpush.msra.mxu0 %v1525
    %1547 = vmatpush.msra.mxu0 %v1524
    %1548 = vmatmul.f32.gmra.mxu0 %v504
    %v1549 = vpop.f32.mrf.mxu0
    %v1550 = vadd.f32 %v471, %v1549
    %1551 = vmatmul.f32.gmra.mxu0 %v507
    %v1552 = vpop.f32.mrf.mxu0
    %v1553 = vadd.f32 %v476, %v1552
    %1554 = vdwg.mxu0
    %v1555 = vmul.f32 %v1480, 0.95
    %v1556 = vmul.f32 %v1481, 0.95
    %v1557 = vadd.f32 %v1555, %v1550
    %v1558 = vadd.f32 %v1556, %v1553
    %v1559 = vsub.f32 %v1557, %v1484
    %v1560 = vsub.f32 %v1558, %v1485
    %vm1561 = vcmp.gt.f32.partialorder %v1559, 1.0
    %vm1562 = vcmp.gt.f32.partialorder %v1560, 1.0
    %v1563 = vsel %vm1561, 1.0, 0.0
    %v1564 = vsel %vm1562, 1.0, 0.0
    %s1565 = scalar_lea.vmem %s5, 208
    %1566 = vst.msk [vmem:[%s1565] sm:$0xff] %vm538, %v1563
    %1567 = vst.msk [vmem:[%s1565 + $0x8] sm:$0x3] %vm540, %v1564
    %s1568 = scalar_lea.vmem %s6, 208
    %1569 = vst.msk [vmem:[%s1568] sm:$0xff] %vm538, %v1559
    %1570 = vst.msk [vmem:[%s1568 + $0x8] sm:$0x3] %vm540, %v1560
    %v1571 = vmul.f32 %v1508, 0.95
    %v1572 = vmul.f32 %v1509, 0.95
    %v1573 = vmul.f32 %v1510, 0.95
    %v1574 = vmul.f32 %v1511, 0.95
    %v1575 = vmul.f32 %v1512, 0.95
    %v1576 = vmul.f32 %v1513, 0.95
    %v1577 = vmul.f32 %v1514, 0.95
    %v1578 = vmul.f32 %v1515, 0.95
    %v1579 = vadd.f32 %v1571, %v445
    %v1580 = vadd.f32 %v1572, %v448
    %v1581 = vadd.f32 %v1573, %v451
    %v1582 = vadd.f32 %v1574, %v454
    %v1583 = vadd.f32 %v1575, %v457
    %v1584 = vadd.f32 %v1576, %v460
    %v1585 = vadd.f32 %v1577, %v463
    %v1586 = vadd.f32 %v1578, %v466
    %v1587 = vsub.f32 %v1579, %v1524
    %v1588 = vsub.f32 %v1580, %v1525
    %v1589 = vsub.f32 %v1581, %v1526
    %v1590 = vsub.f32 %v1582, %v1527
    %v1591 = vsub.f32 %v1583, %v1528
    %v1592 = vsub.f32 %v1584, %v1529
    %v1593 = vsub.f32 %v1585, %v1530
    %v1594 = vsub.f32 %v1586, %v1531
    %vm1595 = vcmp.gt.f32.partialorder %v1587, 1.0
    %vm1596 = vcmp.gt.f32.partialorder %v1588, 1.0
    %vm1597 = vcmp.gt.f32.partialorder %v1589, 1.0
    %vm1598 = vcmp.gt.f32.partialorder %v1590, 1.0
    %vm1599 = vcmp.gt.f32.partialorder %v1591, 1.0
    %vm1600 = vcmp.gt.f32.partialorder %v1592, 1.0
    %vm1601 = vcmp.gt.f32.partialorder %v1593, 1.0
    %vm1602 = vcmp.gt.f32.partialorder %v1594, 1.0
    %v1603 = vsel %vm1595, 1.0, 0.0
    %v1604 = vsel %vm1596, 1.0, 0.0
    %v1605 = vsel %vm1597, 1.0, 0.0
    %v1606 = vsel %vm1598, 1.0, 0.0
    %v1607 = vsel %vm1599, 1.0, 0.0
    %v1608 = vsel %vm1600, 1.0, 0.0
    %v1609 = vsel %vm1601, 1.0, 0.0
    %v1610 = vsel %vm1602, 1.0, 0.0
    %1611 = vmatpush.msra.mxu0 0.0
    %1612 = vmatpush.msra.mxu0 0.0
    %1613 = vmatpush.msra.mxu0 0.0
    %1614 = vmatpush.msra.mxu0 0.0
    %1615 = vmatpush.msra.mxu0 0.0
    %1616 = vmatpush.msra.mxu0 0.0
    %1617 = vmatpush.msra.mxu0 0.0
    %1618 = vmatpush.msra.mxu0 0.0
    %1619 = vmatpush.msra.mxu0 %v1610
    %1620 = vmatpush.msra.mxu0 %v1609
    %1621 = vmatpush.msra.mxu0 %v1608
    %1622 = vmatpush.msra.mxu0 %v1607
    %1623 = vmatpush.msra.mxu0 %v1606
    %1624 = vmatpush.msra.mxu0 %v1605
    %1625 = vmatpush.msra.mxu0 %v1604
    %1626 = vmatpush.msra.mxu0 %v1603
    %1627 = vmatmul.f32.gmra.mxu0 %v504
    %v1628 = vpop.f32.mrf.mxu0
    %v1629 = vadd.f32 %v471, %v1628
    %1630 = vmatmul.f32.gmra.mxu0 %v507
    %v1631 = vpop.f32.mrf.mxu0
    %v1632 = vadd.f32 %v476, %v1631
    %1633 = vdwg.mxu0
    %v1634 = vmul.f32 %v1559, 0.95
    %v1635 = vmul.f32 %v1560, 0.95
    %v1636 = vadd.f32 %v1634, %v1629
    %v1637 = vadd.f32 %v1635, %v1632
    %v1638 = vsub.f32 %v1636, %v1563
    %v1639 = vsub.f32 %v1637, %v1564
    %vm1640 = vcmp.gt.f32.partialorder %v1638, 1.0
    %vm1641 = vcmp.gt.f32.partialorder %v1639, 1.0
    %v1642 = vsel %vm1640, 1.0, 0.0
    %v1643 = vsel %vm1641, 1.0, 0.0
    %s1644 = scalar_lea.vmem %s5, 224
    %1645 = vst.msk [vmem:[%s1644] sm:$0xff] %vm538, %v1642
    %1646 = vst.msk [vmem:[%s1644 + $0x8] sm:$0x3] %vm540, %v1643
    %s1647 = scalar_lea.vmem %s6, 224
    %1648 = vst.msk [vmem:[%s1647] sm:$0xff] %vm538, %v1638
    %1649 = vst.msk [vmem:[%s1647 + $0x8] sm:$0x3] %vm540, %v1639
    %v1650 = vmul.f32 %v1587, 0.95
    %v1651 = vmul.f32 %v1588, 0.95
    %v1652 = vmul.f32 %v1589, 0.95
    %v1653 = vmul.f32 %v1590, 0.95
    %v1654 = vmul.f32 %v1591, 0.95
    %v1655 = vmul.f32 %v1592, 0.95
    %v1656 = vmul.f32 %v1593, 0.95
    %v1657 = vmul.f32 %v1594, 0.95
    %v1658 = vadd.f32 %v1650, %v445
    %v1659 = vadd.f32 %v1651, %v448
    %v1660 = vadd.f32 %v1652, %v451
    %v1661 = vadd.f32 %v1653, %v454
    %v1662 = vadd.f32 %v1654, %v457
    %v1663 = vadd.f32 %v1655, %v460
    %v1664 = vadd.f32 %v1656, %v463
    %v1665 = vadd.f32 %v1657, %v466
    %v1666 = vsub.f32 %v1658, %v1603
    %v1667 = vsub.f32 %v1659, %v1604
    %v1668 = vsub.f32 %v1660, %v1605
    %v1669 = vsub.f32 %v1661, %v1606
    %v1670 = vsub.f32 %v1662, %v1607
    %v1671 = vsub.f32 %v1663, %v1608
    %v1672 = vsub.f32 %v1664, %v1609
    %v1673 = vsub.f32 %v1665, %v1610
    %vm1674 = vcmp.gt.f32.partialorder %v1666, 1.0
    %vm1675 = vcmp.gt.f32.partialorder %v1667, 1.0
    %vm1676 = vcmp.gt.f32.partialorder %v1668, 1.0
    %vm1677 = vcmp.gt.f32.partialorder %v1669, 1.0
    %vm1678 = vcmp.gt.f32.partialorder %v1670, 1.0
    %vm1679 = vcmp.gt.f32.partialorder %v1671, 1.0
    %vm1680 = vcmp.gt.f32.partialorder %v1672, 1.0
    %vm1681 = vcmp.gt.f32.partialorder %v1673, 1.0
    %v1682 = vsel %vm1674, 1.0, 0.0
    %v1683 = vsel %vm1675, 1.0, 0.0
    %v1684 = vsel %vm1676, 1.0, 0.0
    %v1685 = vsel %vm1677, 1.0, 0.0
    %v1686 = vsel %vm1678, 1.0, 0.0
    %v1687 = vsel %vm1679, 1.0, 0.0
    %v1688 = vsel %vm1680, 1.0, 0.0
    %v1689 = vsel %vm1681, 1.0, 0.0
    %1690 = vmatpush.msra.mxu0 0.0
    %1691 = vmatpush.msra.mxu0 0.0
    %1692 = vmatpush.msra.mxu0 0.0
    %1693 = vmatpush.msra.mxu0 0.0
    %1694 = vmatpush.msra.mxu0 0.0
    %1695 = vmatpush.msra.mxu0 0.0
    %1696 = vmatpush.msra.mxu0 0.0
    %1697 = vmatpush.msra.mxu0 0.0
    %1698 = vmatpush.msra.mxu0 %v1689
    %1699 = vmatpush.msra.mxu0 %v1688
    %1700 = vmatpush.msra.mxu0 %v1687
    %1701 = vmatpush.msra.mxu0 %v1686
    %1702 = vmatpush.msra.mxu0 %v1685
    %1703 = vmatpush.msra.mxu0 %v1684
    %1704 = vmatpush.msra.mxu0 %v1683
    %1705 = vmatpush.msra.mxu0 %v1682
    %1706 = vmatmul.f32.gmra.mxu0 %v504
    %v1707 = vpop.f32.mrf.mxu0
    %v1708 = vadd.f32 %v471, %v1707
    %1709 = vmatmul.f32.gmra.mxu0 %v507
    %v1710 = vpop.f32.mrf.mxu0
    %v1711 = vadd.f32 %v476, %v1710
    %1712 = vdwg.mxu0
    %v1713 = vmul.f32 %v1638, 0.95
    %v1714 = vmul.f32 %v1639, 0.95
    %v1715 = vadd.f32 %v1713, %v1708
    %v1716 = vadd.f32 %v1714, %v1711
    %v1717 = vsub.f32 %v1715, %v1642
    %v1718 = vsub.f32 %v1716, %v1643
    %vm1719 = vcmp.gt.f32.partialorder %v1717, 1.0
    %vm1720 = vcmp.gt.f32.partialorder %v1718, 1.0
    %v1721 = vsel %vm1719, 1.0, 0.0
    %v1722 = vsel %vm1720, 1.0, 0.0
    %s1723 = scalar_lea.vmem %s5, 240
    %1724 = vst.msk [vmem:[%s1723] sm:$0xff] %vm538, %v1721
    %1725 = vst.msk [vmem:[%s1723 + $0x8] sm:$0x3] %vm540, %v1722
    %s1726 = scalar_lea.vmem %s6, 240
    %1727 = vst.msk [vmem:[%s1726] sm:$0xff] %vm538, %v1717
    %1728 = vst.msk [vmem:[%s1726 + $0x8] sm:$0x3] %vm540, %v1718
    %v1729 = vmul.f32 %v1666, 0.95
    %v1730 = vmul.f32 %v1667, 0.95
    %v1731 = vmul.f32 %v1668, 0.95
    %v1732 = vmul.f32 %v1669, 0.95
    %v1733 = vmul.f32 %v1670, 0.95
    %v1734 = vmul.f32 %v1671, 0.95
    %v1735 = vmul.f32 %v1672, 0.95
    %v1736 = vmul.f32 %v1673, 0.95
    %v1737 = vadd.f32 %v1729, %v445
    %v1738 = vadd.f32 %v1730, %v448
    %v1739 = vadd.f32 %v1731, %v451
    %v1740 = vadd.f32 %v1732, %v454
    %v1741 = vadd.f32 %v1733, %v457
    %v1742 = vadd.f32 %v1734, %v460
    %v1743 = vadd.f32 %v1735, %v463
    %v1744 = vadd.f32 %v1736, %v466
    %v1745 = vsub.f32 %v1737, %v1682
    %v1746 = vsub.f32 %v1738, %v1683
    %v1747 = vsub.f32 %v1739, %v1684
    %v1748 = vsub.f32 %v1740, %v1685
    %v1749 = vsub.f32 %v1741, %v1686
    %v1750 = vsub.f32 %v1742, %v1687
    %v1751 = vsub.f32 %v1743, %v1688
    %v1752 = vsub.f32 %v1744, %v1689
    %vm1753 = vcmp.gt.f32.partialorder %v1745, 1.0
    %vm1754 = vcmp.gt.f32.partialorder %v1746, 1.0
    %vm1755 = vcmp.gt.f32.partialorder %v1747, 1.0
    %vm1756 = vcmp.gt.f32.partialorder %v1748, 1.0
    %vm1757 = vcmp.gt.f32.partialorder %v1749, 1.0
    %vm1758 = vcmp.gt.f32.partialorder %v1750, 1.0
    %vm1759 = vcmp.gt.f32.partialorder %v1751, 1.0
    %vm1760 = vcmp.gt.f32.partialorder %v1752, 1.0
    %v1761 = vsel %vm1753, 1.0, 0.0
    %v1762 = vsel %vm1754, 1.0, 0.0
    %v1763 = vsel %vm1755, 1.0, 0.0
    %v1764 = vsel %vm1756, 1.0, 0.0
    %v1765 = vsel %vm1757, 1.0, 0.0
    %v1766 = vsel %vm1758, 1.0, 0.0
    %v1767 = vsel %vm1759, 1.0, 0.0
    %v1768 = vsel %vm1760, 1.0, 0.0
    %1769 = vmatpush.msra.mxu0 0.0
    %1770 = vmatpush.msra.mxu0 0.0
    %1771 = vmatpush.msra.mxu0 0.0
    %1772 = vmatpush.msra.mxu0 0.0
    %1773 = vmatpush.msra.mxu0 0.0
    %1774 = vmatpush.msra.mxu0 0.0
    %1775 = vmatpush.msra.mxu0 0.0
    %1776 = vmatpush.msra.mxu0 0.0
    %1777 = vmatpush.msra.mxu0 %v1768
    %1778 = vmatpush.msra.mxu0 %v1767
    %1779 = vmatpush.msra.mxu0 %v1766
    %1780 = vmatpush.msra.mxu0 %v1765
    %1781 = vmatpush.msra.mxu0 %v1764
    %1782 = vmatpush.msra.mxu0 %v1763
    %1783 = vmatpush.msra.mxu0 %v1762
    %1784 = vmatpush.msra.mxu0 %v1761
    %1785 = vmatmul.f32.gmra.mxu0 %v504
    %v1786 = vpop.f32.mrf.mxu0
    %v1787 = vadd.f32 %v471, %v1786
    %1788 = vmatmul.f32.gmra.mxu0 %v507
    %v1789 = vpop.f32.mrf.mxu0
    %v1790 = vadd.f32 %v476, %v1789
    %1791 = vdwg.mxu0
    %v1792 = vmul.f32 %v1717, 0.95
    %v1793 = vmul.f32 %v1718, 0.95
    %v1794 = vadd.f32 %v1792, %v1787
    %v1795 = vadd.f32 %v1793, %v1790
    %v1796 = vsub.f32 %v1794, %v1721
    %v1797 = vsub.f32 %v1795, %v1722
    %vm1798 = vcmp.gt.f32.partialorder %v1796, 1.0
    %vm1799 = vcmp.gt.f32.partialorder %v1797, 1.0
    %v1800 = vsel %vm1798, 1.0, 0.0
    %v1801 = vsel %vm1799, 1.0, 0.0
    %s1802 = scalar_lea.vmem %s5, 256
    %1803 = vst.msk [vmem:[%s1802] sm:$0xff] %vm538, %v1800
    %1804 = vst.msk [vmem:[%s1802 + $0x8] sm:$0x3] %vm540, %v1801
    %s1805 = scalar_lea.vmem %s6, 256
    %1806 = vst.msk [vmem:[%s1805] sm:$0xff] %vm538, %v1796
    %1807 = vst.msk [vmem:[%s1805 + $0x8] sm:$0x3] %vm540, %v1797
    %v1808 = vmul.f32 %v1745, 0.95
    %v1809 = vmul.f32 %v1746, 0.95
    %v1810 = vmul.f32 %v1747, 0.95
    %v1811 = vmul.f32 %v1748, 0.95
    %v1812 = vmul.f32 %v1749, 0.95
    %v1813 = vmul.f32 %v1750, 0.95
    %v1814 = vmul.f32 %v1751, 0.95
    %v1815 = vmul.f32 %v1752, 0.95
    %v1816 = vadd.f32 %v1808, %v445
    %v1817 = vadd.f32 %v1809, %v448
    %v1818 = vadd.f32 %v1810, %v451
    %v1819 = vadd.f32 %v1811, %v454
    %v1820 = vadd.f32 %v1812, %v457
    %v1821 = vadd.f32 %v1813, %v460
    %v1822 = vadd.f32 %v1814, %v463
    %v1823 = vadd.f32 %v1815, %v466
    %v1824 = vsub.f32 %v1816, %v1761
    %v1825 = vsub.f32 %v1817, %v1762
    %v1826 = vsub.f32 %v1818, %v1763
    %v1827 = vsub.f32 %v1819, %v1764
    %v1828 = vsub.f32 %v1820, %v1765
    %v1829 = vsub.f32 %v1821, %v1766
    %v1830 = vsub.f32 %v1822, %v1767
    %v1831 = vsub.f32 %v1823, %v1768
    %vm1832 = vcmp.gt.f32.partialorder %v1824, 1.0
    %vm1833 = vcmp.gt.f32.partialorder %v1825, 1.0
    %vm1834 = vcmp.gt.f32.partialorder %v1826, 1.0
    %vm1835 = vcmp.gt.f32.partialorder %v1827, 1.0
    %vm1836 = vcmp.gt.f32.partialorder %v1828, 1.0
    %vm1837 = vcmp.gt.f32.partialorder %v1829, 1.0
    %vm1838 = vcmp.gt.f32.partialorder %v1830, 1.0
    %vm1839 = vcmp.gt.f32.partialorder %v1831, 1.0
    %v1840 = vsel %vm1832, 1.0, 0.0
    %v1841 = vsel %vm1833, 1.0, 0.0
    %v1842 = vsel %vm1834, 1.0, 0.0
    %v1843 = vsel %vm1835, 1.0, 0.0
    %v1844 = vsel %vm1836, 1.0, 0.0
    %v1845 = vsel %vm1837, 1.0, 0.0
    %v1846 = vsel %vm1838, 1.0, 0.0
    %v1847 = vsel %vm1839, 1.0, 0.0
    %1848 = vmatpush.msra.mxu0 0.0
    %1849 = vmatpush.msra.mxu0 0.0
    %1850 = vmatpush.msra.mxu0 0.0
    %1851 = vmatpush.msra.mxu0 0.0
    %1852 = vmatpush.msra.mxu0 0.0
    %1853 = vmatpush.msra.mxu0 0.0
    %1854 = vmatpush.msra.mxu0 0.0
    %1855 = vmatpush.msra.mxu0 0.0
    %1856 = vmatpush.msra.mxu0 %v1847
    %1857 = vmatpush.msra.mxu0 %v1846
    %1858 = vmatpush.msra.mxu0 %v1845
    %1859 = vmatpush.msra.mxu0 %v1844
    %1860 = vmatpush.msra.mxu0 %v1843
    %1861 = vmatpush.msra.mxu0 %v1842
    %1862 = vmatpush.msra.mxu0 %v1841
    %1863 = vmatpush.msra.mxu0 %v1840
    %1864 = vmatmul.f32.gmra.mxu0 %v504
    %v1865 = vpop.f32.mrf.mxu0
    %v1866 = vadd.f32 %v471, %v1865
    %1867 = vmatmul.f32.gmra.mxu0 %v507
    %v1868 = vpop.f32.mrf.mxu0
    %v1869 = vadd.f32 %v476, %v1868
    %1870 = vdwg.mxu0
    %v1871 = vmul.f32 %v1796, 0.95
    %v1872 = vmul.f32 %v1797, 0.95
    %v1873 = vadd.f32 %v1871, %v1866
    %v1874 = vadd.f32 %v1872, %v1869
    %v1875 = vsub.f32 %v1873, %v1800
    %v1876 = vsub.f32 %v1874, %v1801
    %vm1877 = vcmp.gt.f32.partialorder %v1875, 1.0
    %vm1878 = vcmp.gt.f32.partialorder %v1876, 1.0
    %v1879 = vsel %vm1877, 1.0, 0.0
    %v1880 = vsel %vm1878, 1.0, 0.0
    %s1881 = scalar_lea.vmem %s5, 272
    %1882 = vst.msk [vmem:[%s1881] sm:$0xff] %vm538, %v1879
    %1883 = vst.msk [vmem:[%s1881 + $0x8] sm:$0x3] %vm540, %v1880
    %s1884 = scalar_lea.vmem %s6, 272
    %1885 = vst.msk [vmem:[%s1884] sm:$0xff] %vm538, %v1875
    %1886 = vst.msk [vmem:[%s1884 + $0x8] sm:$0x3] %vm540, %v1876
    %v1887 = vmul.f32 %v1824, 0.95
    %v1888 = vmul.f32 %v1825, 0.95
    %v1889 = vmul.f32 %v1826, 0.95
    %v1890 = vmul.f32 %v1827, 0.95
    %v1891 = vmul.f32 %v1828, 0.95
    %v1892 = vmul.f32 %v1829, 0.95
    %v1893 = vmul.f32 %v1830, 0.95
    %v1894 = vmul.f32 %v1831, 0.95
    %v1895 = vadd.f32 %v1887, %v445
    %v1896 = vadd.f32 %v1888, %v448
    %v1897 = vadd.f32 %v1889, %v451
    %v1898 = vadd.f32 %v1890, %v454
    %v1899 = vadd.f32 %v1891, %v457
    %v1900 = vadd.f32 %v1892, %v460
    %v1901 = vadd.f32 %v1893, %v463
    %v1902 = vadd.f32 %v1894, %v466
    %v1903 = vsub.f32 %v1895, %v1840
    %v1904 = vsub.f32 %v1896, %v1841
    %v1905 = vsub.f32 %v1897, %v1842
    %v1906 = vsub.f32 %v1898, %v1843
    %v1907 = vsub.f32 %v1899, %v1844
    %v1908 = vsub.f32 %v1900, %v1845
    %v1909 = vsub.f32 %v1901, %v1846
    %v1910 = vsub.f32 %v1902, %v1847
    %vm1911 = vcmp.gt.f32.partialorder %v1903, 1.0
    %vm1912 = vcmp.gt.f32.partialorder %v1904, 1.0
    %vm1913 = vcmp.gt.f32.partialorder %v1905, 1.0
    %vm1914 = vcmp.gt.f32.partialorder %v1906, 1.0
    %vm1915 = vcmp.gt.f32.partialorder %v1907, 1.0
    %vm1916 = vcmp.gt.f32.partialorder %v1908, 1.0
    %vm1917 = vcmp.gt.f32.partialorder %v1909, 1.0
    %vm1918 = vcmp.gt.f32.partialorder %v1910, 1.0
    %v1919 = vsel %vm1911, 1.0, 0.0
    %v1920 = vsel %vm1912, 1.0, 0.0
    %v1921 = vsel %vm1913, 1.0, 0.0
    %v1922 = vsel %vm1914, 1.0, 0.0
    %v1923 = vsel %vm1915, 1.0, 0.0
    %v1924 = vsel %vm1916, 1.0, 0.0
    %v1925 = vsel %vm1917, 1.0, 0.0
    %v1926 = vsel %vm1918, 1.0, 0.0
    %1927 = vmatpush.msra.mxu0 0.0
    %1928 = vmatpush.msra.mxu0 0.0
    %1929 = vmatpush.msra.mxu0 0.0
    %1930 = vmatpush.msra.mxu0 0.0
    %1931 = vmatpush.msra.mxu0 0.0
    %1932 = vmatpush.msra.mxu0 0.0
    %1933 = vmatpush.msra.mxu0 0.0
    %1934 = vmatpush.msra.mxu0 0.0
    %1935 = vmatpush.msra.mxu0 %v1926
    %1936 = vmatpush.msra.mxu0 %v1925
    %1937 = vmatpush.msra.mxu0 %v1924
    %1938 = vmatpush.msra.mxu0 %v1923
    %1939 = vmatpush.msra.mxu0 %v1922
    %1940 = vmatpush.msra.mxu0 %v1921
    %1941 = vmatpush.msra.mxu0 %v1920
    %1942 = vmatpush.msra.mxu0 %v1919
    %1943 = vmatmul.f32.gmra.mxu0 %v504
    %v1944 = vpop.f32.mrf.mxu0
    %v1945 = vadd.f32 %v471, %v1944
    %1946 = vmatmul.f32.gmra.mxu0 %v507
    %v1947 = vpop.f32.mrf.mxu0
    %v1948 = vadd.f32 %v476, %v1947
    %1949 = vdwg.mxu0
    %v1950 = vmul.f32 %v1875, 0.95
    %v1951 = vmul.f32 %v1876, 0.95
    %v1952 = vadd.f32 %v1950, %v1945
    %v1953 = vadd.f32 %v1951, %v1948
    %v1954 = vsub.f32 %v1952, %v1879
    %v1955 = vsub.f32 %v1953, %v1880
    %vm1956 = vcmp.gt.f32.partialorder %v1954, 1.0
    %vm1957 = vcmp.gt.f32.partialorder %v1955, 1.0
    %v1958 = vsel %vm1956, 1.0, 0.0
    %v1959 = vsel %vm1957, 1.0, 0.0
    %s1960 = scalar_lea.vmem %s5, 288
    %1961 = vst.msk [vmem:[%s1960] sm:$0xff] %vm538, %v1958
    %1962 = vst.msk [vmem:[%s1960 + $0x8] sm:$0x3] %vm540, %v1959
    %s1963 = scalar_lea.vmem %s6, 288
    %1964 = vst.msk [vmem:[%s1963] sm:$0xff] %vm538, %v1954
    %1965 = vst.msk [vmem:[%s1963 + $0x8] sm:$0x3] %vm540, %v1955
    %v1966 = vmul.f32 %v1903, 0.95
    %v1967 = vmul.f32 %v1904, 0.95
    %v1968 = vmul.f32 %v1905, 0.95
    %v1969 = vmul.f32 %v1906, 0.95
    %v1970 = vmul.f32 %v1907, 0.95
    %v1971 = vmul.f32 %v1908, 0.95
    %v1972 = vmul.f32 %v1909, 0.95
    %v1973 = vmul.f32 %v1910, 0.95
    %v1974 = vadd.f32 %v1966, %v445
    %v1975 = vadd.f32 %v1967, %v448
    %v1976 = vadd.f32 %v1968, %v451
    %v1977 = vadd.f32 %v1969, %v454
    %v1978 = vadd.f32 %v1970, %v457
    %v1979 = vadd.f32 %v1971, %v460
    %v1980 = vadd.f32 %v1972, %v463
    %v1981 = vadd.f32 %v1973, %v466
    %v1982 = vsub.f32 %v1974, %v1919
    %v1983 = vsub.f32 %v1975, %v1920
    %v1984 = vsub.f32 %v1976, %v1921
    %v1985 = vsub.f32 %v1977, %v1922
    %v1986 = vsub.f32 %v1978, %v1923
    %v1987 = vsub.f32 %v1979, %v1924
    %v1988 = vsub.f32 %v1980, %v1925
    %v1989 = vsub.f32 %v1981, %v1926
    %vm1990 = vcmp.gt.f32.partialorder %v1982, 1.0
    %vm1991 = vcmp.gt.f32.partialorder %v1983, 1.0
    %vm1992 = vcmp.gt.f32.partialorder %v1984, 1.0
    %vm1993 = vcmp.gt.f32.partialorder %v1985, 1.0
    %vm1994 = vcmp.gt.f32.partialorder %v1986, 1.0
    %vm1995 = vcmp.gt.f32.partialorder %v1987, 1.0
    %vm1996 = vcmp.gt.f32.partialorder %v1988, 1.0
    %vm1997 = vcmp.gt.f32.partialorder %v1989, 1.0
    %v1998 = vsel %vm1990, 1.0, 0.0
    %v1999 = vsel %vm1991, 1.0, 0.0
    %v2000 = vsel %vm1992, 1.0, 0.0
    %v2001 = vsel %vm1993, 1.0, 0.0
    %v2002 = vsel %vm1994, 1.0, 0.0
    %v2003 = vsel %vm1995, 1.0, 0.0
    %v2004 = vsel %vm1996, 1.0, 0.0
    %v2005 = vsel %vm1997, 1.0, 0.0
    %2006 = vmatpush.msra.mxu0 0.0
    %2007 = vmatpush.msra.mxu0 0.0
    %2008 = vmatpush.msra.mxu0 0.0
    %2009 = vmatpush.msra.mxu0 0.0
    %2010 = vmatpush.msra.mxu0 0.0
    %2011 = vmatpush.msra.mxu0 0.0
    %2012 = vmatpush.msra.mxu0 0.0
    %2013 = vmatpush.msra.mxu0 0.0
    %2014 = vmatpush.msra.mxu0 %v2005
    %2015 = vmatpush.msra.mxu0 %v2004
    %2016 = vmatpush.msra.mxu0 %v2003
    %2017 = vmatpush.msra.mxu0 %v2002
    %2018 = vmatpush.msra.mxu0 %v2001
    %2019 = vmatpush.msra.mxu0 %v2000
    %2020 = vmatpush.msra.mxu0 %v1999
    %2021 = vmatpush.msra.mxu0 %v1998
    %2022 = vmatmul.f32.gmra.mxu0 %v504
    %v2023 = vpop.f32.mrf.mxu0
    %v2024 = vadd.f32 %v471, %v2023
    %2025 = vmatmul.f32.gmra.mxu0 %v507
    %v2026 = vpop.f32.mrf.mxu0
    %v2027 = vadd.f32 %v476, %v2026
    %2028 = vdwg.mxu0
    %v2029 = vmul.f32 %v1954, 0.95
    %v2030 = vmul.f32 %v1955, 0.95
    %v2031 = vadd.f32 %v2029, %v2024
    %v2032 = vadd.f32 %v2030, %v2027
    %v2033 = vsub.f32 %v2031, %v1958
    %v2034 = vsub.f32 %v2032, %v1959
    %vm2035 = vcmp.gt.f32.partialorder %v2033, 1.0
    %vm2036 = vcmp.gt.f32.partialorder %v2034, 1.0
    %v2037 = vsel %vm2035, 1.0, 0.0
    %v2038 = vsel %vm2036, 1.0, 0.0
    %s2039 = scalar_lea.vmem %s5, 304
    %2040 = vst.msk [vmem:[%s2039] sm:$0xff] %vm538, %v2037
    %2041 = vst.msk [vmem:[%s2039 + $0x8] sm:$0x3] %vm540, %v2038
    %s2042 = scalar_lea.vmem %s6, 304
    %2043 = vst.msk [vmem:[%s2042] sm:$0xff] %vm538, %v2033
    %2044 = vst.msk [vmem:[%s2042 + $0x8] sm:$0x3] %vm540, %v2034
    %v2045 = vmul.f32 %v1982, 0.95
    %v2046 = vmul.f32 %v1983, 0.95
    %v2047 = vmul.f32 %v1984, 0.95
    %v2048 = vmul.f32 %v1985, 0.95
    %v2049 = vmul.f32 %v1986, 0.95
    %v2050 = vmul.f32 %v1987, 0.95
    %v2051 = vmul.f32 %v1988, 0.95
    %v2052 = vmul.f32 %v1989, 0.95
    %v2053 = vadd.f32 %v2045, %v445
    %v2054 = vadd.f32 %v2046, %v448
    %v2055 = vadd.f32 %v2047, %v451
    %v2056 = vadd.f32 %v2048, %v454
    %v2057 = vadd.f32 %v2049, %v457
    %v2058 = vadd.f32 %v2050, %v460
    %v2059 = vadd.f32 %v2051, %v463
    %v2060 = vadd.f32 %v2052, %v466
    %v2061 = vsub.f32 %v2053, %v1998
    %v2062 = vsub.f32 %v2054, %v1999
    %v2063 = vsub.f32 %v2055, %v2000
    %v2064 = vsub.f32 %v2056, %v2001
    %v2065 = vsub.f32 %v2057, %v2002
    %v2066 = vsub.f32 %v2058, %v2003
    %v2067 = vsub.f32 %v2059, %v2004
    %v2068 = vsub.f32 %v2060, %v2005
    %vm2069 = vcmp.gt.f32.partialorder %v2061, 1.0
    %vm2070 = vcmp.gt.f32.partialorder %v2062, 1.0
    %vm2071 = vcmp.gt.f32.partialorder %v2063, 1.0
    %vm2072 = vcmp.gt.f32.partialorder %v2064, 1.0
    %vm2073 = vcmp.gt.f32.partialorder %v2065, 1.0
    %vm2074 = vcmp.gt.f32.partialorder %v2066, 1.0
    %vm2075 = vcmp.gt.f32.partialorder %v2067, 1.0
    %vm2076 = vcmp.gt.f32.partialorder %v2068, 1.0
    %v2077 = vsel %vm2069, 1.0, 0.0
    %v2078 = vsel %vm2070, 1.0, 0.0
    %v2079 = vsel %vm2071, 1.0, 0.0
    %v2080 = vsel %vm2072, 1.0, 0.0
    %v2081 = vsel %vm2073, 1.0, 0.0
    %v2082 = vsel %vm2074, 1.0, 0.0
    %v2083 = vsel %vm2075, 1.0, 0.0
    %v2084 = vsel %vm2076, 1.0, 0.0
    %2085 = vmatpush.msra.mxu0 0.0
    %2086 = vmatpush.msra.mxu0 0.0
    %2087 = vmatpush.msra.mxu0 0.0
    %2088 = vmatpush.msra.mxu0 0.0
    %2089 = vmatpush.msra.mxu0 0.0
    %2090 = vmatpush.msra.mxu0 0.0
    %2091 = vmatpush.msra.mxu0 0.0
    %2092 = vmatpush.msra.mxu0 0.0
    %2093 = vmatpush.msra.mxu0 %v2084
    %2094 = vmatpush.msra.mxu0 %v2083
    %2095 = vmatpush.msra.mxu0 %v2082
    %2096 = vmatpush.msra.mxu0 %v2081
    %2097 = vmatpush.msra.mxu0 %v2080
    %2098 = vmatpush.msra.mxu0 %v2079
    %2099 = vmatpush.msra.mxu0 %v2078
    %2100 = vmatpush.msra.mxu0 %v2077
    %2101 = vmatmul.f32.gmra.mxu0 %v504
    %v2102 = vpop.f32.mrf.mxu0
    %v2103 = vadd.f32 %v471, %v2102
    %2104 = vmatmul.f32.gmra.mxu0 %v507
    %v2105 = vpop.f32.mrf.mxu0
    %v2106 = vadd.f32 %v476, %v2105
    %2107 = vdwg.mxu0
    %v2108 = vmul.f32 %v2033, 0.95
    %v2109 = vmul.f32 %v2034, 0.95
    %v2110 = vadd.f32 %v2108, %v2103
    %v2111 = vadd.f32 %v2109, %v2106
    %v2112 = vsub.f32 %v2110, %v2037
    %v2113 = vsub.f32 %v2111, %v2038
    %vm2114 = vcmp.gt.f32.partialorder %v2112, 1.0
    %vm2115 = vcmp.gt.f32.partialorder %v2113, 1.0
    %v2116 = vsel %vm2114, 1.0, 0.0
    %v2117 = vsel %vm2115, 1.0, 0.0
    %s2118 = scalar_lea.vmem %s5, 320
    %2119 = vst.msk [vmem:[%s2118] sm:$0xff] %vm538, %v2116
    %2120 = vst.msk [vmem:[%s2118 + $0x8] sm:$0x3] %vm540, %v2117
    %s2121 = scalar_lea.vmem %s6, 320
    %2122 = vst.msk [vmem:[%s2121] sm:$0xff] %vm538, %v2112
    %2123 = vst.msk [vmem:[%s2121 + $0x8] sm:$0x3] %vm540, %v2113
    %v2124 = vmul.f32 %v2061, 0.95
    %v2125 = vmul.f32 %v2062, 0.95
    %v2126 = vmul.f32 %v2063, 0.95
    %v2127 = vmul.f32 %v2064, 0.95
    %v2128 = vmul.f32 %v2065, 0.95
    %v2129 = vmul.f32 %v2066, 0.95
    %v2130 = vmul.f32 %v2067, 0.95
    %v2131 = vmul.f32 %v2068, 0.95
    %v2132 = vadd.f32 %v2124, %v445
    %v2133 = vadd.f32 %v2125, %v448
    %v2134 = vadd.f32 %v2126, %v451
    %v2135 = vadd.f32 %v2127, %v454
    %v2136 = vadd.f32 %v2128, %v457
    %v2137 = vadd.f32 %v2129, %v460
    %v2138 = vadd.f32 %v2130, %v463
    %v2139 = vadd.f32 %v2131, %v466
    %v2140 = vsub.f32 %v2132, %v2077
    %v2141 = vsub.f32 %v2133, %v2078
    %v2142 = vsub.f32 %v2134, %v2079
    %v2143 = vsub.f32 %v2135, %v2080
    %v2144 = vsub.f32 %v2136, %v2081
    %v2145 = vsub.f32 %v2137, %v2082
    %v2146 = vsub.f32 %v2138, %v2083
    %v2147 = vsub.f32 %v2139, %v2084
    %vm2148 = vcmp.gt.f32.partialorder %v2140, 1.0
    %vm2149 = vcmp.gt.f32.partialorder %v2141, 1.0
    %vm2150 = vcmp.gt.f32.partialorder %v2142, 1.0
    %vm2151 = vcmp.gt.f32.partialorder %v2143, 1.0
    %vm2152 = vcmp.gt.f32.partialorder %v2144, 1.0
    %vm2153 = vcmp.gt.f32.partialorder %v2145, 1.0
    %vm2154 = vcmp.gt.f32.partialorder %v2146, 1.0
    %vm2155 = vcmp.gt.f32.partialorder %v2147, 1.0
    %v2156 = vsel %vm2148, 1.0, 0.0
    %v2157 = vsel %vm2149, 1.0, 0.0
    %v2158 = vsel %vm2150, 1.0, 0.0
    %v2159 = vsel %vm2151, 1.0, 0.0
    %v2160 = vsel %vm2152, 1.0, 0.0
    %v2161 = vsel %vm2153, 1.0, 0.0
    %v2162 = vsel %vm2154, 1.0, 0.0
    %v2163 = vsel %vm2155, 1.0, 0.0
    %2164 = vmatpush.msra.mxu0 0.0
    %2165 = vmatpush.msra.mxu0 0.0
    %2166 = vmatpush.msra.mxu0 0.0
    %2167 = vmatpush.msra.mxu0 0.0
    %2168 = vmatpush.msra.mxu0 0.0
    %2169 = vmatpush.msra.mxu0 0.0
    %2170 = vmatpush.msra.mxu0 0.0
    %2171 = vmatpush.msra.mxu0 0.0
    %2172 = vmatpush.msra.mxu0 %v2163
    %2173 = vmatpush.msra.mxu0 %v2162
    %2174 = vmatpush.msra.mxu0 %v2161
    %2175 = vmatpush.msra.mxu0 %v2160
    %2176 = vmatpush.msra.mxu0 %v2159
    %2177 = vmatpush.msra.mxu0 %v2158
    %2178 = vmatpush.msra.mxu0 %v2157
    %2179 = vmatpush.msra.mxu0 %v2156
    %2180 = vmatmul.f32.gmra.mxu0 %v504
    %v2181 = vpop.f32.mrf.mxu0
    %v2182 = vadd.f32 %v471, %v2181
    %2183 = vmatmul.f32.gmra.mxu0 %v507
    %v2184 = vpop.f32.mrf.mxu0
    %v2185 = vadd.f32 %v476, %v2184
    %2186 = vdwg.mxu0
    %v2187 = vmul.f32 %v2112, 0.95
    %v2188 = vmul.f32 %v2113, 0.95
    %v2189 = vadd.f32 %v2187, %v2182
    %v2190 = vadd.f32 %v2188, %v2185
    %v2191 = vsub.f32 %v2189, %v2116
    %v2192 = vsub.f32 %v2190, %v2117
    %vm2193 = vcmp.gt.f32.partialorder %v2191, 1.0
    %vm2194 = vcmp.gt.f32.partialorder %v2192, 1.0
    %v2195 = vsel %vm2193, 1.0, 0.0
    %v2196 = vsel %vm2194, 1.0, 0.0
    %s2197 = scalar_lea.vmem %s5, 336
    %2198 = vst.msk [vmem:[%s2197] sm:$0xff] %vm538, %v2195
    %2199 = vst.msk [vmem:[%s2197 + $0x8] sm:$0x3] %vm540, %v2196
    %s2200 = scalar_lea.vmem %s6, 336
    %2201 = vst.msk [vmem:[%s2200] sm:$0xff] %vm538, %v2191
    %2202 = vst.msk [vmem:[%s2200 + $0x8] sm:$0x3] %vm540, %v2192
    %v2203 = vmul.f32 %v2140, 0.95
    %v2204 = vmul.f32 %v2141, 0.95
    %v2205 = vmul.f32 %v2142, 0.95
    %v2206 = vmul.f32 %v2143, 0.95
    %v2207 = vmul.f32 %v2144, 0.95
    %v2208 = vmul.f32 %v2145, 0.95
    %v2209 = vmul.f32 %v2146, 0.95
    %v2210 = vmul.f32 %v2147, 0.95
    %v2211 = vadd.f32 %v2203, %v445
    %v2212 = vadd.f32 %v2204, %v448
    %v2213 = vadd.f32 %v2205, %v451
    %v2214 = vadd.f32 %v2206, %v454
    %v2215 = vadd.f32 %v2207, %v457
    %v2216 = vadd.f32 %v2208, %v460
    %v2217 = vadd.f32 %v2209, %v463
    %v2218 = vadd.f32 %v2210, %v466
    %v2219 = vsub.f32 %v2211, %v2156
    %v2220 = vsub.f32 %v2212, %v2157
    %v2221 = vsub.f32 %v2213, %v2158
    %v2222 = vsub.f32 %v2214, %v2159
    %v2223 = vsub.f32 %v2215, %v2160
    %v2224 = vsub.f32 %v2216, %v2161
    %v2225 = vsub.f32 %v2217, %v2162
    %v2226 = vsub.f32 %v2218, %v2163
    %vm2227 = vcmp.gt.f32.partialorder %v2219, 1.0
    %vm2228 = vcmp.gt.f32.partialorder %v2220, 1.0
    %vm2229 = vcmp.gt.f32.partialorder %v2221, 1.0
    %vm2230 = vcmp.gt.f32.partialorder %v2222, 1.0
    %vm2231 = vcmp.gt.f32.partialorder %v2223, 1.0
    %vm2232 = vcmp.gt.f32.partialorder %v2224, 1.0
    %vm2233 = vcmp.gt.f32.partialorder %v2225, 1.0
    %vm2234 = vcmp.gt.f32.partialorder %v2226, 1.0
    %v2235 = vsel %vm2227, 1.0, 0.0
    %v2236 = vsel %vm2228, 1.0, 0.0
    %v2237 = vsel %vm2229, 1.0, 0.0
    %v2238 = vsel %vm2230, 1.0, 0.0
    %v2239 = vsel %vm2231, 1.0, 0.0
    %v2240 = vsel %vm2232, 1.0, 0.0
    %v2241 = vsel %vm2233, 1.0, 0.0
    %v2242 = vsel %vm2234, 1.0, 0.0
    %2243 = vmatpush.msra.mxu0 0.0
    %2244 = vmatpush.msra.mxu0 0.0
    %2245 = vmatpush.msra.mxu0 0.0
    %2246 = vmatpush.msra.mxu0 0.0
    %2247 = vmatpush.msra.mxu0 0.0
    %2248 = vmatpush.msra.mxu0 0.0
    %2249 = vmatpush.msra.mxu0 0.0
    %2250 = vmatpush.msra.mxu0 0.0
    %2251 = vmatpush.msra.mxu0 %v2242
    %2252 = vmatpush.msra.mxu0 %v2241
    %2253 = vmatpush.msra.mxu0 %v2240
    %2254 = vmatpush.msra.mxu0 %v2239
    %2255 = vmatpush.msra.mxu0 %v2238
    %2256 = vmatpush.msra.mxu0 %v2237
    %2257 = vmatpush.msra.mxu0 %v2236
    %2258 = vmatpush.msra.mxu0 %v2235
    %2259 = vmatmul.f32.gmra.mxu0 %v504
    %v2260 = vpop.f32.mrf.mxu0
    %v2261 = vadd.f32 %v471, %v2260
    %2262 = vmatmul.f32.gmra.mxu0 %v507
    %v2263 = vpop.f32.mrf.mxu0
    %v2264 = vadd.f32 %v476, %v2263
    %2265 = vdwg.mxu0
    %v2266 = vmul.f32 %v2191, 0.95
    %v2267 = vmul.f32 %v2192, 0.95
    %v2268 = vadd.f32 %v2266, %v2261
    %v2269 = vadd.f32 %v2267, %v2264
    %v2270 = vsub.f32 %v2268, %v2195
    %v2271 = vsub.f32 %v2269, %v2196
    %vm2272 = vcmp.gt.f32.partialorder %v2270, 1.0
    %vm2273 = vcmp.gt.f32.partialorder %v2271, 1.0
    %v2274 = vsel %vm2272, 1.0, 0.0
    %v2275 = vsel %vm2273, 1.0, 0.0
    %s2276 = scalar_lea.vmem %s5, 352
    %2277 = vst.msk [vmem:[%s2276] sm:$0xff] %vm538, %v2274
    %2278 = vst.msk [vmem:[%s2276 + $0x8] sm:$0x3] %vm540, %v2275
    %s2279 = scalar_lea.vmem %s6, 352
    %2280 = vst.msk [vmem:[%s2279] sm:$0xff] %vm538, %v2270
    %2281 = vst.msk [vmem:[%s2279 + $0x8] sm:$0x3] %vm540, %v2271
    %v2282 = vmul.f32 %v2219, 0.95
    %v2283 = vmul.f32 %v2220, 0.95
    %v2284 = vmul.f32 %v2221, 0.95
    %v2285 = vmul.f32 %v2222, 0.95
    %v2286 = vmul.f32 %v2223, 0.95
    %v2287 = vmul.f32 %v2224, 0.95
    %v2288 = vmul.f32 %v2225, 0.95
    %v2289 = vmul.f32 %v2226, 0.95
    %v2290 = vadd.f32 %v2282, %v445
    %v2291 = vadd.f32 %v2283, %v448
    %v2292 = vadd.f32 %v2284, %v451
    %v2293 = vadd.f32 %v2285, %v454
    %v2294 = vadd.f32 %v2286, %v457
    %v2295 = vadd.f32 %v2287, %v460
    %v2296 = vadd.f32 %v2288, %v463
    %v2297 = vadd.f32 %v2289, %v466
    %v2298 = vsub.f32 %v2290, %v2235
    %v2299 = vsub.f32 %v2291, %v2236
    %v2300 = vsub.f32 %v2292, %v2237
    %v2301 = vsub.f32 %v2293, %v2238
    %v2302 = vsub.f32 %v2294, %v2239
    %v2303 = vsub.f32 %v2295, %v2240
    %v2304 = vsub.f32 %v2296, %v2241
    %v2305 = vsub.f32 %v2297, %v2242
    %vm2306 = vcmp.gt.f32.partialorder %v2298, 1.0
    %vm2307 = vcmp.gt.f32.partialorder %v2299, 1.0
    %vm2308 = vcmp.gt.f32.partialorder %v2300, 1.0
    %vm2309 = vcmp.gt.f32.partialorder %v2301, 1.0
    %vm2310 = vcmp.gt.f32.partialorder %v2302, 1.0
    %vm2311 = vcmp.gt.f32.partialorder %v2303, 1.0
    %vm2312 = vcmp.gt.f32.partialorder %v2304, 1.0
    %vm2313 = vcmp.gt.f32.partialorder %v2305, 1.0
    %v2314 = vsel %vm2306, 1.0, 0.0
    %v2315 = vsel %vm2307, 1.0, 0.0
    %v2316 = vsel %vm2308, 1.0, 0.0
    %v2317 = vsel %vm2309, 1.0, 0.0
    %v2318 = vsel %vm2310, 1.0, 0.0
    %v2319 = vsel %vm2311, 1.0, 0.0
    %v2320 = vsel %vm2312, 1.0, 0.0
    %v2321 = vsel %vm2313, 1.0, 0.0
    %2322 = vmatpush.msra.mxu0 0.0
    %2323 = vmatpush.msra.mxu0 0.0
    %2324 = vmatpush.msra.mxu0 0.0
    %2325 = vmatpush.msra.mxu0 0.0
    %2326 = vmatpush.msra.mxu0 0.0
    %2327 = vmatpush.msra.mxu0 0.0
    %2328 = vmatpush.msra.mxu0 0.0
    %2329 = vmatpush.msra.mxu0 0.0
    %2330 = vmatpush.msra.mxu0 %v2321
    %2331 = vmatpush.msra.mxu0 %v2320
    %2332 = vmatpush.msra.mxu0 %v2319
    %2333 = vmatpush.msra.mxu0 %v2318
    %2334 = vmatpush.msra.mxu0 %v2317
    %2335 = vmatpush.msra.mxu0 %v2316
    %2336 = vmatpush.msra.mxu0 %v2315
    %2337 = vmatpush.msra.mxu0 %v2314
    %2338 = vmatmul.f32.gmra.mxu0 %v504
    %v2339 = vpop.f32.mrf.mxu0
    %v2340 = vadd.f32 %v471, %v2339
    %2341 = vmatmul.f32.gmra.mxu0 %v507
    %v2342 = vpop.f32.mrf.mxu0
    %v2343 = vadd.f32 %v476, %v2342
    %2344 = vdwg.mxu0
    %v2345 = vmul.f32 %v2270, 0.95
    %v2346 = vmul.f32 %v2271, 0.95
    %v2347 = vadd.f32 %v2345, %v2340
    %v2348 = vadd.f32 %v2346, %v2343
    %v2349 = vsub.f32 %v2347, %v2274
    %v2350 = vsub.f32 %v2348, %v2275
    %vm2351 = vcmp.gt.f32.partialorder %v2349, 1.0
    %vm2352 = vcmp.gt.f32.partialorder %v2350, 1.0
    %v2353 = vsel %vm2351, 1.0, 0.0
    %v2354 = vsel %vm2352, 1.0, 0.0
    %s2355 = scalar_lea.vmem %s5, 368
    %2356 = vst.msk [vmem:[%s2355] sm:$0xff] %vm538, %v2353
    %2357 = vst.msk [vmem:[%s2355 + $0x8] sm:$0x3] %vm540, %v2354
    %s2358 = scalar_lea.vmem %s6, 368
    %2359 = vst.msk [vmem:[%s2358] sm:$0xff] %vm538, %v2349
    %2360 = vst.msk [vmem:[%s2358 + $0x8] sm:$0x3] %vm540, %v2350
    %v2361 = vmul.f32 %v2298, 0.95
    %v2362 = vmul.f32 %v2299, 0.95
    %v2363 = vmul.f32 %v2300, 0.95
    %v2364 = vmul.f32 %v2301, 0.95
    %v2365 = vmul.f32 %v2302, 0.95
    %v2366 = vmul.f32 %v2303, 0.95
    %v2367 = vmul.f32 %v2304, 0.95
    %v2368 = vmul.f32 %v2305, 0.95
    %v2369 = vadd.f32 %v2361, %v445
    %v2370 = vadd.f32 %v2362, %v448
    %v2371 = vadd.f32 %v2363, %v451
    %v2372 = vadd.f32 %v2364, %v454
    %v2373 = vadd.f32 %v2365, %v457
    %v2374 = vadd.f32 %v2366, %v460
    %v2375 = vadd.f32 %v2367, %v463
    %v2376 = vadd.f32 %v2368, %v466
    %v2377 = vsub.f32 %v2369, %v2314
    %v2378 = vsub.f32 %v2370, %v2315
    %v2379 = vsub.f32 %v2371, %v2316
    %v2380 = vsub.f32 %v2372, %v2317
    %v2381 = vsub.f32 %v2373, %v2318
    %v2382 = vsub.f32 %v2374, %v2319
    %v2383 = vsub.f32 %v2375, %v2320
    %v2384 = vsub.f32 %v2376, %v2321
    %vm2385 = vcmp.gt.f32.partialorder %v2377, 1.0
    %vm2386 = vcmp.gt.f32.partialorder %v2378, 1.0
    %vm2387 = vcmp.gt.f32.partialorder %v2379, 1.0
    %vm2388 = vcmp.gt.f32.partialorder %v2380, 1.0
    %vm2389 = vcmp.gt.f32.partialorder %v2381, 1.0
    %vm2390 = vcmp.gt.f32.partialorder %v2382, 1.0
    %vm2391 = vcmp.gt.f32.partialorder %v2383, 1.0
    %vm2392 = vcmp.gt.f32.partialorder %v2384, 1.0
    %v2393 = vsel %vm2385, 1.0, 0.0
    %v2394 = vsel %vm2386, 1.0, 0.0
    %v2395 = vsel %vm2387, 1.0, 0.0
    %v2396 = vsel %vm2388, 1.0, 0.0
    %v2397 = vsel %vm2389, 1.0, 0.0
    %v2398 = vsel %vm2390, 1.0, 0.0
    %v2399 = vsel %vm2391, 1.0, 0.0
    %v2400 = vsel %vm2392, 1.0, 0.0
    %2401 = vmatpush.msra.mxu0 0.0
    %2402 = vmatpush.msra.mxu0 0.0
    %2403 = vmatpush.msra.mxu0 0.0
    %2404 = vmatpush.msra.mxu0 0.0
    %2405 = vmatpush.msra.mxu0 0.0
    %2406 = vmatpush.msra.mxu0 0.0
    %2407 = vmatpush.msra.mxu0 0.0
    %2408 = vmatpush.msra.mxu0 0.0
    %2409 = vmatpush.msra.mxu0 %v2400
    %2410 = vmatpush.msra.mxu0 %v2399
    %2411 = vmatpush.msra.mxu0 %v2398
    %2412 = vmatpush.msra.mxu0 %v2397
    %2413 = vmatpush.msra.mxu0 %v2396
    %2414 = vmatpush.msra.mxu0 %v2395
    %2415 = vmatpush.msra.mxu0 %v2394
    %2416 = vmatpush.msra.mxu0 %v2393
    %2417 = vmatmul.f32.gmra.mxu0 %v504
    %v2418 = vpop.f32.mrf.mxu0
    %v2419 = vadd.f32 %v471, %v2418
    %2420 = vmatmul.f32.gmra.mxu0 %v507
    %v2421 = vpop.f32.mrf.mxu0
    %v2422 = vadd.f32 %v476, %v2421
    %2423 = vdwg.mxu0
    %v2424 = vmul.f32 %v2349, 0.95
    %v2425 = vmul.f32 %v2350, 0.95
    %v2426 = vadd.f32 %v2424, %v2419
    %v2427 = vadd.f32 %v2425, %v2422
    %v2428 = vsub.f32 %v2426, %v2353
    %v2429 = vsub.f32 %v2427, %v2354
    %vm2430 = vcmp.gt.f32.partialorder %v2428, 1.0
    %vm2431 = vcmp.gt.f32.partialorder %v2429, 1.0
    %v2432 = vsel %vm2430, 1.0, 0.0
    %v2433 = vsel %vm2431, 1.0, 0.0
    %s2434 = scalar_lea.vmem %s5, 384
    %2435 = vst.msk [vmem:[%s2434] sm:$0xff] %vm538, %v2432
    %2436 = vst.msk [vmem:[%s2434 + $0x8] sm:$0x3] %vm540, %v2433
    %s2437 = scalar_lea.vmem %s6, 384
    %2438 = vst.msk [vmem:[%s2437] sm:$0xff] %vm538, %v2428
    %2439 = vst.msk [vmem:[%s2437 + $0x8] sm:$0x3] %vm540, %v2429
    // Predicated region
    $region26: #{tpu_custom_call.1} parent=1 // pred_check
      _
    $region27: #{tpu_custom_call.1} parent=1 // pred_check_branch
      %2441 = sbr.rel (0) target = $region29
    $region28: #{tpu_custom_call.1} parent=1 // pred_region
      _
    $region29: #{tpu_custom_call.1} parent=1 // pred_fallthru
      _
    // Predicated region
    $region30: #{tpu_custom_call.1} parent=1 // pred_check
      _
    $region31: #{tpu_custom_call.1} parent=1 // pred_check_branch
      %2443 = sbr.rel (0) target = $region33
    $region32: #{tpu_custom_call.1} parent=1 // pred_region
      _
    $region33: #{tpu_custom_call.1} parent=1 // pred_fallthru
      _
    // Predicated region
    $region34: #{tpu_custom_call.1} parent=1 // pred_check
      _
    $region35: #{tpu_custom_call.1} parent=1 // pred_check_branch
      %2445 = sbr.rel (0) target = $region37
    $region36: #{tpu_custom_call.1} parent=1 // pred_region
      _
    $region37: #{tpu_custom_call.1} parent=1 // pred_fallthru
      _
    // Predicated region
    $region38: #{tpu_custom_call.1} parent=1 // pred_check
      _
    $region39: #{tpu_custom_call.1} parent=1 // pred_check_branch
      %2447 = sbr.rel (0) target = $region41
    $region40: #{tpu_custom_call.1} parent=1 // pred_region
      _
    $region41: #{tpu_custom_call.1} parent=1 // pred_fallthru
      _
    %2448 = vsyncpa [#allocation3], 1

</llo_original>
